<compile_context>
chip_gen: v7x
topology: tpu7x:2x2x1
jax: 0.10.0
libtpu: 0.0.40
codegen_flags: <defaults>
</compile_context>

<pallas_src>
import functools
import math

import jax
import jax.numpy as jnp
from jax import lax
from jax.experimental import pallas as pl
from jax.experimental.pallas import tpu as pltpu


LN_EPS = 1e-5
MASK_NEG = -1e9


def _layer_norm(x, gamma, beta):
    mean = jnp.mean(x, axis=-1, keepdims=True)
    var = jnp.mean((x - mean) ** 2, axis=-1, keepdims=True)
    return (x - mean) * lax.rsqrt(var + LN_EPS) * gamma + beta


def _pick_seq_tile(s, target):
    """Largest tile <= target that divides s and is a multiple of 8 (or s itself)."""
    if s <= target:
        return s
    start = (min(target, s) // 8) * 8
    for t in range(start, 7, -8):
        if s % t == 0:
            return t
    return s


def _resident_vmem_spec():
    # Whole array resident in VMEM for the call's duration: grid-invariant
    # weights are loaded once and are NOT double-buffered by the pipeline.
    return pl.BlockSpec(memory_space=pltpu.MemorySpace.VMEM)


def _vmem_limit_bytes(*, S, D, d_ff, tq, explicit_mask):
    """Scoped-VMEM limit computed from actual buffer sizes (always set: the
    v5e default is 16 MiB, v6e/v7x 32 MiB).  Floor = 32 MiB, cap = 128 MiB."""
    bf16, f32 = 2, 4
    weights = bf16 * (D * D + 2 * D * D + D * D + D * d_ff + d_ff * D)  # wq,wkv,wo,w1,w2
    weights += f32 * (10 * D + 2 * d_ff)                                # biases + LN params
    blocked = 2 * f32 * tq * D * 2            # x in + y out (double-buffered)
    blocked += 2 * bf16 * S * D * 2           # k + v (double-buffered)
    if explicit_mask:
        blocked += 2 * bf16 * tq * S
    scratch = bf16 * tq * D                   # per-head output slab
    temps = f32 * (3 * tq * S + 6 * tq * D + 2 * tq * min(d_ff, 1024))
    est = weights + blocked + scratch + temps
    return int(max(32 << 20, min(est * 2, 128 << 20)))


# ----------------------------- kernel 1: K/V projection ----------------------
def _kv_proj_kernel(x_ref, wkv_ref, bkv_ref, k_ref, v_ref):
    d = x_ref.shape[-1]
    xb = x_ref[0].astype(jnp.bfloat16)                                  # (ts, D)
    kv = jnp.dot(xb, wkv_ref[...], preferred_element_type=jnp.float32)
    kv = kv + bkv_ref[...]                                              # (ts, 2D) f32
    k_ref[0] = kv[:, :d].astype(jnp.bfloat16)
    v_ref[0] = kv[:, d:].astype(jnp.bfloat16)


def _kv_proj(x, wkv, bkv, *, seq_tile, vmem_limit_bytes):
    B, S, D = x.shape
    ts = seq_tile
    x_spec = pl.BlockSpec((1, ts, D), lambda b, s: (b, s, 0))
    k_spec = pl.BlockSpec((1, ts, D), lambda b, s: (b, s, 0))
    v_spec = pl.BlockSpec((1, ts, D), lambda b, s: (b, s, 0))
    return pl.pallas_call(
        _kv_proj_kernel,
        grid=(B, S // ts),
        in_specs=[x_spec, _resident_vmem_spec(), _resident_vmem_spec()],
        out_specs=(k_spec, v_spec),
        out_shape=(jax.ShapeDtypeStruct((B, S, D), jnp.bfloat16),
                   jax.ShapeDtypeStruct((B, S, D), jnp.bfloat16)),
        compiler_params=pltpu.CompilerParams(
            dimension_semantics=("parallel", "parallel"),
            vmem_limit_bytes=vmem_limit_bytes),
    )(x, wkv, bkv)


# -------------------- kernel 2: attention + FFN (per query tile) -------------
def _attn_ffn_kernel(*refs, n_heads, d_feature, ff_chunk, mask_mode):
    if mask_mode == "explicit":
        (x_ref, k_ref, v_ref, mask_ref,
         wq_ref, bq_ref, wo_ref, bo_ref, w1_ref, b1_ref, w2_ref, b2_ref,
         g1_ref, be1_ref, g3_ref, be3_ref, y_ref, slab_ref) = refs
    else:
        (x_ref, k_ref, v_ref,
         wq_ref, bq_ref, wo_ref, bo_ref, w1_ref, b1_ref, w2_ref, b2_ref,
         g1_ref, be1_ref, g3_ref, be3_ref, y_ref, slab_ref) = refs
        mask_ref = None

    tq, d_model = x_ref.shape[1], x_ref.shape[2]
    s_kv = k_ref.shape[1]
    d_ff = w1_ref.shape[1]

    x = x_ref[0].astype(jnp.float32)                                    # (tq, D) residual

    # --- Q projection for this query tile (full-K matmul, scale folded once) ---
    scale = 1.0 / math.sqrt(d_feature)
    q = jnp.dot(x.astype(jnp.bfloat16), wq_ref[...],
                preferred_element_type=jnp.float32) + bq_ref[...]
    q = (q * scale).astype(jnp.bfloat16)                                # (tq, D)
    k = k_ref[0]                                                        # (S, D) bf16
    v = v_ref[0]                                                        # (S, D) bf16

    # --- additive mask bias for this query tile, shared across all heads ---
    if mask_mode == "causal":
        q0 = pl.program_id(1) * tq
        row = q0 + lax.broadcasted_iota(jnp.int32, (tq, s_kv), 0)
        col = lax.broadcasted_iota(jnp.int32, (tq, s_kv), 1)
        mask_bias = jnp.where(row >= col, 0.0, MASK_NEG).astype(jnp.float32)
    elif mask_mode == "explicit":
        mask_bias = mask_ref[...].astype(jnp.float32)                   # (tq, S)
    else:
        mask_bias = None

    # --- per-head attention; each head ends with a store into its column slice
    #     of the bf16 slab (bounds live ranges), then ONE Wo matmul with K = D.
    for h in range(n_heads):
        lo = h * d_feature
        hi = lo + d_feature
        scores = lax.dot_general(q[:, lo:hi], k[:, lo:hi],
                                 (((1,), (1,)), ((), ())),
                                 preferred_element_type=jnp.float32)    # (tq, S)
        if mask_bias is not None:
            scores = scores + mask_bias
        scores = scores - jnp.max(scores, axis=-1, keepdims=True)
        p = jnp.exp(scores)
        inv = pl.reciprocal(jnp.sum(p, axis=-1, keepdims=True), approx=True)
        p = (p * inv).astype(jnp.bfloat16)                              # bf16 probs
        head = jnp.dot(p, v[:, lo:hi], preferred_element_type=jnp.float32)
        slab_ref[:, lo:hi] = head.astype(jnp.bfloat16)

    attn = jnp.dot(slab_ref[...], wo_ref[...],
                   preferred_element_type=jnp.float32) + bo_ref[...]

    # x = x + dropout(LayerNorm1(attn))      (dropout == identity at inference)
    x = x + _layer_norm(attn, g1_ref[...], be1_ref[...])

    # --- position-wise FFN, chunked over d_ff: h1 is (tq, chunk), not (tq, d_ff) ---
    xb = x.astype(jnp.bfloat16)
    ff = jnp.zeros((tq, d_model), jnp.float32)
    for c0 in range(0, d_ff, ff_chunk):
        c1 = min(c0 + ff_chunk, d_ff)
        h1 = jnp.dot(xb, w1_ref[:, c0:c1],
                     preferred_element_type=jnp.float32) + b1_ref[:, c0:c1]
        h1 = jnp.maximum(h1, 0.0).astype(jnp.bfloat16)
        ff = ff + jnp.dot(h1, w2_ref[c0:c1, :], preferred_element_type=jnp.float32)
    ff = ff + b2_ref[...]

    # x = x + dropout(LayerNorm3(ff))
    x = x + _layer_norm(ff, g3_ref[...], be3_ref[...])
    y_ref[0] = x.astype(y_ref.dtype)


def _attn_ffn(x, k, v, p, *, n_heads, d_feature, q_tile, ff_chunk,
              mask_mode, mask_bias, vmem_limit_bytes):
    B, S, D = x.shape
    tq = q_tile

    x_spec = pl.BlockSpec((1, tq, D), lambda b, qi: (b, qi, 0))
    k_spec = pl.BlockSpec((1, S, D), lambda b, qi: (b, 0, 0))
    v_spec = pl.BlockSpec((1, S, D), lambda b, qi: (b, 0, 0))

    in_specs = [x_spec, k_spec, v_spec]
    args = [x, k, v]
    if mask_mode == "explicit":
        in_specs.append(pl.BlockSpec((tq, S), lambda b, qi: (qi, 0)))
        args.append(mask_bias)
    for name in ("wq", "bq", "wo", "bo", "w1", "b1", "w2", "b2",
                 "g1", "be1", "g3", "be3"):
        in_specs.append(_resident_vmem_spec())
        args.append(p[name])

    kernel = functools.partial(_attn_ffn_kernel, n_heads=n_heads,
                               d_feature=d_feature, ff_chunk=ff_chunk,
                               mask_mode=mask_mode)

    return pl.pallas_call(
        kernel,
        grid=(B, S // tq),
        in_specs=in_specs,
        out_specs=pl.BlockSpec((1, tq, D), lambda b, qi: (b, qi, 0)),
        out_shape=jax.ShapeDtypeStruct((B, S, D), x.dtype),
        scratch_shapes=[pltpu.VMEM((tq, D), jnp.bfloat16)],     # per-head output slab
        input_output_aliases={0: 0},                            # write over x's buffer
        compiler_params=pltpu.CompilerParams(
            dimension_semantics=("parallel", "parallel"),
            vmem_limit_bytes=vmem_limit_bytes),
    )(*args)


# --------------------------------- top level ---------------------------------
def transformer_decoder_pallas(x, enc_out, blocks, *, n_heads, d_feature,
                               src_mask=None, tgt_mask="causal",
                               q_tile=256, kv_proj_tile=512, ff_chunk=512):
    """tgt_mask: "causal" (mask generated in-kernel, zero HBM mask traffic),
    None (no mask), or an (S,S) {0,1} array shared across the batch (converted
    once to a bf16 additive bias).  NOTE: production configs should use
    D / d_ff / d_feature as multiples of 128 for lane-aligned head slices."""
    del enc_out, src_mask  # unused in the reference forward (no cross-attention)

    B, S, D = x.shape
    assert n_heads * d_feature == D, "d_feature must equal d_model // n_heads"
    d_ff = blocks[0]["w1"].shape[1]
    tq = _pick_seq_tile(S, q_tile)
    ts = _pick_seq_tile(S, kv_proj_tile)
    ffc = min(ff_chunk, d_ff)

    if isinstance(tgt_mask, str):
        if tgt_mask != "causal":
            raise ValueError(f"unknown mask mode {tgt_mask!r}")
        mask_mode, mask_bias = "causal", None
    elif tgt_mask is None:
        mask_mode, mask_bias = "none", None
    else:
        mask_mode = "explicit"
        mask_bias = jnp.where(tgt_mask > 0, 0.0, MASK_NEG).astype(jnp.bfloat16)

    vlim = _vmem_limit_bytes(S=S, D=D, d_ff=d_ff, tq=tq,
                             explicit_mask=(mask_mode == "explicit"))

    for p in blocks:
        k, v = _kv_proj(x, p["wkv"], p["bkv"], seq_tile=ts, vmem_limit_bytes=vlim)
        x = _attn_ffn(x, k, v, p, n_heads=n_heads, d_feature=d_feature,
                      q_tile=tq, ff_chunk=ffc, mask_mode=mask_mode,
                      mask_bias=mask_bias, vmem_limit_bytes=vlim)
    return x


# ------------------------- pure-JAX reference (sanity check) -----------------
def _bf16_matmul(a, b):
    return jnp.dot(a.astype(jnp.bfloat16), b.astype(jnp.bfloat16),
                   preferred_element_type=jnp.float32)


def _decoder_block_ref(x, mask, p, *, n_heads, d_feature):
    B, S, D = x.shape
    q = _bf16_matmul(x, p["wq"]) + p["bq"]
    kv = _bf16_matmul(x, p["wkv"]) + p["bkv"]
    k, v = kv[..., :D], kv[..., D:]
    qh = q.reshape(B, S, n_heads, d_feature).transpose(0, 2, 1, 3)
    kh = k.reshape(B, S, n_heads, d_feature).transpose(0, 2, 1, 3)
    vh = v.reshape(B, S, n_heads, d_feature).transpose(0, 2, 1, 3)
    scores = jnp.einsum("bhqd,bhkd->bhqk",
                        qh.astype(jnp.bfloat16), kh.astype(jnp.bfloat16),
                        preferred_element_type=jnp.float32) / math.sqrt(d_feature)
    scores = jnp.where(mask[None, None] > 0, scores, MASK_NEG)
    probs = jax.nn.softmax(scores, axis=-1)
    attn = jnp.einsum("bhqk,bhkd->bhqd",
                      probs.astype(jnp.bfloat16), vh.astype(jnp.bfloat16),
                      preferred_element_type=jnp.float32)
    attn = attn.transpose(0, 2, 1, 3).reshape(B, S, D)
    attn = _bf16_matmul(attn, p["wo"]) + p["bo"]
    x = x + _layer_norm(attn, p["g1"], p["be1"])
    h1 = jnp.maximum(_bf16_matmul(x, p["w1"]) + p["b1"], 0.0)
    ff = _bf16_matmul(h1, p["w2"]) + p["b2"]
    x = x + _layer_norm(ff, p["g3"], p["be3"])
    return x


def _init_block(key, d_model, d_ff):
    # Weights bf16 (MXU operands, half the HBM->VMEM traffic); biases/LN f32.
    ks = jax.random.split(key, 14)
    s = 0.02

    def w(k, shape):
        return (s * jax.random.normal(k, shape)).astype(jnp.bfloat16)

    def b(k, shape):
        return (s * jax.random.normal(k, shape)).astype(jnp.float32)

    return {
        "wq": w(ks[0], (d_model, d_model)),        "bq": b(ks[1], (1, d_model)),
        "wkv": w(ks[2], (d_model, 2 * d_model)),   "bkv": b(ks[3], (1, 2 * d_model)),
        "wo": w(ks[4], (d_model, d_model)),        "bo": b(ks[5], (1, d_model)),
        "w1": w(ks[6], (d_model, d_ff)),           "b1": b(ks[7], (1, d_ff)),
        "w2": w(ks[8], (d_ff, d_model)),           "b2": b(ks[9], (1, d_model)),
        "g1": (1.0 + s * jax.random.normal(ks[10], (1, d_model))).astype(jnp.float32),
        "be1": b(ks[11], (1, d_model)),
        "g3": (1.0 + s * jax.random.normal(ks[12], (1, d_model))).astype(jnp.float32),
        "be3": b(ks[13], (1, d_model)),
    }


if __name__ == "__main__":
    # Small config consistent with the module (d_feature = d_model // n_heads).
    B, S = 2, 8
    d_model, n_heads, d_ff, n_blocks = 32, 4, 64, 2
    d_feature = d_model // n_heads

    key = jax.random.PRNGKey(0)
    kx, ke, *kb = jax.random.split(key, 2 + n_blocks)
    x = jax.random.normal(kx, (B, S, d_model), jnp.float32)
    enc_out = jax.random.normal(ke, (B, S, d_model), jnp.float32)  # unused by reference
    blocks = [_init_block(k, d_model, d_ff) for k in kb]

    tril = jnp.tril(jnp.ones((S, S), jnp.float32))  # causal mask (reference form)

    ref = x
    for p in blocks:
        ref = _decoder_block_ref(ref, tril, p, n_heads=n_heads, d_feature=d_feature)
    ref = jax.block_until_ready(ref)

    # 1) in-kernel causal mask path (default d_ff chunking: single chunk here)
    run_causal = jax.jit(functools.partial(
        transformer_decoder_pallas, n_heads=n_heads, d_feature=d_feature,
        tgt_mask="causal"))
    out = jax.block_until_ready(run_causal(x, enc_out, blocks))

    # 2) explicit bf16 mask path + exercised d_ff chunking (two 32-wide chunks)
    run_explicit = jax.jit(functools.partial(
        transformer_decoder_pallas, n_heads=n_heads, d_feature=d_feature,
        ff_chunk=32))
    out2 = jax.block_until_ready(run_explicit(x, enc_out, blocks, tgt_mask=tril))

    assert out.shape == (B, S, d_model)
    err1 = float(jnp.max(jnp.abs(out - ref)))
    err2 = float(jnp.max(jnp.abs(out2 - ref)))
    assert jnp.allclose(out, ref, atol=2e-2, rtol=2e-2), f"causal mismatch {err1}"
    assert jnp.allclose(out2, ref, atol=2e-2, rtol=2e-2), f"explicit mismatch {err2}"

    print("KERNEL_OK")
</pallas_src>

<mosaic_0001>
module attributes {stable_mosaic.version = 11 : i64} {
  func.func @_attn_ffn_kernel(%arg0: i32, %arg1: i32, %arg2: memref<1x8x32xf32, #tpu.memory_space<vmem>>, %arg3: memref<1x8x32xbf16, #tpu.memory_space<vmem>>, %arg4: memref<1x8x32xbf16, #tpu.memory_space<vmem>>, %arg5: memref<32x32xbf16, #tpu.memory_space<vmem>>, %arg6: memref<1x32xf32, #tpu.memory_space<vmem>>, %arg7: memref<32x32xbf16, #tpu.memory_space<vmem>>, %arg8: memref<1x32xf32, #tpu.memory_space<vmem>>, %arg9: memref<32x64xbf16, #tpu.memory_space<vmem>>, %arg10: memref<1x64xf32, #tpu.memory_space<vmem>>, %arg11: memref<64x32xbf16, #tpu.memory_space<vmem>>, %arg12: memref<1x32xf32, #tpu.memory_space<vmem>>, %arg13: memref<1x32xf32, #tpu.memory_space<vmem>>, %arg14: memref<1x32xf32, #tpu.memory_space<vmem>>, %arg15: memref<1x32xf32, #tpu.memory_space<vmem>>, %arg16: memref<1x32xf32, #tpu.memory_space<vmem>>, %arg17: memref<1x8x32xf32, #tpu.memory_space<vmem>>, %arg18: memref<8x32xbf16, #tpu.memory_space<vmem>>) attributes {dimension_semantics = [#tpu.dimension_semantics<parallel>, #tpu.dimension_semantics<parallel>], iteration_bounds = array<i64: 2, 1>, scalar_prefetch = 0 : i64, scratch_operands = 1 : i64, tpu.core_type = #tpu.core_type<tc>, window_params = [{transform_indices = @transform_0, window_bounds = array<i64: 1, 8, 32>}, {transform_indices = @transform_1, window_bounds = array<i64: 1, 8, 32>}, {transform_indices = @transform_2, window_bounds = array<i64: 1, 8, 32>}, {pipeline_mode = #tpu.pipeline_mode<synchronous>, transform_indices = @transform_3, window_bounds = array<i64: 32, 32>}, {pipeline_mode = #tpu.pipeline_mode<synchronous>, transform_indices = @transform_4, window_bounds = array<i64: 1, 32>}, {pipeline_mode = #tpu.pipeline_mode<synchronous>, transform_indices = @transform_5, window_bounds = array<i64: 32, 32>}, {pipeline_mode = #tpu.pipeline_mode<synchronous>, transform_indices = @transform_6, window_bounds = array<i64: 1, 32>}, {pipeline_mode = #tpu.pipeline_mode<synchronous>, transform_indices = @transform_7, window_bounds = array<i64: 32, 64>}, {pipeline_mode = #tpu.pipeline_mode<synchronous>, transform_indices = @transform_8, window_bounds = array<i64: 1, 64>}, {pipeline_mode = #tpu.pipeline_mode<synchronous>, transform_indices = @transform_9, window_bounds = array<i64: 64, 32>}, {pipeline_mode = #tpu.pipeline_mode<synchronous>, transform_indices = @transform_10, window_bounds = array<i64: 1, 32>}, {pipeline_mode = #tpu.pipeline_mode<synchronous>, transform_indices = @transform_11, window_bounds = array<i64: 1, 32>}, {pipeline_mode = #tpu.pipeline_mode<synchronous>, transform_indices = @transform_12, window_bounds = array<i64: 1, 32>}, {pipeline_mode = #tpu.pipeline_mode<synchronous>, transform_indices = @transform_13, window_bounds = array<i64: 1, 32>}, {pipeline_mode = #tpu.pipeline_mode<synchronous>, transform_indices = @transform_14, window_bounds = array<i64: 1, 32>}, {transform_indices = @transform_15, window_bounds = array<i64: 1, 8, 32>}]} {
    %c0 = arith.constant 0 : index
    %c0_0 = arith.constant 0 : index
    %c0_1 = arith.constant 0 : index
    %0 = vector.load %arg2[%c0, %c0_0, %c0_1] : memref<1x8x32xf32, #tpu.memory_space<vmem>>, vector<1x8x32xf32>
    %1 = vector.shape_cast %0 : vector<1x8x32xf32> to vector<8x32xf32>
    %2 = arith.truncf %1 : vector<8x32xf32> to vector<8x32xbf16>
    %c0_2 = arith.constant 0 : index
    %c0_3 = arith.constant 0 : index
    %3 = vector.load %arg5[%c0_2, %c0_3] : memref<32x32xbf16, #tpu.memory_space<vmem>>, vector<32x32xbf16>
    %cst = arith.constant dense<0.000000e+00> : vector<8x32xf32>
    %4 = tpu.matmul %2, %3, %cst {dimension_numbers = #tpu.dot_dimension_numbers<[1], [0], [0], [1], [0, 0, 1, 1], [], []>} : vector<8x32xbf16>, vector<32x32xbf16>, vector<8x32xf32> -> vector<8x32xf32>
    %c0_4 = arith.constant 0 : index
    %c0_5 = arith.constant 0 : index
    %5 = vector.load %arg6[%c0_4, %c0_5] : memref<1x32xf32, #tpu.memory_space<vmem>>, vector<1x32xf32>
    %6 = vector.broadcast %5 : vector<1x32xf32> to vector<8x32xf32>
    %7 = arith.addf %4, %6 : vector<8x32xf32>
    %cst_6 = arith.constant 0.353553385 : f32
    %8 = vector.broadcast %cst_6 : f32 to vector<8x32xf32>
    %9 = arith.mulf %7, %8 : vector<8x32xf32>
    %10 = arith.truncf %9 : vector<8x32xf32> to vector<8x32xbf16>
    %c0_7 = arith.constant 0 : index
    %c0_8 = arith.constant 0 : index
    %c0_9 = arith.constant 0 : index
    %11 = vector.load %arg3[%c0_7, %c0_8, %c0_9] : memref<1x8x32xbf16, #tpu.memory_space<vmem>>, vector<1x8x32xbf16>
    %12 = vector.shape_cast %11 : vector<1x8x32xbf16> to vector<8x32xbf16>
    %c0_10 = arith.constant 0 : index
    %c0_11 = arith.constant 0 : index
    %c0_12 = arith.constant 0 : index
    %13 = vector.load %arg4[%c0_10, %c0_11, %c0_12] : memref<1x8x32xbf16, #tpu.memory_space<vmem>>, vector<1x8x32xbf16>
    %14 = vector.shape_cast %13 : vector<1x8x32xbf16> to vector<8x32xbf16>
    %c8_i32 = arith.constant 8 : i32
    %15 = arith.muli %arg1, %c8_i32 : i32
    %16 = tpu.iota {dimensions = array<i32: 0>} : vector<8x8xi32>
    %17 = vector.broadcast %15 : i32 to vector<8x8xi32>
    %18 = arith.addi %17, %16 : vector<8x8xi32>
    %19 = tpu.iota {dimensions = array<i32: 1>} : vector<8x8xi32>
    %20 = arith.cmpi sge, %18, %19 : vector<8x8xi32>
    %cst_13 = arith.constant 0.000000e+00 : f32
    %cst_14 = arith.constant -1.000000e+09 : f32
    %21 = vector.broadcast %cst_13 : f32 to vector<8x8xf32>
    %22 = vector.broadcast %cst_14 : f32 to vector<8x8xf32>
    %23 = arith.select %20, %21, %22 : vector<8x8xi1>, vector<8x8xf32>
    %24 = vector.extract_strided_slice %10 {offsets = [0, 0], sizes = [8, 8], strides = [1, 1]} : vector<8x32xbf16> to vector<8x8xbf16>
    %25 = vector.extract_strided_slice %12 {offsets = [0, 0], sizes = [8, 8], strides = [1, 1]} : vector<8x32xbf16> to vector<8x8xbf16>
    %cst_15 = arith.constant dense<0.000000e+00> : vector<8x8xf32>
    %26 = tpu.matmul %24, %25, %cst_15 {dimension_numbers = #tpu.dot_dimension_numbers<[1], [1], [0], [0], [0, 0, 1, 0], [], []>} : vector<8x8xbf16>, vector<8x8xbf16>, vector<8x8xf32> -> vector<8x8xf32>
    %27 = arith.addf %26, %23 : vector<8x8xf32>
    %cst_16 = arith.constant dense<0xFF800000> : vector<8xf32>
    %28 = vector.multi_reduction <maximumf>, %27, %cst_16 [1] : vector<8x8xf32> to vector<8xf32>
    %29 = vector.shape_cast %28 : vector<8xf32> to vector<8x1xf32>
    %30 = vector.broadcast %29 : vector<8x1xf32> to vector<8x8xf32>
    %31 = arith.subf %27, %30 : vector<8x8xf32>
    %32 = math.exp %31 : vector<8x8xf32>
    %cst_17 = arith.constant dense<0.000000e+00> : vector<8xf32>
    %33 = vector.multi_reduction <add>, %32, %cst_17 [1] : vector<8x8xf32> to vector<8xf32>
    %34 = vector.shape_cast %33 : vector<8xf32> to vector<8x1xf32>
    %35 = tpu.reciprocal %34 {approx = true} : vector<8x1xf32> -> vector<8x1xf32>
    %36 = vector.broadcast %35 : vector<8x1xf32> to vector<8x8xf32>
    %37 = arith.mulf %32, %36 : vector<8x8xf32>
    %38 = arith.truncf %37 : vector<8x8xf32> to vector<8x8xbf16>
    %39 = vector.extract_strided_slice %14 {offsets = [0, 0], sizes = [8, 8], strides = [1, 1]} : vector<8x32xbf16> to vector<8x8xbf16>
    %cst_18 = arith.constant dense<0.000000e+00> : vector<8x8xf32>
    %40 = tpu.matmul %38, %39, %cst_18 {dimension_numbers = #tpu.dot_dimension_numbers<[1], [0], [0], [1], [0, 0, 1, 1], [], []>} : vector<8x8xbf16>, vector<8x8xbf16>, vector<8x8xf32> -> vector<8x8xf32>
    %41 = arith.truncf %40 : vector<8x8xf32> to vector<8x8xbf16>
    %c0_19 = arith.constant 0 : index
    %c0_20 = arith.constant 0 : index
    %42 = vector.load %arg18[%c0_19, %c0_20] : memref<8x32xbf16, #tpu.memory_space<vmem>>, vector<8x8xbf16>
    tpu.vector_store %arg18[%c0_19, %c0_20], %41 {strides = array<i32>} : memref<8x32xbf16, #tpu.memory_space<vmem>>, vector<8x8xbf16>,
    %43 = vector.extract_strided_slice %10 {offsets = [0, 8], sizes = [8, 8], strides = [1, 1]} : vector<8x32xbf16> to vector<8x8xbf16>
    %44 = vector.extract_strided_slice %12 {offsets = [0, 8], sizes = [8, 8], strides = [1, 1]} : vector<8x32xbf16> to vector<8x8xbf16>
    %cst_21 = arith.constant dense<0.000000e+00> : vector<8x8xf32>
    %45 = tpu.matmul %43, %44, %cst_21 {dimension_numbers = #tpu.dot_dimension_numbers<[1], [1], [0], [0], [0, 0, 1, 0], [], []>} : vector<8x8xbf16>, vector<8x8xbf16>, vector<8x8xf32> -> vector<8x8xf32>
    %46 = arith.addf %45, %23 : vector<8x8xf32>
    %cst_22 = arith.constant dense<0xFF800000> : vector<8xf32>
    %47 = vector.multi_reduction <maximumf>, %46, %cst_22 [1] : vector<8x8xf32> to vector<8xf32>
    %48 = vector.shape_cast %47 : vector<8xf32> to vector<8x1xf32>
    %49 = vector.broadcast %48 : vector<8x1xf32> to vector<8x8xf32>
    %50 = arith.subf %46, %49 : vector<8x8xf32>
    %51 = math.exp %50 : vector<8x8xf32>
    %cst_23 = arith.constant dense<0.000000e+00> : vector<8xf32>
    %52 = vector.multi_reduction <add>, %51, %cst_23 [1] : vector<8x8xf32> to vector<8xf32>
    %53 = vector.shape_cast %52 : vector<8xf32> to vector<8x1xf32>
    %54 = tpu.reciprocal %53 {approx = true} : vector<8x1xf32> -> vector<8x1xf32>
    %55 = vector.broadcast %54 : vector<8x1xf32> to vector<8x8xf32>
    %56 = arith.mulf %51, %55 : vector<8x8xf32>
    %57 = arith.truncf %56 : vector<8x8xf32> to vector<8x8xbf16>
    %58 = vector.extract_strided_slice %14 {offsets = [0, 8], sizes = [8, 8], strides = [1, 1]} : vector<8x32xbf16> to vector<8x8xbf16>
    %cst_24 = arith.constant dense<0.000000e+00> : vector<8x8xf32>
    %59 = tpu.matmul %57, %58, %cst_24 {dimension_numbers = #tpu.dot_dimension_numbers<[1], [0], [0], [1], [0, 0, 1, 1], [], []>} : vector<8x8xbf16>, vector<8x8xbf16>, vector<8x8xf32> -> vector<8x8xf32>
    %60 = arith.truncf %59 : vector<8x8xf32> to vector<8x8xbf16>
    %c0_25 = arith.constant 0 : index
    %c8 = arith.constant 8 : index
    %61 = vector.load %arg18[%c0_25, %c8] : memref<8x32xbf16, #tpu.memory_space<vmem>>, vector<8x8xbf16>
    tpu.vector_store %arg18[%c0_25, %c8], %60 {strides = array<i32>} : memref<8x32xbf16, #tpu.memory_space<vmem>>, vector<8x8xbf16>,
    %62 = vector.extract_strided_slice %10 {offsets = [0, 16], sizes = [8, 8], strides = [1, 1]} : vector<8x32xbf16> to vector<8x8xbf16>
    %63 = vector.extract_strided_slice %12 {offsets = [0, 16], sizes = [8, 8], strides = [1, 1]} : vector<8x32xbf16> to vector<8x8xbf16>
    %cst_26 = arith.constant dense<0.000000e+00> : vector<8x8xf32>
    %64 = tpu.matmul %62, %63, %cst_26 {dimension_numbers = #tpu.dot_dimension_numbers<[1], [1], [0], [0], [0, 0, 1, 0], [], []>} : vector<8x8xbf16>, vector<8x8xbf16>, vector<8x8xf32> -> vector<8x8xf32>
    %65 = arith.addf %64, %23 : vector<8x8xf32>
    %cst_27 = arith.constant dense<0xFF800000> : vector<8xf32>
    %66 = vector.multi_reduction <maximumf>, %65, %cst_27 [1] : vector<8x8xf32> to vector<8xf32>
    %67 = vector.shape_cast %66 : vector<8xf32> to vector<8x1xf32>
    %68 = vector.broadcast %67 : vector<8x1xf32> to vector<8x8xf32>
    %69 = arith.subf %65, %68 : vector<8x8xf32>
    %70 = math.exp %69 : vector<8x8xf32>
    %cst_28 = arith.constant dense<0.000000e+00> : vector<8xf32>
    %71 = vector.multi_reduction <add>, %70, %cst_28 [1] : vector<8x8xf32> to vector<8xf32>
    %72 = vector.shape_cast %71 : vector<8xf32> to vector<8x1xf32>
    %73 = tpu.reciprocal %72 {approx = true} : vector<8x1xf32> -> vector<8x1xf32>
    %74 = vector.broadcast %73 : vector<8x1xf32> to vector<8x8xf32>
    %75 = arith.mulf %70, %74 : vector<8x8xf32>
    %76 = arith.truncf %75 : vector<8x8xf32> to vector<8x8xbf16>
    %77 = vector.extract_strided_slice %14 {offsets = [0, 16], sizes = [8, 8], strides = [1, 1]} : vector<8x32xbf16> to vector<8x8xbf16>
    %cst_29 = arith.constant dense<0.000000e+00> : vector<8x8xf32>
    %78 = tpu.matmul %76, %77, %cst_29 {dimension_numbers = #tpu.dot_dimension_numbers<[1], [0], [0], [1], [0, 0, 1, 1], [], []>} : vector<8x8xbf16>, vector<8x8xbf16>, vector<8x8xf32> -> vector<8x8xf32>
    %79 = arith.truncf %78 : vector<8x8xf32> to vector<8x8xbf16>
    %c0_30 = arith.constant 0 : index
    %c16 = arith.constant 16 : index
    %80 = vector.load %arg18[%c0_30, %c16] : memref<8x32xbf16, #tpu.memory_space<vmem>>, vector<8x8xbf16>
    tpu.vector_store %arg18[%c0_30, %c16], %79 {strides = array<i32>} : memref<8x32xbf16, #tpu.memory_space<vmem>>, vector<8x8xbf16>,
    %81 = vector.extract_strided_slice %10 {offsets = [0, 24], sizes = [8, 8], strides = [1, 1]} : vector<8x32xbf16> to vector<8x8xbf16>
    %82 = vector.extract_strided_slice %12 {offsets = [0, 24], sizes = [8, 8], strides = [1, 1]} : vector<8x32xbf16> to vector<8x8xbf16>
    %cst_31 = arith.constant dense<0.000000e+00> : vector<8x8xf32>
    %83 = tpu.matmul %81, %82, %cst_31 {dimension_numbers = #tpu.dot_dimension_numbers<[1], [1], [0], [0], [0, 0, 1, 0], [], []>} : vector<8x8xbf16>, vector<8x8xbf16>, vector<8x8xf32> -> vector<8x8xf32>
    %84 = arith.addf %83, %23 : vector<8x8xf32>
    %cst_32 = arith.constant dense<0xFF800000> : vector<8xf32>
    %85 = vector.multi_reduction <maximumf>, %84, %cst_32 [1] : vector<8x8xf32> to vector<8xf32>
    %86 = vector.shape_cast %85 : vector<8xf32> to vector<8x1xf32>
    %87 = vector.broadcast %86 : vector<8x1xf32> to vector<8x8xf32>
    %88 = arith.subf %84, %87 : vector<8x8xf32>
    %89 = math.exp %88 : vector<8x8xf32>
    %cst_33 = arith.constant dense<0.000000e+00> : vector<8xf32>
    %90 = vector.multi_reduction <add>, %89, %cst_33 [1] : vector<8x8xf32> to vector<8xf32>
    %91 = vector.shape_cast %90 : vector<8xf32> to vector<8x1xf32>
    %92 = tpu.reciprocal %91 {approx = true} : vector<8x1xf32> -> vector<8x1xf32>
    %93 = vector.broadcast %92 : vector<8x1xf32> to vector<8x8xf32>
    %94 = arith.mulf %89, %93 : vector<8x8xf32>
    %95 = arith.truncf %94 : vector<8x8xf32> to vector<8x8xbf16>
    %96 = vector.extract_strided_slice %14 {offsets = [0, 24], sizes = [8, 8], strides = [1, 1]} : vector<8x32xbf16> to vector<8x8xbf16>
    %cst_34 = arith.constant dense<0.000000e+00> : vector<8x8xf32>
    %97 = tpu.matmul %95, %96, %cst_34 {dimension_numbers = #tpu.dot_dimension_numbers<[1], [0], [0], [1], [0, 0, 1, 1], [], []>} : vector<8x8xbf16>, vector<8x8xbf16>, vector<8x8xf32> -> vector<8x8xf32>
    %98 = arith.truncf %97 : vector<8x8xf32> to vector<8x8xbf16>
    %c0_35 = arith.constant 0 : index
    %c24 = arith.constant 24 : index
    %99 = vector.load %arg18[%c0_35, %c24] : memref<8x32xbf16, #tpu.memory_space<vmem>>, vector<8x8xbf16>
    tpu.vector_store %arg18[%c0_35, %c24], %98 {strides = array<i32>} : memref<8x32xbf16, #tpu.memory_space<vmem>>, vector<8x8xbf16>,
    %c0_36 = arith.constant 0 : index
    %c0_37 = arith.constant 0 : index
    %100 = vector.load %arg18[%c0_36, %c0_37] : memref<8x32xbf16, #tpu.memory_space<vmem>>, vector<8x32xbf16>
    %c0_38 = arith.constant 0 : index
    %c0_39 = arith.constant 0 : index
    %101 = vector.load %arg7[%c0_38, %c0_39] : memref<32x32xbf16, #tpu.memory_space<vmem>>, vector<32x32xbf16>
    %cst_40 = arith.constant dense<0.000000e+00> : vector<8x32xf32>
    %102 = tpu.matmul %100, %101, %cst_40 {dimension_numbers = #tpu.dot_dimension_numbers<[1], [0], [0], [1], [0, 0, 1, 1], [], []>} : vector<8x32xbf16>, vector<32x32xbf16>, vector<8x32xf32> -> vector<8x32xf32>
    %c0_41 = arith.constant 0 : index
    %c0_42 = arith.constant 0 : index
    %103 = vector.load %arg8[%c0_41, %c0_42] : memref<1x32xf32, #tpu.memory_space<vmem>>, vector<1x32xf32>
    %104 = vector.broadcast %103 : vector<1x32xf32> to vector<8x32xf32>
    %105 = arith.addf %102, %104 : vector<8x32xf32>
    %c0_43 = arith.constant 0 : index
    %c0_44 = arith.constant 0 : index
    %106 = vector.load %arg13[%c0_43, %c0_44] : memref<1x32xf32, #tpu.memory_space<vmem>>, vector<1x32xf32>
    %c0_45 = arith.constant 0 : index
    %c0_46 = arith.constant 0 : index
    %107 = vector.load %arg14[%c0_45, %c0_46] : memref<1x32xf32, #tpu.memory_space<vmem>>, vector<1x32xf32>
    %cst_47 = arith.constant dense<0.000000e+00> : vector<8xf32>
    %108 = vector.multi_reduction <add>, %105, %cst_47 [1] : vector<8x32xf32> to vector<8xf32>
    %109 = vector.shape_cast %108 : vector<8xf32> to vector<8x1xf32>
    %cst_48 = arith.constant 3.200000e+01 : f32
    %110 = vector.broadcast %cst_48 : f32 to vector<8x1xf32>
    %111 = arith.divf %109, %110 : vector<8x1xf32>
    %112 = vector.broadcast %111 : vector<8x1xf32> to vector<8x32xf32>
    %113 = arith.subf %105, %112 : vector<8x32xf32>
    %114 = arith.mulf %113, %113 : vector<8x32xf32>
    %cst_49 = arith.constant dense<0.000000e+00> : vector<8xf32>
    %115 = vector.multi_reduction <add>, %114, %cst_49 [1] : vector<8x32xf32> to vector<8xf32>
    %116 = vector.shape_cast %115 : vector<8xf32> to vector<8x1xf32>
    %cst_50 = arith.constant 3.200000e+01 : f32
    %117 = vector.broadcast %cst_50 : f32 to vector<8x1xf32>
    %118 = arith.divf %116, %117 : vector<8x1xf32>
    %119 = vector.broadcast %111 : vector<8x1xf32> to vector<8x32xf32>
    %120 = arith.subf %105, %119 : vector<8x32xf32>
    %cst_51 = arith.constant 9.99999974E-6 : f32
    %121 = vector.broadcast %cst_51 : f32 to vector<8x1xf32>
    %122 = arith.addf %118, %121 : vector<8x1xf32>
    %123 = math.rsqrt %122 : vector<8x1xf32>
    %124 = vector.broadcast %123 : vector<8x1xf32> to vector<8x32xf32>
    %125 = arith.mulf %120, %124 : vector<8x32xf32>
    %126 = vector.broadcast %106 : vector<1x32xf32> to vector<8x32xf32>
    %127 = arith.mulf %125, %126 : vector<8x32xf32>
    %128 = vector.broadcast %107 : vector<1x32xf32> to vector<8x32xf32>
    %129 = arith.addf %127, %128 : vector<8x32xf32>
    %130 = arith.addf %1, %129 : vector<8x32xf32>
    %131 = arith.truncf %130 : vector<8x32xf32> to vector<8x32xbf16>
    %cst_52 = arith.constant 0.000000e+00 : f32
    %132 = vector.broadcast %cst_52 : f32 to vector<8x32xf32>
    %c0_53 = arith.constant 0 : index
    %c0_54 = arith.constant 0 : index
    %133 = vector.load %arg9[%c0_53, %c0_54] : memref<32x64xbf16, #tpu.memory_space<vmem>>, vector<32x64xbf16>
    %cst_55 = arith.constant dense<0.000000e+00> : vector<8x64xf32>
    %134 = tpu.matmul %131, %133, %cst_55 {dimension_numbers = #tpu.dot_dimension_numbers<[1], [0], [0], [1], [0, 0, 1, 1], [], []>} : vector<8x32xbf16>, vector<32x64xbf16>, vector<8x64xf32> -> vector<8x64xf32>
    %c0_56 = arith.constant 0 : index
    %c0_57 = arith.constant 0 : index
    %135 = vector.load %arg10[%c0_56, %c0_57] : memref<1x64xf32, #tpu.memory_space<vmem>>, vector<1x64xf32>
    %136 = vector.broadcast %135 : vector<1x64xf32> to vector<8x64xf32>
    %137 = arith.addf %134, %136 : vector<8x64xf32>
    %cst_58 = arith.constant 0.000000e+00 : f32
    %138 = vector.broadcast %cst_58 : f32 to vector<8x64xf32>
    %139 = arith.maximumf %137, %138 : vector<8x64xf32>
    %140 = arith.truncf %139 : vector<8x64xf32> to vector<8x64xbf16>
    %c0_59 = arith.constant 0 : index
    %c0_60 = arith.constant 0 : index
    %141 = vector.load %arg11[%c0_59, %c0_60] : memref<64x32xbf16, #tpu.memory_space<vmem>>, vector<64x32xbf16>
    %cst_61 = arith.constant dense<0.000000e+00> : vector<8x32xf32>
    %142 = tpu.matmul %140, %141, %cst_61 {dimension_numbers = #tpu.dot_dimension_numbers<[1], [0], [0], [1], [0, 0, 1, 1], [], []>} : vector<8x64xbf16>, vector<64x32xbf16>, vector<8x32xf32> -> vector<8x32xf32>
    %143 = arith.addf %132, %142 : vector<8x32xf32>
    %c0_62 = arith.constant 0 : index
    %c0_63 = arith.constant 0 : index
    %144 = vector.load %arg12[%c0_62, %c0_63] : memref<1x32xf32, #tpu.memory_space<vmem>>, vector<1x32xf32>
    %145 = vector.broadcast %144 : vector<1x32xf32> to vector<8x32xf32>
    %146 = arith.addf %143, %145 : vector<8x32xf32>
    %c0_64 = arith.constant 0 : index
    %c0_65 = arith.constant 0 : index
    %147 = vector.load %arg15[%c0_64, %c0_65] : memref<1x32xf32, #tpu.memory_space<vmem>>, vector<1x32xf32>
    %c0_66 = arith.constant 0 : index
    %c0_67 = arith.constant 0 : index
    %148 = vector.load %arg16[%c0_66, %c0_67] : memref<1x32xf32, #tpu.memory_space<vmem>>, vector<1x32xf32>
    %cst_68 = arith.constant dense<0.000000e+00> : vector<8xf32>
    %149 = vector.multi_reduction <add>, %146, %cst_68 [1] : vector<8x32xf32> to vector<8xf32>
    %150 = vector.shape_cast %149 : vector<8xf32> to vector<8x1xf32>
    %cst_69 = arith.constant 3.200000e+01 : f32
    %151 = vector.broadcast %cst_69 : f32 to vector<8x1xf32>
    %152 = arith.divf %150, %151 : vector<8x1xf32>
    %153 = vector.broadcast %152 : vector<8x1xf32> to vector<8x32xf32>
    %154 = arith.subf %146, %153 : vector<8x32xf32>
    %155 = arith.mulf %154, %154 : vector<8x32xf32>
    %cst_70 = arith.constant dense<0.000000e+00> : vector<8xf32>
    %156 = vector.multi_reduction <add>, %155, %cst_70 [1] : vector<8x32xf32> to vector<8xf32>
    %157 = vector.shape_cast %156 : vector<8xf32> to vector<8x1xf32>
    %cst_71 = arith.constant 3.200000e+01 : f32
    %158 = vector.broadcast %cst_71 : f32 to vector<8x1xf32>
    %159 = arith.divf %157, %158 : vector<8x1xf32>
    %160 = vector.broadcast %152 : vector<8x1xf32> to vector<8x32xf32>
    %161 = arith.subf %146, %160 : vector<8x32xf32>
    %cst_72 = arith.constant 9.99999974E-6 : f32
    %162 = vector.broadcast %cst_72 : f32 to vector<8x1xf32>
    %163 = arith.addf %159, %162 : vector<8x1xf32>
    %164 = math.rsqrt %163 : vector<8x1xf32>
    %165 = vector.broadcast %164 : vector<8x1xf32> to vector<8x32xf32>
    %166 = arith.mulf %161, %165 : vector<8x32xf32>
    %167 = vector.broadcast %147 : vector<1x32xf32> to vector<8x32xf32>
    %168 = arith.mulf %166, %167 : vector<8x32xf32>
    %169 = vector.broadcast %148 : vector<1x32xf32> to vector<8x32xf32>
    %170 = arith.addf %168, %169 : vector<8x32xf32>
    %171 = arith.addf %130, %170 : vector<8x32xf32>
    %c0_73 = arith.constant 0 : index
    %c0_74 = arith.constant 0 : index
    %c0_75 = arith.constant 0 : index
    %172 = vector.load %arg17[%c0_73, %c0_74, %c0_75] : memref<1x8x32xf32, #tpu.memory_space<vmem>>, vector<1x8x32xf32>
    %173 = vector.shape_cast %172 : vector<1x8x32xf32> to vector<8x32xf32>
    %174 = vector.shape_cast %171 : vector<8x32xf32> to vector<1x8x32xf32>
    tpu.vector_store %arg17[%c0_73, %c0_74, %c0_75], %174 {strides = array<i32>} : memref<1x8x32xf32, #tpu.memory_space<vmem>>, vector<1x8x32xf32>,
    return
  }
  func.func @transform_0(%arg0: i32, %arg1: i32) -> (i32, i32, i32) {
    %c0_i32 = arith.constant 0 : i32
    %c0_i32_0 = arith.constant 0 : i32
    return %arg0, %arg1, %c0_i32 : i32, i32, i32
  }
  func.func @transform_1(%arg0: i32, %arg1: i32) -> (i32, i32, i32) {
    %c0_i32 = arith.constant 0 : i32
    %c0_i32_0 = arith.constant 0 : i32
    %c0_i32_1 = arith.constant 0 : i32
    return %arg0, %c0_i32, %c0_i32_0 : i32, i32, i32
  }
  func.func @transform_2(%arg0: i32, %arg1: i32) -> (i32, i32, i32) {
    %c0_i32 = arith.constant 0 : i32
    %c0_i32_0 = arith.constant 0 : i32
    %c0_i32_1 = arith.constant 0 : i32
    return %arg0, %c0_i32, %c0_i32_0 : i32, i32, i32
  }
  func.func @transform_3(%arg0: i32, %arg1: i32) -> (i32, i32) {
    %c0_i32 = arith.constant 0 : i32
    %c0_i32_0 = arith.constant 0 : i32
    %c0_i32_1 = arith.constant 0 : i32
    return %c0_i32, %c0_i32_0 : i32, i32
  }
  func.func @transform_4(%arg0: i32, %arg1: i32) -> (i32, i32) {
    %c0_i32 = arith.constant 0 : i32
    %c0_i32_0 = arith.constant 0 : i32
    %c0_i32_1 = arith.constant 0 : i32
    return %c0_i32, %c0_i32_0 : i32, i32
  }
  func.func @transform_5(%arg0: i32, %arg1: i32) -> (i32, i32) {
    %c0_i32 = arith.constant 0 : i32
    %c0_i32_0 = arith.constant 0 : i32
    %c0_i32_1 = arith.constant 0 : i32
    return %c0_i32, %c0_i32_0 : i32, i32
  }
  func.func @transform_6(%arg0: i32, %arg1: i32) -> (i32, i32) {
    %c0_i32 = arith.constant 0 : i32
    %c0_i32_0 = arith.constant 0 : i32
    %c0_i32_1 = arith.constant 0 : i32
    return %c0_i32, %c0_i32_0 : i32, i32
  }
  func.func @transform_7(%arg0: i32, %arg1: i32) -> (i32, i32) {
    %c0_i32 = arith.constant 0 : i32
    %c0_i32_0 = arith.constant 0 : i32
    %c0_i32_1 = arith.constant 0 : i32
    return %c0_i32, %c0_i32_0 : i32, i32
  }
  func.func @transform_8(%arg0: i32, %arg1: i32) -> (i32, i32) {
    %c0_i32 = arith.constant 0 : i32
    %c0_i32_0 = arith.constant 0 : i32
    %c0_i32_1 = arith.constant 0 : i32
    return %c0_i32, %c0_i32_0 : i32, i32
  }
  func.func @transform_9(%arg0: i32, %arg1: i32) -> (i32, i32) {
    %c0_i32 = arith.constant 0 : i32
    %c0_i32_0 = arith.constant 0 : i32
    %c0_i32_1 = arith.constant 0 : i32
    return %c0_i32, %c0_i32_0 : i32, i32
  }
  func.func @transform_10(%arg0: i32, %arg1: i32) -> (i32, i32) {
    %c0_i32 = arith.constant 0 : i32
    %c0_i32_0 = arith.constant 0 : i32
    %c0_i32_1 = arith.constant 0 : i32
    return %c0_i32, %c0_i32_0 : i32, i32
  }
  func.func @transform_11(%arg0: i32, %arg1: i32) -> (i32, i32) {
    %c0_i32 = arith.constant 0 : i32
    %c0_i32_0 = arith.constant 0 : i32
    %c0_i32_1 = arith.constant 0 : i32
    return %c0_i32, %c0_i32_0 : i32, i32
  }
  func.func @transform_12(%arg0: i32, %arg1: i32) -> (i32, i32) {
    %c0_i32 = arith.constant 0 : i32
    %c0_i32_0 = arith.constant 0 : i32
    %c0_i32_1 = arith.constant 0 : i32
    return %c0_i32, %c0_i32_0 : i32, i32
  }
  func.func @transform_13(%arg0: i32, %arg1: i32) -> (i32, i32) {
    %c0_i32 = arith.constant 0 : i32
    %c0_i32_0 = arith.constant 0 : i32
    %c0_i32_1 = arith.constant 0 : i32
    return %c0_i32, %c0_i32_0 : i32, i32
  }
  func.func @transform_14(%arg0: i32, %arg1: i32) -> (i32, i32) {
    %c0_i32 = arith.constant 0 : i32
    %c0_i32_0 = arith.constant 0 : i32
    %c0_i32_1 = arith.constant 0 : i32
    return %c0_i32, %c0_i32_0 : i32, i32
  }
  func.func @transform_15(%arg0: i32, %arg1: i32) -> (i32, i32, i32) {
    %c0_i32 = arith.constant 0 : i32
    %c0_i32_0 = arith.constant 0 : i32
    return %arg0, %arg1, %c0_i32 : i32, i32, i32
  }
}

module attributes {stable_mosaic.version = 11 : i64} {
  func.func @_kv_proj_kernel(%arg0: i32, %arg1: i32, %arg2: memref<1x8x32xf32, #tpu.memory_space<vmem>>, %arg3: memref<32x64xbf16, #tpu.memory_space<vmem>>, %arg4: memref<1x64xf32, #tpu.memory_space<vmem>>, %arg5: memref<1x8x32xbf16, #tpu.memory_space<vmem>>, %arg6: memref<1x8x32xbf16, #tpu.memory_space<vmem>>) attributes {dimension_semantics = [#tpu.dimension_semantics<parallel>, #tpu.dimension_semantics<parallel>], iteration_bounds = array<i64: 2, 1>, scalar_prefetch = 0 : i64, scratch_operands = 0 : i64, tpu.core_type = #tpu.core_type<tc>, window_params = [{transform_indices = @transform_0, window_bounds = array<i64: 1, 8, 32>}, {pipeline_mode = #tpu.pipeline_mode<synchronous>, transform_indices = @transform_1, window_bounds = array<i64: 32, 64>}, {pipeline_mode = #tpu.pipeline_mode<synchronous>, transform_indices = @transform_2, window_bounds = array<i64: 1, 64>}, {transform_indices = @transform_3, window_bounds = array<i64: 1, 8, 32>}, {transform_indices = @transform_4, window_bounds = array<i64: 1, 8, 32>}]} {
    %c0 = arith.constant 0 : index
    %c0_0 = arith.constant 0 : index
    %c0_1 = arith.constant 0 : index
    %0 = vector.load %arg2[%c0, %c0_0, %c0_1] : memref<1x8x32xf32, #tpu.memory_space<vmem>>, vector<1x8x32xf32>
    %1 = vector.shape_cast %0 : vector<1x8x32xf32> to vector<8x32xf32>
    %2 = arith.truncf %1 : vector<8x32xf32> to vector<8x32xbf16>
    %c0_2 = arith.constant 0 : index
    %c0_3 = arith.constant 0 : index
    %3 = vector.load %arg3[%c0_2, %c0_3] : memref<32x64xbf16, #tpu.memory_space<vmem>>, vector<32x64xbf16>
    %cst = arith.constant dense<0.000000e+00> : vector<8x64xf32>
    %4 = tpu.matmul %2, %3, %cst {dimension_numbers = #tpu.dot_dimension_numbers<[1], [0], [0], [1], [0, 0, 1, 1], [], []>} : vector<8x32xbf16>, vector<32x64xbf16>, vector<8x64xf32> -> vector<8x64xf32>
    %c0_4 = arith.constant 0 : index
    %c0_5 = arith.constant 0 : index
    %5 = vector.load %arg4[%c0_4, %c0_5] : memref<1x64xf32, #tpu.memory_space<vmem>>, vector<1x64xf32>
    %6 = vector.broadcast %5 : vector<1x64xf32> to vector<8x64xf32>
    %7 = arith.addf %4, %6 : vector<8x64xf32>
    %8 = vector.extract_strided_slice %7 {offsets = [0, 0], sizes = [8, 32], strides = [1, 1]} : vector<8x64xf32> to vector<8x32xf32>
    %9 = arith.truncf %8 : vector<8x32xf32> to vector<8x32xbf16>
    %c0_6 = arith.constant 0 : index
    %c0_7 = arith.constant 0 : index
    %c0_8 = arith.constant 0 : index
    %10 = vector.load %arg5[%c0_6, %c0_7, %c0_8] : memref<1x8x32xbf16, #tpu.memory_space<vmem>>, vector<1x8x32xbf16>
    %11 = vector.shape_cast %10 : vector<1x8x32xbf16> to vector<8x32xbf16>
    %12 = vector.shape_cast %9 : vector<8x32xbf16> to vector<1x8x32xbf16>
    tpu.vector_store %arg5[%c0_6, %c0_7, %c0_8], %12 {strides = array<i32>} : memref<1x8x32xbf16, #tpu.memory_space<vmem>>, vector<1x8x32xbf16>,
    %13 = vector.extract_strided_slice %7 {offsets = [0, 32], sizes = [8, 32], strides = [1, 1]} : vector<8x64xf32> to vector<8x32xf32>
    %14 = arith.truncf %13 : vector<8x32xf32> to vector<8x32xbf16>
    %c0_9 = arith.constant 0 : index
    %c0_10 = arith.constant 0 : index
    %c0_11 = arith.constant 0 : index
    %15 = vector.load %arg6[%c0_9, %c0_10, %c0_11] : memref<1x8x32xbf16, #tpu.memory_space<vmem>>, vector<1x8x32xbf16>
    %16 = vector.shape_cast %15 : vector<1x8x32xbf16> to vector<8x32xbf16>
    %17 = vector.shape_cast %14 : vector<8x32xbf16> to vector<1x8x32xbf16>
    tpu.vector_store %arg6[%c0_9, %c0_10, %c0_11], %17 {strides = array<i32>} : memref<1x8x32xbf16, #tpu.memory_space<vmem>>, vector<1x8x32xbf16>,
    return
  }
  func.func @transform_0(%arg0: i32, %arg1: i32) -> (i32, i32, i32) {
    %c0_i32 = arith.constant 0 : i32
    %c0_i32_0 = arith.constant 0 : i32
    return %arg0, %arg1, %c0_i32 : i32, i32, i32
  }
  func.func @transform_1(%arg0: i32, %arg1: i32) -> (i32, i32) {
    %c0_i32 = arith.constant 0 : i32
    %c0_i32_0 = arith.constant 0 : i32
    %c0_i32_1 = arith.constant 0 : i32
    return %c0_i32, %c0_i32_0 : i32, i32
  }
  func.func @transform_2(%arg0: i32, %arg1: i32) -> (i32, i32) {
    %c0_i32 = arith.constant 0 : i32
    %c0_i32_0 = arith.constant 0 : i32
    %c0_i32_1 = arith.constant 0 : i32
    return %c0_i32, %c0_i32_0 : i32, i32
  }
  func.func @transform_3(%arg0: i32, %arg1: i32) -> (i32, i32, i32) {
    %c0_i32 = arith.constant 0 : i32
    %c0_i32_0 = arith.constant 0 : i32
    return %arg0, %arg1, %c0_i32 : i32, i32, i32
  }
  func.func @transform_4(%arg0: i32, %arg1: i32) -> (i32, i32, i32) {
    %c0_i32 = arith.constant 0 : i32
    %c0_i32_0 = arith.constant 0 : i32
    return %arg0, %arg1, %c0_i32 : i32, i32, i32
  }
}

module attributes {stable_mosaic.version = 11 : i64} {
  func.func @_attn_ffn_kernel(%arg0: i32, %arg1: i32, %arg2: memref<1x8x32xf32, #tpu.memory_space<vmem>>, %arg3: memref<1x8x32xbf16, #tpu.memory_space<vmem>>, %arg4: memref<1x8x32xbf16, #tpu.memory_space<vmem>>, %arg5: memref<32x32xbf16, #tpu.memory_space<vmem>>, %arg6: memref<1x32xf32, #tpu.memory_space<vmem>>, %arg7: memref<32x32xbf16, #tpu.memory_space<vmem>>, %arg8: memref<1x32xf32, #tpu.memory_space<vmem>>, %arg9: memref<32x64xbf16, #tpu.memory_space<vmem>>, %arg10: memref<1x64xf32, #tpu.memory_space<vmem>>, %arg11: memref<64x32xbf16, #tpu.memory_space<vmem>>, %arg12: memref<1x32xf32, #tpu.memory_space<vmem>>, %arg13: memref<1x32xf32, #tpu.memory_space<vmem>>, %arg14: memref<1x32xf32, #tpu.memory_space<vmem>>, %arg15: memref<1x32xf32, #tpu.memory_space<vmem>>, %arg16: memref<1x32xf32, #tpu.memory_space<vmem>>, %arg17: memref<1x8x32xf32, #tpu.memory_space<vmem>>, %arg18: memref<8x32xbf16, #tpu.memory_space<vmem>>) attributes {dimension_semantics = [#tpu.dimension_semantics<parallel>, #tpu.dimension_semantics<parallel>], iteration_bounds = array<i64: 2, 1>, scalar_prefetch = 0 : i64, scratch_operands = 1 : i64, tpu.core_type = #tpu.core_type<tc>, window_params = [{transform_indices = @transform_0, window_bounds = array<i64: 1, 8, 32>}, {transform_indices = @transform_1, window_bounds = array<i64: 1, 8, 32>}, {transform_indices = @transform_2, window_bounds = array<i64: 1, 8, 32>}, {pipeline_mode = #tpu.pipeline_mode<synchronous>, transform_indices = @transform_3, window_bounds = array<i64: 32, 32>}, {pipeline_mode = #tpu.pipeline_mode<synchronous>, transform_indices = @transform_4, window_bounds = array<i64: 1, 32>}, {pipeline_mode = #tpu.pipeline_mode<synchronous>, transform_indices = @transform_5, window_bounds = array<i64: 32, 32>}, {pipeline_mode = #tpu.pipeline_mode<synchronous>, transform_indices = @transform_6, window_bounds = array<i64: 1, 32>}, {pipeline_mode = #tpu.pipeline_mode<synchronous>, transform_indices = @transform_7, window_bounds = array<i64: 32, 64>}, {pipeline_mode = #tpu.pipeline_mode<synchronous>, transform_indices = @transform_8, window_bounds = array<i64: 1, 64>}, {pipeline_mode = #tpu.pipeline_mode<synchronous>, transform_indices = @transform_9, window_bounds = array<i64: 64, 32>}, {pipeline_mode = #tpu.pipeline_mode<synchronous>, transform_indices = @transform_10, window_bounds = array<i64: 1, 32>}, {pipeline_mode = #tpu.pipeline_mode<synchronous>, transform_indices = @transform_11, window_bounds = array<i64: 1, 32>}, {pipeline_mode = #tpu.pipeline_mode<synchronous>, transform_indices = @transform_12, window_bounds = array<i64: 1, 32>}, {pipeline_mode = #tpu.pipeline_mode<synchronous>, transform_indices = @transform_13, window_bounds = array<i64: 1, 32>}, {pipeline_mode = #tpu.pipeline_mode<synchronous>, transform_indices = @transform_14, window_bounds = array<i64: 1, 32>}, {transform_indices = @transform_15, window_bounds = array<i64: 1, 8, 32>}]} {
    %c0 = arith.constant 0 : index
    %c0_0 = arith.constant 0 : index
    %c0_1 = arith.constant 0 : index
    %0 = vector.load %arg2[%c0, %c0_0, %c0_1] : memref<1x8x32xf32, #tpu.memory_space<vmem>>, vector<1x8x32xf32>
    %1 = vector.shape_cast %0 : vector<1x8x32xf32> to vector<8x32xf32>
    %2 = arith.truncf %1 : vector<8x32xf32> to vector<8x32xbf16>
    %c0_2 = arith.constant 0 : index
    %c0_3 = arith.constant 0 : index
    %3 = vector.load %arg5[%c0_2, %c0_3] : memref<32x32xbf16, #tpu.memory_space<vmem>>, vector<32x32xbf16>
    %cst = arith.constant dense<0.000000e+00> : vector<8x32xf32>
    %4 = tpu.matmul %2, %3, %cst {dimension_numbers = #tpu.dot_dimension_numbers<[1], [0], [0], [1], [0, 0, 1, 1], [], []>} : vector<8x32xbf16>, vector<32x32xbf16>, vector<8x32xf32> -> vector<8x32xf32>
    %c0_4 = arith.constant 0 : index
    %c0_5 = arith.constant 0 : index
    %5 = vector.load %arg6[%c0_4, %c0_5] : memref<1x32xf32, #tpu.memory_space<vmem>>, vector<1x32xf32>
    %6 = vector.broadcast %5 : vector<1x32xf32> to vector<8x32xf32>
    %7 = arith.addf %4, %6 : vector<8x32xf32>
    %cst_6 = arith.constant 0.353553385 : f32
    %8 = vector.broadcast %cst_6 : f32 to vector<8x32xf32>
    %9 = arith.mulf %7, %8 : vector<8x32xf32>
    %10 = arith.truncf %9 : vector<8x32xf32> to vector<8x32xbf16>
    %c0_7 = arith.constant 0 : index
    %c0_8 = arith.constant 0 : index
    %c0_9 = arith.constant 0 : index
    %11 = vector.load %arg3[%c0_7, %c0_8, %c0_9] : memref<1x8x32xbf16, #tpu.memory_space<vmem>>, vector<1x8x32xbf16>
    %12 = vector.shape_cast %11 : vector<1x8x32xbf16> to vector<8x32xbf16>
    %c0_10 = arith.constant 0 : index
    %c0_11 = arith.constant 0 : index
    %c0_12 = arith.constant 0 : index
    %13 = vector.load %arg4[%c0_10, %c0_11, %c0_12] : memref<1x8x32xbf16, #tpu.memory_space<vmem>>, vector<1x8x32xbf16>
    %14 = vector.shape_cast %13 : vector<1x8x32xbf16> to vector<8x32xbf16>
    %c8_i32 = arith.constant 8 : i32
    %15 = arith.muli %arg1, %c8_i32 : i32
    %16 = tpu.iota {dimensions = array<i32: 0>} : vector<8x8xi32>
    %17 = vector.broadcast %15 : i32 to vector<8x8xi32>
    %18 = arith.addi %17, %16 : vector<8x8xi32>
    %19 = tpu.iota {dimensions = array<i32: 1>} : vector<8x8xi32>
    %20 = arith.cmpi sge, %18, %19 : vector<8x8xi32>
    %cst_13 = arith.constant 0.000000e+00 : f32
    %cst_14 = arith.constant -1.000000e+09 : f32
    %21 = vector.broadcast %cst_13 : f32 to vector<8x8xf32>
    %22 = vector.broadcast %cst_14 : f32 to vector<8x8xf32>
    %23 = arith.select %20, %21, %22 : vector<8x8xi1>, vector<8x8xf32>
    %24 = vector.extract_strided_slice %10 {offsets = [0, 0], sizes = [8, 8], strides = [1, 1]} : vector<8x32xbf16> to vector<8x8xbf16>
    %25 = vector.extract_strided_slice %12 {offsets = [0, 0], sizes = [8, 8], strides = [1, 1]} : vector<8x32xbf16> to vector<8x8xbf16>
    %cst_15 = arith.constant dense<0.000000e+00> : vector<8x8xf32>
    %26 = tpu.matmul %24, %25, %cst_15 {dimension_numbers = #tpu.dot_dimension_numbers<[1], [1], [0], [0], [0, 0, 1, 0], [], []>} : vector<8x8xbf16>, vector<8x8xbf16>, vector<8x8xf32> -> vector<8x8xf32>
    %27 = arith.addf %26, %23 : vector<8x8xf32>
    %cst_16 = arith.constant dense<0xFF800000> : vector<8xf32>
    %28 = vector.multi_reduction <maximumf>, %27, %cst_16 [1] : vector<8x8xf32> to vector<8xf32>
    %29 = vector.shape_cast %28 : vector<8xf32> to vector<8x1xf32>
    %30 = vector.broadcast %29 : vector<8x1xf32> to vector<8x8xf32>
    %31 = arith.subf %27, %30 : vector<8x8xf32>
    %32 = math.exp %31 : vector<8x8xf32>
    %cst_17 = arith.constant dense<0.000000e+00> : vector<8xf32>
    %33 = vector.multi_reduction <add>, %32, %cst_17 [1] : vector<8x8xf32> to vector<8xf32>
    %34 = vector.shape_cast %33 : vector<8xf32> to vector<8x1xf32>
    %35 = tpu.reciprocal %34 {approx = true} : vector<8x1xf32> -> vector<8x1xf32>
    %36 = vector.broadcast %35 : vector<8x1xf32> to vector<8x8xf32>
    %37 = arith.mulf %32, %36 : vector<8x8xf32>
    %38 = arith.truncf %37 : vector<8x8xf32> to vector<8x8xbf16>
    %39 = vector.extract_strided_slice %14 {offsets = [0, 0], sizes = [8, 8], strides = [1, 1]} : vector<8x32xbf16> to vector<8x8xbf16>
    %cst_18 = arith.constant dense<0.000000e+00> : vector<8x8xf32>
    %40 = tpu.matmul %38, %39, %cst_18 {dimension_numbers = #tpu.dot_dimension_numbers<[1], [0], [0], [1], [0, 0, 1, 1], [], []>} : vector<8x8xbf16>, vector<8x8xbf16>, vector<8x8xf32> -> vector<8x8xf32>
    %41 = arith.truncf %40 : vector<8x8xf32> to vector<8x8xbf16>
    %c0_19 = arith.constant 0 : index
    %c0_20 = arith.constant 0 : index
    %42 = vector.load %arg18[%c0_19, %c0_20] : memref<8x32xbf16, #tpu.memory_space<vmem>>, vector<8x8xbf16>
    tpu.vector_store %arg18[%c0_19, %c0_20], %41 {strides = array<i32>} : memref<8x32xbf16, #tpu.memory_space<vmem>>, vector<8x8xbf16>,
    %43 = vector.extract_strided_slice %10 {offsets = [0, 8], sizes = [8, 8], strides = [1, 1]} : vector<8x32xbf16> to vector<8x8xbf16>
    %44 = vector.extract_strided_slice %12 {offsets = [0, 8], sizes = [8, 8], strides = [1, 1]} : vector<8x32xbf16> to vector<8x8xbf16>
    %cst_21 = arith.constant dense<0.000000e+00> : vector<8x8xf32>
    %45 = tpu.matmul %43, %44, %cst_21 {dimension_numbers = #tpu.dot_dimension_numbers<[1], [1], [0], [0], [0, 0, 1, 0], [], []>} : vector<8x8xbf16>, vector<8x8xbf16>, vector<8x8xf32> -> vector<8x8xf32>
    %46 = arith.addf %45, %23 : vector<8x8xf32>
    %cst_22 = arith.constant dense<0xFF800000> : vector<8xf32>
    %47 = vector.multi_reduction <maximumf>, %46, %cst_22 [1] : vector<8x8xf32> to vector<8xf32>
    %48 = vector.shape_cast %47 : vector<8xf32> to vector<8x1xf32>
    %49 = vector.broadcast %48 : vector<8x1xf32> to vector<8x8xf32>
    %50 = arith.subf %46, %49 : vector<8x8xf32>
    %51 = math.exp %50 : vector<8x8xf32>
    %cst_23 = arith.constant dense<0.000000e+00> : vector<8xf32>
    %52 = vector.multi_reduction <add>, %51, %cst_23 [1] : vector<8x8xf32> to vector<8xf32>
    %53 = vector.shape_cast %52 : vector<8xf32> to vector<8x1xf32>
    %54 = tpu.reciprocal %53 {approx = true} : vector<8x1xf32> -> vector<8x1xf32>
    %55 = vector.broadcast %54 : vector<8x1xf32> to vector<8x8xf32>
    %56 = arith.mulf %51, %55 : vector<8x8xf32>
    %57 = arith.truncf %56 : vector<8x8xf32> to vector<8x8xbf16>
    %58 = vector.extract_strided_slice %14 {offsets = [0, 8], sizes = [8, 8], strides = [1, 1]} : vector<8x32xbf16> to vector<8x8xbf16>
    %cst_24 = arith.constant dense<0.000000e+00> : vector<8x8xf32>
    %59 = tpu.matmul %57, %58, %cst_24 {dimension_numbers = #tpu.dot_dimension_numbers<[1], [0], [0], [1], [0, 0, 1, 1], [], []>} : vector<8x8xbf16>, vector<8x8xbf16>, vector<8x8xf32> -> vector<8x8xf32>
    %60 = arith.truncf %59 : vector<8x8xf32> to vector<8x8xbf16>
    %c0_25 = arith.constant 0 : index
    %c8 = arith.constant 8 : index
    %61 = vector.load %arg18[%c0_25, %c8] : memref<8x32xbf16, #tpu.memory_space<vmem>>, vector<8x8xbf16>
    tpu.vector_store %arg18[%c0_25, %c8], %60 {strides = array<i32>} : memref<8x32xbf16, #tpu.memory_space<vmem>>, vector<8x8xbf16>,
    %62 = vector.extract_strided_slice %10 {offsets = [0, 16], sizes = [8, 8], strides = [1, 1]} : vector<8x32xbf16> to vector<8x8xbf16>
    %63 = vector.extract_strided_slice %12 {offsets = [0, 16], sizes = [8, 8], strides = [1, 1]} : vector<8x32xbf16> to vector<8x8xbf16>
    %cst_26 = arith.constant dense<0.000000e+00> : vector<8x8xf32>
    %64 = tpu.matmul %62, %63, %cst_26 {dimension_numbers = #tpu.dot_dimension_numbers<[1], [1], [0], [0], [0, 0, 1, 0], [], []>} : vector<8x8xbf16>, vector<8x8xbf16>, vector<8x8xf32> -> vector<8x8xf32>
    %65 = arith.addf %64, %23 : vector<8x8xf32>
    %cst_27 = arith.constant dense<0xFF800000> : vector<8xf32>
    %66 = vector.multi_reduction <maximumf>, %65, %cst_27 [1] : vector<8x8xf32> to vector<8xf32>
    %67 = vector.shape_cast %66 : vector<8xf32> to vector<8x1xf32>
    %68 = vector.broadcast %67 : vector<8x1xf32> to vector<8x8xf32>
    %69 = arith.subf %65, %68 : vector<8x8xf32>
    %70 = math.exp %69 : vector<8x8xf32>
    %cst_28 = arith.constant dense<0.000000e+00> : vector<8xf32>
    %71 = vector.multi_reduction <add>, %70, %cst_28 [1] : vector<8x8xf32> to vector<8xf32>
    %72 = vector.shape_cast %71 : vector<8xf32> to vector<8x1xf32>
    %73 = tpu.reciprocal %72 {approx = true} : vector<8x1xf32> -> vector<8x1xf32>
    %74 = vector.broadcast %73 : vector<8x1xf32> to vector<8x8xf32>
    %75 = arith.mulf %70, %74 : vector<8x8xf32>
    %76 = arith.truncf %75 : vector<8x8xf32> to vector<8x8xbf16>
    %77 = vector.extract_strided_slice %14 {offsets = [0, 16], sizes = [8, 8], strides = [1, 1]} : vector<8x32xbf16> to vector<8x8xbf16>
    %cst_29 = arith.constant dense<0.000000e+00> : vector<8x8xf32>
    %78 = tpu.matmul %76, %77, %cst_29 {dimension_numbers = #tpu.dot_dimension_numbers<[1], [0], [0], [1], [0, 0, 1, 1], [], []>} : vector<8x8xbf16>, vector<8x8xbf16>, vector<8x8xf32> -> vector<8x8xf32>
    %79 = arith.truncf %78 : vector<8x8xf32> to vector<8x8xbf16>
    %c0_30 = arith.constant 0 : index
    %c16 = arith.constant 16 : index
    %80 = vector.load %arg18[%c0_30, %c16] : memref<8x32xbf16, #tpu.memory_space<vmem>>, vector<8x8xbf16>
    tpu.vector_store %arg18[%c0_30, %c16], %79 {strides = array<i32>} : memref<8x32xbf16, #tpu.memory_space<vmem>>, vector<8x8xbf16>,
    %81 = vector.extract_strided_slice %10 {offsets = [0, 24], sizes = [8, 8], strides = [1, 1]} : vector<8x32xbf16> to vector<8x8xbf16>
    %82 = vector.extract_strided_slice %12 {offsets = [0, 24], sizes = [8, 8], strides = [1, 1]} : vector<8x32xbf16> to vector<8x8xbf16>
    %cst_31 = arith.constant dense<0.000000e+00> : vector<8x8xf32>
    %83 = tpu.matmul %81, %82, %cst_31 {dimension_numbers = #tpu.dot_dimension_numbers<[1], [1], [0], [0], [0, 0, 1, 0], [], []>} : vector<8x8xbf16>, vector<8x8xbf16>, vector<8x8xf32> -> vector<8x8xf32>
    %84 = arith.addf %83, %23 : vector<8x8xf32>
    %cst_32 = arith.constant dense<0xFF800000> : vector<8xf32>
    %85 = vector.multi_reduction <maximumf>, %84, %cst_32 [1] : vector<8x8xf32> to vector<8xf32>
    %86 = vector.shape_cast %85 : vector<8xf32> to vector<8x1xf32>
    %87 = vector.broadcast %86 : vector<8x1xf32> to vector<8x8xf32>
    %88 = arith.subf %84, %87 : vector<8x8xf32>
    %89 = math.exp %88 : vector<8x8xf32>
    %cst_33 = arith.constant dense<0.000000e+00> : vector<8xf32>
    %90 = vector.multi_reduction <add>, %89, %cst_33 [1] : vector<8x8xf32> to vector<8xf32>
    %91 = vector.shape_cast %90 : vector<8xf32> to vector<8x1xf32>
    %92 = tpu.reciprocal %91 {approx = true} : vector<8x1xf32> -> vector<8x1xf32>
    %93 = vector.broadcast %92 : vector<8x1xf32> to vector<8x8xf32>
    %94 = arith.mulf %89, %93 : vector<8x8xf32>
    %95 = arith.truncf %94 : vector<8x8xf32> to vector<8x8xbf16>
    %96 = vector.extract_strided_slice %14 {offsets = [0, 24], sizes = [8, 8], strides = [1, 1]} : vector<8x32xbf16> to vector<8x8xbf16>
    %cst_34 = arith.constant dense<0.000000e+00> : vector<8x8xf32>
    %97 = tpu.matmul %95, %96, %cst_34 {dimension_numbers = #tpu.dot_dimension_numbers<[1], [0], [0], [1], [0, 0, 1, 1], [], []>} : vector<8x8xbf16>, vector<8x8xbf16>, vector<8x8xf32> -> vector<8x8xf32>
    %98 = arith.truncf %97 : vector<8x8xf32> to vector<8x8xbf16>
    %c0_35 = arith.constant 0 : index
    %c24 = arith.constant 24 : index
    %99 = vector.load %arg18[%c0_35, %c24] : memref<8x32xbf16, #tpu.memory_space<vmem>>, vector<8x8xbf16>
    tpu.vector_store %arg18[%c0_35, %c24], %98 {strides = array<i32>} : memref<8x32xbf16, #tpu.memory_space<vmem>>, vector<8x8xbf16>,
    %c0_36 = arith.constant 0 : index
    %c0_37 = arith.constant 0 : index
    %100 = vector.load %arg18[%c0_36, %c0_37] : memref<8x32xbf16, #tpu.memory_space<vmem>>, vector<8x32xbf16>
    %c0_38 = arith.constant 0 : index
    %c0_39 = arith.constant 0 : index
    %101 = vector.load %arg7[%c0_38, %c0_39] : memref<32x32xbf16, #tpu.memory_space<vmem>>, vector<32x32xbf16>
    %cst_40 = arith.constant dense<0.000000e+00> : vector<8x32xf32>
    %102 = tpu.matmul %100, %101, %cst_40 {dimension_numbers = #tpu.dot_dimension_numbers<[1], [0], [0], [1], [0, 0, 1, 1], [], []>} : vector<8x32xbf16>, vector<32x32xbf16>, vector<8x32xf32> -> vector<8x32xf32>
    %c0_41 = arith.constant 0 : index
    %c0_42 = arith.constant 0 : index
    %103 = vector.load %arg8[%c0_41, %c0_42] : memref<1x32xf32, #tpu.memory_space<vmem>>, vector<1x32xf32>
    %104 = vector.broadcast %103 : vector<1x32xf32> to vector<8x32xf32>
    %105 = arith.addf %102, %104 : vector<8x32xf32>
    %c0_43 = arith.constant 0 : index
    %c0_44 = arith.constant 0 : index
    %106 = vector.load %arg13[%c0_43, %c0_44] : memref<1x32xf32, #tpu.memory_space<vmem>>, vector<1x32xf32>
    %c0_45 = arith.constant 0 : index
    %c0_46 = arith.constant 0 : index
    %107 = vector.load %arg14[%c0_45, %c0_46] : memref<1x32xf32, #tpu.memory_space<vmem>>, vector<1x32xf32>
    %cst_47 = arith.constant dense<0.000000e+00> : vector<8xf32>
    %108 = vector.multi_reduction <add>, %105, %cst_47 [1] : vector<8x32xf32> to vector<8xf32>
    %109 = vector.shape_cast %108 : vector<8xf32> to vector<8x1xf32>
    %cst_48 = arith.constant 3.200000e+01 : f32
    %110 = vector.broadcast %cst_48 : f32 to vector<8x1xf32>
    %111 = arith.divf %109, %110 : vector<8x1xf32>
    %112 = vector.broadcast %111 : vector<8x1xf32> to vector<8x32xf32>
    %113 = arith.subf %105, %112 : vector<8x32xf32>
    %114 = arith.mulf %113, %113 : vector<8x32xf32>
    %cst_49 = arith.constant dense<0.000000e+00> : vector<8xf32>
    %115 = vector.multi_reduction <add>, %114, %cst_49 [1] : vector<8x32xf32> to vector<8xf32>
    %116 = vector.shape_cast %115 : vector<8xf32> to vector<8x1xf32>
    %cst_50 = arith.constant 3.200000e+01 : f32
    %117 = vector.broadcast %cst_50 : f32 to vector<8x1xf32>
    %118 = arith.divf %116, %117 : vector<8x1xf32>
    %119 = vector.broadcast %111 : vector<8x1xf32> to vector<8x32xf32>
    %120 = arith.subf %105, %119 : vector<8x32xf32>
    %cst_51 = arith.constant 9.99999974E-6 : f32
    %121 = vector.broadcast %cst_51 : f32 to vector<8x1xf32>
    %122 = arith.addf %118, %121 : vector<8x1xf32>
    %123 = math.rsqrt %122 : vector<8x1xf32>
    %124 = vector.broadcast %123 : vector<8x1xf32> to vector<8x32xf32>
    %125 = arith.mulf %120, %124 : vector<8x32xf32>
    %126 = vector.broadcast %106 : vector<1x32xf32> to vector<8x32xf32>
    %127 = arith.mulf %125, %126 : vector<8x32xf32>
    %128 = vector.broadcast %107 : vector<1x32xf32> to vector<8x32xf32>
    %129 = arith.addf %127, %128 : vector<8x32xf32>
    %130 = arith.addf %1, %129 : vector<8x32xf32>
    %131 = arith.truncf %130 : vector<8x32xf32> to vector<8x32xbf16>
    %cst_52 = arith.constant 0.000000e+00 : f32
    %132 = vector.broadcast %cst_52 : f32 to vector<8x32xf32>
    %c0_53 = arith.constant 0 : index
    %c0_54 = arith.constant 0 : index
    %133 = vector.load %arg9[%c0_53, %c0_54] : memref<32x64xbf16, #tpu.memory_space<vmem>>, vector<32x64xbf16>
    %cst_55 = arith.constant dense<0.000000e+00> : vector<8x64xf32>
    %134 = tpu.matmul %131, %133, %cst_55 {dimension_numbers = #tpu.dot_dimension_numbers<[1], [0], [0], [1], [0, 0, 1, 1], [], []>} : vector<8x32xbf16>, vector<32x64xbf16>, vector<8x64xf32> -> vector<8x64xf32>
    %c0_56 = arith.constant 0 : index
    %c0_57 = arith.constant 0 : index
    %135 = vector.load %arg10[%c0_56, %c0_57] : memref<1x64xf32, #tpu.memory_space<vmem>>, vector<1x64xf32>
    %136 = vector.broadcast %135 : vector<1x64xf32> to vector<8x64xf32>
    %137 = arith.addf %134, %136 : vector<8x64xf32>
    %cst_58 = arith.constant 0.000000e+00 : f32
    %138 = vector.broadcast %cst_58 : f32 to vector<8x64xf32>
    %139 = arith.maximumf %137, %138 : vector<8x64xf32>
    %140 = arith.truncf %139 : vector<8x64xf32> to vector<8x64xbf16>
    %c0_59 = arith.constant 0 : index
    %c0_60 = arith.constant 0 : index
    %141 = vector.load %arg11[%c0_59, %c0_60] : memref<64x32xbf16, #tpu.memory_space<vmem>>, vector<64x32xbf16>
    %cst_61 = arith.constant dense<0.000000e+00> : vector<8x32xf32>
    %142 = tpu.matmul %140, %141, %cst_61 {dimension_numbers = #tpu.dot_dimension_numbers<[1], [0], [0], [1], [0, 0, 1, 1], [], []>} : vector<8x64xbf16>, vector<64x32xbf16>, vector<8x32xf32> -> vector<8x32xf32>
    %143 = arith.addf %132, %142 : vector<8x32xf32>
    %c0_62 = arith.constant 0 : index
    %c0_63 = arith.constant 0 : index
    %144 = vector.load %arg12[%c0_62, %c0_63] : memref<1x32xf32, #tpu.memory_space<vmem>>, vector<1x32xf32>
    %145 = vector.broadcast %144 : vector<1x32xf32> to vector<8x32xf32>
    %146 = arith.addf %143, %145 : vector<8x32xf32>
    %c0_64 = arith.constant 0 : index
    %c0_65 = arith.constant 0 : index
    %147 = vector.load %arg15[%c0_64, %c0_65] : memref<1x32xf32, #tpu.memory_space<vmem>>, vector<1x32xf32>
    %c0_66 = arith.constant 0 : index
    %c0_67 = arith.constant 0 : index
    %148 = vector.load %arg16[%c0_66, %c0_67] : memref<1x32xf32, #tpu.memory_space<vmem>>, vector<1x32xf32>
    %cst_68 = arith.constant dense<0.000000e+00> : vector<8xf32>
    %149 = vector.multi_reduction <add>, %146, %cst_68 [1] : vector<8x32xf32> to vector<8xf32>
    %150 = vector.shape_cast %149 : vector<8xf32> to vector<8x1xf32>
    %cst_69 = arith.constant 3.200000e+01 : f32
    %151 = vector.broadcast %cst_69 : f32 to vector<8x1xf32>
    %152 = arith.divf %150, %151 : vector<8x1xf32>
    %153 = vector.broadcast %152 : vector<8x1xf32> to vector<8x32xf32>
    %154 = arith.subf %146, %153 : vector<8x32xf32>
    %155 = arith.mulf %154, %154 : vector<8x32xf32>
    %cst_70 = arith.constant dense<0.000000e+00> : vector<8xf32>
    %156 = vector.multi_reduction <add>, %155, %cst_70 [1] : vector<8x32xf32> to vector<8xf32>
    %157 = vector.shape_cast %156 : vector<8xf32> to vector<8x1xf32>
    %cst_71 = arith.constant 3.200000e+01 : f32
    %158 = vector.broadcast %cst_71 : f32 to vector<8x1xf32>
    %159 = arith.divf %157, %158 : vector<8x1xf32>
    %160 = vector.broadcast %152 : vector<8x1xf32> to vector<8x32xf32>
    %161 = arith.subf %146, %160 : vector<8x32xf32>
    %cst_72 = arith.constant 9.99999974E-6 : f32
    %162 = vector.broadcast %cst_72 : f32 to vector<8x1xf32>
    %163 = arith.addf %159, %162 : vector<8x1xf32>
    %164 = math.rsqrt %163 : vector<8x1xf32>
    %165 = vector.broadcast %164 : vector<8x1xf32> to vector<8x32xf32>
    %166 = arith.mulf %161, %165 : vector<8x32xf32>
    %167 = vector.broadcast %147 : vector<1x32xf32> to vector<8x32xf32>
    %168 = arith.mulf %166, %167 : vector<8x32xf32>
    %169 = vector.broadcast %148 : vector<1x32xf32> to vector<8x32xf32>
    %170 = arith.addf %168, %169 : vector<8x32xf32>
    %171 = arith.addf %130, %170 : vector<8x32xf32>
    %c0_73 = arith.constant 0 : index
    %c0_74 = arith.constant 0 : index
    %c0_75 = arith.constant 0 : index
    %172 = vector.load %arg17[%c0_73, %c0_74, %c0_75] : memref<1x8x32xf32, #tpu.memory_space<vmem>>, vector<1x8x32xf32>
    %173 = vector.shape_cast %172 : vector<1x8x32xf32> to vector<8x32xf32>
    %174 = vector.shape_cast %171 : vector<8x32xf32> to vector<1x8x32xf32>
    tpu.vector_store %arg17[%c0_73, %c0_74, %c0_75], %174 {strides = array<i32>} : memref<1x8x32xf32, #tpu.memory_space<vmem>>, vector<1x8x32xf32>,
    return
  }
  func.func @transform_0(%arg0: i32, %arg1: i32) -> (i32, i32, i32) {
    %c0_i32 = arith.constant 0 : i32
    %c0_i32_0 = arith.constant 0 : i32
    return %arg0, %arg1, %c0_i32 : i32, i32, i32
  }
  func.func @transform_1(%arg0: i32, %arg1: i32) -> (i32, i32, i32) {
    %c0_i32 = arith.constant 0 : i32
    %c0_i32_0 = arith.constant 0 : i32
    %c0_i32_1 = arith.constant 0 : i32
    return %arg0, %c0_i32, %c0_i32_0 : i32, i32, i32
  }
  func.func @transform_2(%arg0: i32, %arg1: i32) -> (i32, i32, i32) {
    %c0_i32 = arith.constant 0 : i32
    %c0_i32_0 = arith.constant 0 : i32
    %c0_i32_1 = arith.constant 0 : i32
    return %arg0, %c0_i32, %c0_i32_0 : i32, i32, i32
  }
  func.func @transform_3(%arg0: i32, %arg1: i32) -> (i32, i32) {
    %c0_i32 = arith.constant 0 : i32
    %c0_i32_0 = arith.constant 0 : i32
    %c0_i32_1 = arith.constant 0 : i32
    return %c0_i32, %c0_i32_0 : i32, i32
  }
  func.func @transform_4(%arg0: i32, %arg1: i32) -> (i32, i32) {
    %c0_i32 = arith.constant 0 : i32
    %c0_i32_0 = arith.constant 0 : i32
    %c0_i32_1 = arith.constant 0 : i32
    return %c0_i32, %c0_i32_0 : i32, i32
  }
  func.func @transform_5(%arg0: i32, %arg1: i32) -> (i32, i32) {
    %c0_i32 = arith.constant 0 : i32
    %c0_i32_0 = arith.constant 0 : i32
    %c0_i32_1 = arith.constant 0 : i32
    return %c0_i32, %c0_i32_0 : i32, i32
  }
  func.func @transform_6(%arg0: i32, %arg1: i32) -> (i32, i32) {
    %c0_i32 = arith.constant 0 : i32
    %c0_i32_0 = arith.constant 0 : i32
    %c0_i32_1 = arith.constant 0 : i32
    return %c0_i32, %c0_i32_0 : i32, i32
  }
  func.func @transform_7(%arg0: i32, %arg1: i32) -> (i32, i32) {
    %c0_i32 = arith.constant 0 : i32
    %c0_i32_0 = arith.constant 0 : i32
    %c0_i32_1 = arith.constant 0 : i32
    return %c0_i32, %c0_i32_0 : i32, i32
  }
  func.func @transform_8(%arg0: i32, %arg1: i32) -> (i32, i32) {
    %c0_i32 = arith.constant 0 : i32
    %c0_i32_0 = arith.constant 0 : i32
    %c0_i32_1 = arith.constant 0 : i32
    return %c0_i32, %c0_i32_0 : i32, i32
  }
  func.func @transform_9(%arg0: i32, %arg1: i32) -> (i32, i32) {
    %c0_i32 = arith.constant 0 : i32
    %c0_i32_0 = arith.constant 0 : i32
    %c0_i32_1 = arith.constant 0 : i32
    return %c0_i32, %c0_i32_0 : i32, i32
  }
  func.func @transform_10(%arg0: i32, %arg1: i32) -> (i32, i32) {
    %c0_i32 = arith.constant 0 : i32
    %c0_i32_0 = arith.constant 0 : i32
    %c0_i32_1 = arith.constant 0 : i32
    return %c0_i32, %c0_i32_0 : i32, i32
  }
  func.func @transform_11(%arg0: i32, %arg1: i32) -> (i32, i32) {
    %c0_i32 = arith.constant 0 : i32
    %c0_i32_0 = arith.constant 0 : i32
    %c0_i32_1 = arith.constant 0 : i32
    return %c0_i32, %c0_i32_0 : i32, i32
  }
  func.func @transform_12(%arg0: i32, %arg1: i32) -> (i32, i32) {
    %c0_i32 = arith.constant 0 : i32
    %c0_i32_0 = arith.constant 0 : i32
    %c0_i32_1 = arith.constant 0 : i32
    return %c0_i32, %c0_i32_0 : i32, i32
  }
  func.func @transform_13(%arg0: i32, %arg1: i32) -> (i32, i32) {
    %c0_i32 = arith.constant 0 : i32
    %c0_i32_0 = arith.constant 0 : i32
    %c0_i32_1 = arith.constant 0 : i32
    return %c0_i32, %c0_i32_0 : i32, i32
  }
  func.func @transform_14(%arg0: i32, %arg1: i32) -> (i32, i32) {
    %c0_i32 = arith.constant 0 : i32
    %c0_i32_0 = arith.constant 0 : i32
    %c0_i32_1 = arith.constant 0 : i32
    return %c0_i32, %c0_i32_0 : i32, i32
  }
  func.func @transform_15(%arg0: i32, %arg1: i32) -> (i32, i32, i32) {
    %c0_i32 = arith.constant 0 : i32
    %c0_i32_0 = arith.constant 0 : i32
    return %arg0, %arg1, %c0_i32 : i32, i32, i32
  }
}

</mosaic_0001>

<llo_original>
// kernel: transformer_decoder_pallas.4
$region0: #{transformer_decoder_pallas.4}
  #allocation0 [shape = 'u32[]', space=smem, size = 0x4, offset = 0x4, fixed_abs, tag = 'smem constant byte address 0x4 - core index']
  #allocation1 [shape = 'u32[144,128]{1,0:T(1,128)}', space=vmem, size = 0x12000, scoped, tag = 'internal scratch']
  %s0 = inlined_call_operand.vmem [shape: f32[2,8,32], index: 0, kind: input, shape index: {}]
  %s1 = inlined_call_operand.vmem [shape: bf16[32,64], index: 1, kind: input, shape index: {}]
  %s2 = inlined_call_operand.vmem [shape: f32[1,64], index: 2, kind: input, shape index: {}]
  %s3 = inlined_call_operand.vmem [shape: bf16[2,8,32], index: 3, kind: output, shape index: {0}]
  %s4 = inlined_call_operand.vmem [shape: bf16[2,8,32], index: 4, kind: output, shape index: {1}]
  %5 = xla_tuple %s3, %s4
  %s6 = sld [smem:[#allocation0]]
  $region53: #{transformer_decoder_pallas.4} parent=0
    _
  %s8 = ssub.s32 1, %s6
  %s9 = scalar_select 0, %s8, %s6
  loop: start=0, step=1, limit=4
  $region2: #{transformer_decoder_pallas.4} parent=0 // loop_pre_header
    _
  $region3: #{transformer_decoder_pallas.4} parent=0 // loop_header
    %s11 = sphi 0, %s15
    %p12 = scmp.ge.s32.totalorder %s11, 4
    %s18 = sphi 0, %s30
    %s19 = sphi 0, %s26
    %s20 = sphi 0, %s18
    %s21 = sphi 0, %s19
    %s22 = sphi 0, %s20
    %s23 = sphi 0, %s21
    %s35 = sphi 0, %s37
    %s38 = sphi 0, %s35
    %s39 = sphi 0, %s38
    %s55 = sphi 0, %s39
    %s59 = sphi 0, %s59
    %s61 = sphi 0, %s59
    %s62 = sphi 0, %s61
    %s76 = sphi 0, %s62
    %s80 = sphi 0, %s80
    %s82 = sphi 0, %s80
    %s83 = sphi 0, %s82
    %s97 = sphi 0, %s83
    %s105 = sphi 0, %s107
    %s108 = sphi 0, %s105
    %s109 = sphi 0, %s108
    %s125 = sphi 0, %s109
    %s133 = sphi 0, %s135
    %s136 = sphi 0, %s133
    %s137 = sphi 0, %s136
    %s153 = sphi 0, %s137
  $region4: #{transformer_decoder_pallas.4} parent=0 // loop_header_branch
    %14 = sbr.rel (%p12) target = $region8
  $region5: #{transformer_decoder_pallas.4} parent=0 // loop_body
    %s16 = ssub.s32 %s11, 1
    %s17 = ssub.s32 %s11, 2
    %s24 = sadd.s32 1, %s19
    %p25 = scmp.ge.s32.totalorder %s24, 1
    %s26 = scalar_select %p25, 0, %s24
    %s27 = sadd.s32 1, %s18
    %s28 = scalar_select %p25, %s27, %s18
    %p29 = scmp.ge.s32.totalorder %s28, 2
    %s30 = scalar_select %p29, 0, %s28
    %s31 = ssub.s32 %s18, %s30
    %s32 = ssub.s32 %s19, %s26
    %s33 = sor.u32 %s31, %s32
    %p34 = scmp.eq.s32.totalorder %s33, 0
    %s36 = sadd.s32 %s35, 1
    %s37 = scalar_select %p34, %s35, %s36
    %p40 = pneg %p34
    %p41 = scmp.eq.s32.totalorder %s11, 1
    %p42 = por %p40, %p41
    %p43 = scmp.ne.s32.totalorder %s35, %s38
    %p44 = scmp.eq.s32.totalorder %s11, 0
    %p45 = por %p43, %p44
    %p46 = scmp.ne.s32.totalorder %s35, %s38
    %p47 = scmp.eq.s32.totalorder %s16, 1
    %p48 = por %p46, %p47
    %p49 = scmp.ne.s32.totalorder %s38, %s39
    %p50 = scmp.eq.s32.totalorder %s16, 0
    %p51 = por %p49, %p50
    %p52 = scmp.ne.s32.totalorder %s38, %s39
    %p53 = scmp.eq.s32.totalorder %s17, 1
    %p54 = por %p52, %p53
    %p56 = scmp.ne.s32.totalorder %s39, %s55
    %p57 = scmp.eq.s32.totalorder %s17, 0
    %p58 = por %p56, %p57
    %s60 = sadd.s32 %s59, 1
    %p63 = scmp.eq.s32.totalorder %s11, 1
    %p64 = scmp.ne.s32.totalorder %s59, %s61
    %p65 = scmp.eq.s32.totalorder %s11, 0
    %p66 = por %p64, %p65
    %p67 = scmp.ne.s32.totalorder %s59, %s61
    %p68 = scmp.eq.s32.totalorder %s16, 1
    %p69 = por %p67, %p68
    %p70 = scmp.ne.s32.totalorder %s61, %s62
    %p71 = scmp.eq.s32.totalorder %s16, 0
    %p72 = por %p70, %p71
    %p73 = scmp.ne.s32.totalorder %s61, %s62
    %p74 = scmp.eq.s32.totalorder %s17, 1
    %p75 = por %p73, %p74
    %p77 = scmp.ne.s32.totalorder %s62, %s76
    %p78 = scmp.eq.s32.totalorder %s17, 0
    %p79 = por %p77, %p78
    %s81 = sadd.s32 %s80, 1
    %p84 = scmp.eq.s32.totalorder %s11, 1
    %p85 = scmp.ne.s32.totalorder %s80, %s82
    %p86 = scmp.eq.s32.totalorder %s11, 0
    %p87 = por %p85, %p86
    %p88 = scmp.ne.s32.totalorder %s80, %s82
    %p89 = scmp.eq.s32.totalorder %s16, 1
    %p90 = por %p88, %p89
    %p91 = scmp.ne.s32.totalorder %s82, %s83
    %p92 = scmp.eq.s32.totalorder %s16, 0
    %p93 = por %p91, %p92
    %p94 = scmp.ne.s32.totalorder %s82, %s83
    %p95 = scmp.eq.s32.totalorder %s17, 1
    %p96 = por %p94, %p95
    %p98 = scmp.ne.s32.totalorder %s83, %s97
    %p99 = scmp.eq.s32.totalorder %s17, 0
    %p100 = por %p98, %p99
    %s101 = ssub.s32 %s18, %s30
    %s102 = ssub.s32 %s19, %s26
    %s103 = sor.u32 %s101, %s102
    %p104 = scmp.eq.s32.totalorder %s103, 0
    %s106 = sadd.s32 %s105, 1
    %s107 = scalar_select %p104, %s105, %s106
    %p110 = pneg %p104
    %p111 = scmp.eq.s32.totalorder %s11, 1
    %p112 = por %p110, %p111
    %p113 = scmp.ne.s32.totalorder %s105, %s108
    %p114 = scmp.eq.s32.totalorder %s11, 0
    %p115 = por %p113, %p114
    %p116 = scmp.ne.s32.totalorder %s105, %s108
    %p117 = scmp.eq.s32.totalorder %s16, 1
    %p118 = por %p116, %p117
    %p119 = scmp.ne.s32.totalorder %s108, %s109
    %p120 = scmp.eq.s32.totalorder %s16, 0
    %p121 = por %p119, %p120
    %p122 = scmp.ne.s32.totalorder %s108, %s109
    %p123 = scmp.eq.s32.totalorder %s17, 1
    %p124 = por %p122, %p123
    %p126 = scmp.ne.s32.totalorder %s109, %s125
    %p127 = scmp.eq.s32.totalorder %s17, 0
    %p128 = por %p126, %p127
    %s129 = ssub.s32 %s18, %s30
    %s130 = ssub.s32 %s19, %s26
    %s131 = sor.u32 %s129, %s130
    %p132 = scmp.eq.s32.totalorder %s131, 0
    %s134 = sadd.s32 %s133, 1
    %s135 = scalar_select %p132, %s133, %s134
    %p138 = pneg %p132
    %p139 = scmp.eq.s32.totalorder %s11, 1
    %p140 = por %p138, %p139
    %p141 = scmp.ne.s32.totalorder %s133, %s136
    %p142 = scmp.eq.s32.totalorder %s11, 0
    %p143 = por %p141, %p142
    %p144 = scmp.ne.s32.totalorder %s133, %s136
    %p145 = scmp.eq.s32.totalorder %s16, 1
    %p146 = por %p144, %p145
    %p147 = scmp.ne.s32.totalorder %s136, %s137
    %p148 = scmp.eq.s32.totalorder %s16, 0
    %p149 = por %p147, %p148
    %p150 = scmp.ne.s32.totalorder %s136, %s137
    %p151 = scmp.eq.s32.totalorder %s17, 1
    %p152 = por %p150, %p151
    %p154 = scmp.ne.s32.totalorder %s137, %s153
    %p155 = scmp.eq.s32.totalorder %s17, 0
    %p156 = por %p154, %p155
    %p157 = scmp.le.s32.totalorder 1, %s11
    %p158 = scmp.lt.s32.totalorder %s11, 3
    %p159 = pnand %p157, %p158
    %p160 = pneg %p159
    // Predicated region
    $region9: #{transformer_decoder_pallas.4} parent=5 // pred_check
      _
    $region10: #{transformer_decoder_pallas.4} parent=5 // pred_check_branch
      %162 = sbr.rel (%p159) target = $region12
    $region11: #{transformer_decoder_pallas.4} parent=5 // pred_region
      %s163 = ssub.s32 %s11, 1
      // Predicated region
      $region13: #{transformer_decoder_pallas.4} parent=11 // pred_check
        %p164 = pneg %p72
      $region14: #{transformer_decoder_pallas.4} parent=11 // pred_check_branch
        %166 = sbr.rel (%p164) target = $region16
      $region15: #{transformer_decoder_pallas.4} parent=11 // pred_region
        _
      $region16: #{transformer_decoder_pallas.4} parent=11 // pred_fallthru
        _
      // Predicated region
      $region17: #{transformer_decoder_pallas.4} parent=11 // pred_check
        %p167 = pneg %p93
      $region18: #{transformer_decoder_pallas.4} parent=11 // pred_check_branch
        %169 = sbr.rel (%p167) target = $region20
      $region19: #{transformer_decoder_pallas.4} parent=11 // pred_region
        _
      $region20: #{transformer_decoder_pallas.4} parent=11 // pred_fallthru
        _
    $region12: #{transformer_decoder_pallas.4} parent=5 // pred_fallthru
      _
    %p170 = scmp.lt.s32.totalorder %s11, 2
    // Predicated region
    $region21: #{transformer_decoder_pallas.4} parent=5 // pred_check
      %p171 = pneg %p170
    $region22: #{transformer_decoder_pallas.4} parent=5 // pred_check_branch
      %173 = sbr.rel (%p171) target = $region24
    $region23: #{transformer_decoder_pallas.4} parent=5 // pred_region
      // Predicated region
      $region25: #{transformer_decoder_pallas.4} parent=23 // pred_check
        %p174 = pneg %p45
      $region26: #{transformer_decoder_pallas.4} parent=23 // pred_check_branch
        %176 = sbr.rel (%p174) target = $region28
      $region27: #{transformer_decoder_pallas.4} parent=23 // pred_region
        %p177 = scmp.lt.s32.totalorder %s18, 1
        %s178 = scalar_select %p177, %s18, 1
        %p179 = scmp.lt.s32.totalorder %s19, 0
        %s180 = scalar_select %p179, %s19, 0
        %s181 = sadd.s32 %s180, %s178
        %s182 = smul.addr %s181, 8
        %s183 = scalar_lea.vmem %s0, %s182
      $region28: #{transformer_decoder_pallas.4} parent=23 // pred_fallthru
        _
    $region24: #{transformer_decoder_pallas.4} parent=5 // pred_fallthru
      _
    %p184 = scmp.le.s32.totalorder 1, %s11
    %p185 = scmp.lt.s32.totalorder %s11, 3
    %p186 = pnand %p184, %p185
    %p187 = pneg %p186
    // Predicated region
    $region29: #{transformer_decoder_pallas.4} parent=5 // pred_check
      _
    $region30: #{transformer_decoder_pallas.4} parent=5 // pred_check_branch
      %189 = sbr.rel (%p186) target = $region32
    $region31: #{transformer_decoder_pallas.4} parent=5 // pred_region
      %s190 = ssub.s32 %s11, 1
      %p191 = scmp.lt.s32.totalorder %s20, 1
      %s192 = scalar_select %p191, %s20, 1
      %p193 = scmp.lt.s32.totalorder %s21, 0
      %s194 = scalar_select %p193, %s21, 0
      %s195 = sadd.s32 %s194, %s192
      %s196 = smul.addr %s195, 8
      %s197 = scalar_lea.vmem %s0, %s196
      %p198 = pneg %p51
      %p199 = pneg %p48
      %p200 = pneg %p72
      %p201 = pneg %p69
      %p202 = pneg %p93
      %p203 = pneg %p90
      %p204 = pneg %p121
      %p205 = pneg %p118
      %p206 = scmp.lt.s32.totalorder %s20, 1
      %s207 = scalar_select %p206, %s20, 1
      %p208 = scmp.lt.s32.totalorder %s21, 0
      %s209 = scalar_select %p208, %s21, 0
      %s210 = sadd.s32 %s209, %s207
      %s211 = smul.addr %s210, 4
      %s212 = scalar_lea.vmem %s3, %s211
      %p213 = pneg %p149
      %p214 = pneg %p146
      %p215 = scmp.lt.s32.totalorder %s20, 1
      %s216 = scalar_select %p215, %s20, 1
      %p217 = scmp.lt.s32.totalorder %s21, 0
      %s218 = scalar_select %p217, %s21, 0
      %s219 = sadd.s32 %s218, %s216
      %s220 = smul.addr %s219, 4
      %s221 = scalar_lea.vmem %s4, %s220
      %p222 = scmp.lt.s32.totalorder %s20, 1
      %s223 = scalar_select %p222, %s20, 1
      %p224 = scmp.lt.s32.totalorder %s21, 0
      %s225 = scalar_select %p224, %s21, 0
      %s226 = sadd.s32 %s225, %s223
      %s227 = smul.addr %s226, 8
      %s228 = scalar_lea.vmem %s0, %s227
      %p229 = scmp.lt.s32.totalorder %s20, 1
      %s230 = scalar_select %p229, %s20, 1
      %p231 = scmp.lt.s32.totalorder %s21, 0
      %s232 = scalar_select %p231, %s21, 0
      %s233 = sadd.s32 %s232, %s230
      %s234 = smul.addr %s233, 4
      %s235 = scalar_lea.vmem %s3, %s234
      %p236 = scmp.lt.s32.totalorder %s20, 1
      %s237 = scalar_select %p236, %s20, 1
      %p238 = scmp.lt.s32.totalorder %s21, 0
      %s239 = scalar_select %p238, %s21, 0
      %s240 = sadd.s32 %s239, %s237
      %s241 = smul.addr %s240, 4
      %s242 = scalar_lea.vmem %s4, %s241
      %v244 = vld [vmem:[%s228] sm:$0xff]
      %v245 = vpack.c.bf16 %v244, %v244
      %v246 = vld [vmem:[%s1] sm:$0xf]
      %v247 = vld [vmem:[%s1 + $0x4] sm:$0xf]
      %v248 = vld [vmem:[%s1 + $0x8] sm:$0xf]
      %v249 = vld [vmem:[%s1 + $0xc] sm:$0xf]
      %v250 = vld [vmem:[%s2] sm:$0x1]
      %v252 = vlaneseq
      %v253 = vshrl.u32 %v252, 7
      %v254 = vsub.s32 0, %v253
      %v255 = vrot.slane %v250, %v254
      %v261 = vunpack.c.l.b16 %v246
      %v262 = vunpack.c.l.b16 %v247
      %v263 = vunpack.c.l.b16 %v248
      %v264 = vunpack.c.l.b16 %v249
      %v265 = vpack.c.b16 %v262, %v261
      %v266 = vpack.c.b16 %v264, %v263
      %vm269 = vcmask 261120
      %v271 = vsel %vm269, %v245, 0
      %273 = vmatprep.subr.bf16.mxu0 0
      %274 = vmatpush1.bf16.msra.mxu0 %v265
      %275 = vmatprep.subr.bf16.mxu0 0
      %276 = vmatpush1.bf16.msra.mxu0 %v266
      %277 = vmatprep.subr.bf16.mxu0 0
      %278 = vmatpush1.bf16.msra.mxu0 0
      %279 = vmatprep.subr.bf16.mxu0 0
      %280 = vmatpush1.bf16.msra.mxu0 0
      %281 = vmatprep.subr.bf16.mxu0 0
      %282 = vmatpush1.bf16.msra.mxu0 0
      %283 = vmatprep.subr.bf16.mxu0 0
      %284 = vmatpush1.bf16.msra.mxu0 0
      %285 = vmatprep.subr.bf16.mxu0 0
      %286 = vmatpush1.bf16.msra.mxu0 0
      %287 = vmatprep.subr.bf16.mxu0 0
      %288 = vmatpush1.bf16.msra.mxu0 0
      %289 = vmatprep.subr.bf16.mxu0 0
      %290 = vmatpush1.bf16.msra.mxu0 0
      %291 = vmatprep.subr.bf16.mxu0 0
      %292 = vmatpush1.bf16.msra.mxu0 0
      %293 = vmatprep.subr.bf16.mxu0 0
      %294 = vmatpush1.bf16.msra.mxu0 0
      %295 = vmatprep.subr.bf16.mxu0 0
      %296 = vmatpush1.bf16.msra.mxu0 0
      %297 = vmatprep.subr.bf16.mxu0 0
      %298 = vmatpush1.bf16.msra.mxu0 0
      %299 = vmatprep.subr.bf16.mxu0 0
      %300 = vmatpush1.bf16.msra.mxu0 0
      %301 = vmatprep.subr.bf16.mxu0 0
      %302 = vmatpush1.bf16.msra.mxu0 0
      %303 = vmatprep.subr.bf16.mxu0 0
      %304 = vmatpush1.bf16.msra.mxu0 0
      %305 = vmatprep.mubr.bf16.mxu0 0
      %306 = vmatmul.mubr.bf16.gmra.mrb[0].mxu0 %v271
      %v307 = vpop.f32.mrb[0].mxu0
      %v308 = vadd.f32 %v255, %v307
      %v309 = vpop.f32.mrb[0].mxu0
      %v310 = vpop.f32.mrb[0].mxu0
      %v311 = vpop.f32.mrb[0].mxu0
      %312 = vdwg.mxu0
      %v313 = vpack.c.bf16 %v308, %v308
      %vm314 = vcmask 257024
      %315 = vst.msk [vmem:[%s235] sm:$0xf] %vm314, %v313
      %v317 = vunpack.c.l.b16 %v313
      %v318 = vpack.c.b16 %v317, %v317
      %319 = vrot.lane.b32.xlu0 %v318, 96
      %v320 = vpop.permute.xlu0 %319
      %322 = vst.msk [vmem:[%s242] sm:$0xf] %vm314, %v320
      %p323 = scmp.lt.s32.totalorder %s20, 1
      %s324 = scalar_select %p323, %s20, 1
      %p325 = scmp.lt.s32.totalorder %s21, 0
      %s326 = scalar_select %p325, %s21, 0
      %s327 = sadd.s32 %s326, %s324
      %s328 = smul.addr %s327, 4
      %s329 = scalar_lea.vmem %s3, %s328
      %p330 = scmp.lt.s32.totalorder %s20, 1
      %s331 = scalar_select %p330, %s20, 1
      %p332 = scmp.lt.s32.totalorder %s21, 0
      %s333 = scalar_select %p332, %s21, 0
      %s334 = sadd.s32 %s333, %s331
      %s335 = smul.addr %s334, 4
      %s336 = scalar_lea.vmem %s4, %s335
      // Predicated region
      $region33: #{transformer_decoder_pallas.4} parent=31 // pred_check
        %p337 = pneg %p118
      $region34: #{transformer_decoder_pallas.4} parent=31 // pred_check_branch
        %339 = sbr.rel (%p337) target = $region36
      $region35: #{transformer_decoder_pallas.4} parent=31 // pred_region
        _
      $region36: #{transformer_decoder_pallas.4} parent=31 // pred_fallthru
        _
      // Predicated region
      $region37: #{transformer_decoder_pallas.4} parent=31 // pred_check
        %p340 = pneg %p146
      $region38: #{transformer_decoder_pallas.4} parent=31 // pred_check_branch
        %342 = sbr.rel (%p340) target = $region40
      $region39: #{transformer_decoder_pallas.4} parent=31 // pred_region
        _
      $region40: #{transformer_decoder_pallas.4} parent=31 // pred_fallthru
        _
    $region32: #{transformer_decoder_pallas.4} parent=5 // pred_fallthru
      _
    %p343 = scmp.le.s32.totalorder 2, %s11
    // Predicated region
    $region41: #{transformer_decoder_pallas.4} parent=5 // pred_check
      %p344 = pneg %p343
    $region42: #{transformer_decoder_pallas.4} parent=5 // pred_check_branch
      %346 = sbr.rel (%p344) target = $region44
    $region43: #{transformer_decoder_pallas.4} parent=5 // pred_region
      %s347 = ssub.s32 %s11, 2
      // Predicated region
      $region45: #{transformer_decoder_pallas.4} parent=43 // pred_check
        %p348 = pneg %p124
      $region46: #{transformer_decoder_pallas.4} parent=43 // pred_check_branch
        %350 = sbr.rel (%p348) target = $region48
      $region47: #{transformer_decoder_pallas.4} parent=43 // pred_region
        %p351 = scmp.lt.s32.totalorder %s22, 1
        %s352 = scalar_select %p351, %s22, 1
        %p353 = scmp.lt.s32.totalorder %s23, 0
        %s354 = scalar_select %p353, %s23, 0
        %s355 = sadd.s32 %s354, %s352
        %s356 = smul.addr %s355, 4
        %s357 = scalar_lea.vmem %s3, %s356
      $region48: #{transformer_decoder_pallas.4} parent=43 // pred_fallthru
        _
      // Predicated region
      $region49: #{transformer_decoder_pallas.4} parent=43 // pred_check
        %p358 = pneg %p152
      $region50: #{transformer_decoder_pallas.4} parent=43 // pred_check_branch
        %360 = sbr.rel (%p358) target = $region52
      $region51: #{transformer_decoder_pallas.4} parent=43 // pred_region
        %p361 = scmp.lt.s32.totalorder %s22, 1
        %s362 = scalar_select %p361, %s22, 1
        %p363 = scmp.lt.s32.totalorder %s23, 0
        %s364 = scalar_select %p363, %s23, 0
        %s365 = sadd.s32 %s364, %s362
        %s366 = smul.addr %s365, 4
        %s367 = scalar_lea.vmem %s4, %s366
      $region52: #{transformer_decoder_pallas.4} parent=43 // pred_fallthru
        _
    $region44: #{transformer_decoder_pallas.4} parent=5 // pred_fallthru
      _
  $region6: #{transformer_decoder_pallas.4} parent=0 // loop_footer
    %s15 = sadd.s32 1, %s11
  $region7: #{transformer_decoder_pallas.4} parent=0 // loop_footer_branch
    %10 = sbr.rel target = $region3
  $region8: #{transformer_decoder_pallas.4} parent=0 // loop_exit
    _

// kernel: transformer_decoder_pallas.5
$region0: #{transformer_decoder_pallas.5}
  #allocation0 [shape = 'u32[]', space=smem, size = 0x4, offset = 0x4, fixed_abs, tag = 'smem constant byte address 0x4 - core index']
  #allocation1 [shape = 'u32[144,128]{1,0:T(1,128)}', space=vmem, size = 0x12000, scoped, tag = 'internal scratch']
  #allocation2 [shape = 'bf16[8,32]{1,0:T(8,128)(2,1)}', space=vmem, size = 0x800, scoped, tag = 'scratch operand']
  %s0 = inlined_call_operand.vmem [shape: f32[2,8,32], index: 0, kind: input, shape index: {}, may-alias: {0,15}]
  %s1 = inlined_call_operand.vmem [shape: bf16[2,8,32], index: 1, kind: input, shape index: {}]
  %s2 = inlined_call_operand.vmem [shape: bf16[2,8,32], index: 2, kind: input, shape index: {}]
  %s3 = inlined_call_operand.vmem [shape: bf16[32,32], index: 3, kind: input, shape index: {}]
  %s4 = inlined_call_operand.vmem [shape: f32[1,32], index: 4, kind: input, shape index: {}]
  %s5 = inlined_call_operand.vmem [shape: bf16[32,32], index: 5, kind: input, shape index: {}]
  %s6 = inlined_call_operand.vmem [shape: f32[1,32], index: 6, kind: input, shape index: {}]
  %s7 = inlined_call_operand.vmem [shape: bf16[32,64], index: 7, kind: input, shape index: {}]
  %s8 = inlined_call_operand.vmem [shape: f32[1,64], index: 8, kind: input, shape index: {}]
  %s9 = inlined_call_operand.vmem [shape: bf16[64,32], index: 9, kind: input, shape index: {}]
  %s10 = inlined_call_operand.vmem [shape: f32[1,32], index: 10, kind: input, shape index: {}]
  %s11 = inlined_call_operand.vmem [shape: f32[1,32], index: 11, kind: input, shape index: {}]
  %s12 = inlined_call_operand.vmem [shape: f32[1,32], index: 12, kind: input, shape index: {}]
  %s13 = inlined_call_operand.vmem [shape: f32[1,32], index: 13, kind: input, shape index: {}]
  %s14 = inlined_call_operand.vmem [shape: f32[1,32], index: 14, kind: input, shape index: {}]
  %s15 = inlined_call_operand.vmem [shape: f32[2,8,32], index: 15, kind: output, shape index: {}, may-alias: {0,15}]
  %s16 = sld [smem:[#allocation0]]
  $region93: #{transformer_decoder_pallas.5} parent=0
    _
  %s18 = ssub.s32 1, %s16
  %s19 = scalar_select 0, %s18, %s16
  loop: start=0, step=1, limit=4
  $region2: #{transformer_decoder_pallas.5} parent=0 // loop_pre_header
    _
  $region3: #{transformer_decoder_pallas.5} parent=0 // loop_header
    %s21 = sphi 0, %s25
    %p22 = scmp.ge.s32.totalorder %s21, 4
    %s28 = sphi 0, %s40
    %s29 = sphi 0, %s36
    %s30 = sphi 0, %s28
    %s31 = sphi 0, %s29
    %s32 = sphi 0, %s30
    %s33 = sphi 0, %s31
    %s45 = sphi 0, %s47
    %s48 = sphi 0, %s45
    %s49 = sphi 0, %s48
    %s65 = sphi 0, %s49
    %s71 = sphi 0, %s73
    %s74 = sphi 0, %s71
    %s75 = sphi 0, %s74
    %s91 = sphi 0, %s75
    %s97 = sphi 0, %s99
    %s100 = sphi 0, %s97
    %s101 = sphi 0, %s100
    %s117 = sphi 0, %s101
    %s121 = sphi 0, %s121
    %s123 = sphi 0, %s121
    %s124 = sphi 0, %s123
    %s138 = sphi 0, %s124
    %s142 = sphi 0, %s142
    %s144 = sphi 0, %s142
    %s145 = sphi 0, %s144
    %s159 = sphi 0, %s145
    %s163 = sphi 0, %s163
    %s165 = sphi 0, %s163
    %s166 = sphi 0, %s165
    %s180 = sphi 0, %s166
    %s184 = sphi 0, %s184
    %s186 = sphi 0, %s184
    %s187 = sphi 0, %s186
    %s201 = sphi 0, %s187
    %s205 = sphi 0, %s205
    %s207 = sphi 0, %s205
    %s208 = sphi 0, %s207
    %s222 = sphi 0, %s208
    %s226 = sphi 0, %s226
    %s228 = sphi 0, %s226
    %s229 = sphi 0, %s228
    %s243 = sphi 0, %s229
    %s247 = sphi 0, %s247
    %s249 = sphi 0, %s247
    %s250 = sphi 0, %s249
    %s264 = sphi 0, %s250
    %s268 = sphi 0, %s268
    %s270 = sphi 0, %s268
    %s271 = sphi 0, %s270
    %s285 = sphi 0, %s271
    %s289 = sphi 0, %s289
    %s291 = sphi 0, %s289
    %s292 = sphi 0, %s291
    %s306 = sphi 0, %s292
    %s310 = sphi 0, %s310
    %s312 = sphi 0, %s310
    %s313 = sphi 0, %s312
    %s327 = sphi 0, %s313
    %s331 = sphi 0, %s331
    %s333 = sphi 0, %s331
    %s334 = sphi 0, %s333
    %s348 = sphi 0, %s334
    %s352 = sphi 0, %s352
    %s354 = sphi 0, %s352
    %s355 = sphi 0, %s354
    %s369 = sphi 0, %s355
    %s377 = sphi 0, %s379
    %s380 = sphi 0, %s377
    %s381 = sphi 0, %s380
    %s397 = sphi 0, %s381
  $region4: #{transformer_decoder_pallas.5} parent=0 // loop_header_branch
    %24 = sbr.rel (%p22) target = $region8
  $region5: #{transformer_decoder_pallas.5} parent=0 // loop_body
    %s26 = ssub.s32 %s21, 1
    %s27 = ssub.s32 %s21, 2
    %s34 = sadd.s32 1, %s29
    %p35 = scmp.ge.s32.totalorder %s34, 1
    %s36 = scalar_select %p35, 0, %s34
    %s37 = sadd.s32 1, %s28
    %s38 = scalar_select %p35, %s37, %s28
    %p39 = scmp.ge.s32.totalorder %s38, 2
    %s40 = scalar_select %p39, 0, %s38
    %s41 = ssub.s32 %s28, %s40
    %s42 = ssub.s32 %s29, %s36
    %s43 = sor.u32 %s41, %s42
    %p44 = scmp.eq.s32.totalorder %s43, 0
    %s46 = sadd.s32 %s45, 1
    %s47 = scalar_select %p44, %s45, %s46
    %p50 = pneg %p44
    %p51 = scmp.eq.s32.totalorder %s21, 1
    %p52 = por %p50, %p51
    %p53 = scmp.ne.s32.totalorder %s45, %s48
    %p54 = scmp.eq.s32.totalorder %s21, 0
    %p55 = por %p53, %p54
    %p56 = scmp.ne.s32.totalorder %s45, %s48
    %p57 = scmp.eq.s32.totalorder %s26, 1
    %p58 = por %p56, %p57
    %p59 = scmp.ne.s32.totalorder %s48, %s49
    %p60 = scmp.eq.s32.totalorder %s26, 0
    %p61 = por %p59, %p60
    %p62 = scmp.ne.s32.totalorder %s48, %s49
    %p63 = scmp.eq.s32.totalorder %s27, 1
    %p64 = por %p62, %p63
    %p66 = scmp.ne.s32.totalorder %s49, %s65
    %p67 = scmp.eq.s32.totalorder %s27, 0
    %p68 = por %p66, %p67
    %s69 = ssub.s32 %s28, %s40
    %p70 = scmp.eq.s32.totalorder %s69, 0
    %s72 = sadd.s32 %s71, 1
    %s73 = scalar_select %p70, %s71, %s72
    %p76 = pneg %p70
    %p77 = scmp.eq.s32.totalorder %s21, 1
    %p78 = por %p76, %p77
    %p79 = scmp.ne.s32.totalorder %s71, %s74
    %p80 = scmp.eq.s32.totalorder %s21, 0
    %p81 = por %p79, %p80
    %p82 = scmp.ne.s32.totalorder %s71, %s74
    %p83 = scmp.eq.s32.totalorder %s26, 1
    %p84 = por %p82, %p83
    %p85 = scmp.ne.s32.totalorder %s74, %s75
    %p86 = scmp.eq.s32.totalorder %s26, 0
    %p87 = por %p85, %p86
    %p88 = scmp.ne.s32.totalorder %s74, %s75
    %p89 = scmp.eq.s32.totalorder %s27, 1
    %p90 = por %p88, %p89
    %p92 = scmp.ne.s32.totalorder %s75, %s91
    %p93 = scmp.eq.s32.totalorder %s27, 0
    %p94 = por %p92, %p93
    %s95 = ssub.s32 %s28, %s40
    %p96 = scmp.eq.s32.totalorder %s95, 0
    %s98 = sadd.s32 %s97, 1
    %s99 = scalar_select %p96, %s97, %s98
    %p102 = pneg %p96
    %p103 = scmp.eq.s32.totalorder %s21, 1
    %p104 = por %p102, %p103
    %p105 = scmp.ne.s32.totalorder %s97, %s100
    %p106 = scmp.eq.s32.totalorder %s21, 0
    %p107 = por %p105, %p106
    %p108 = scmp.ne.s32.totalorder %s97, %s100
    %p109 = scmp.eq.s32.totalorder %s26, 1
    %p110 = por %p108, %p109
    %p111 = scmp.ne.s32.totalorder %s100, %s101
    %p112 = scmp.eq.s32.totalorder %s26, 0
    %p113 = por %p111, %p112
    %p114 = scmp.ne.s32.totalorder %s100, %s101
    %p115 = scmp.eq.s32.totalorder %s27, 1
    %p116 = por %p114, %p115
    %p118 = scmp.ne.s32.totalorder %s101, %s117
    %p119 = scmp.eq.s32.totalorder %s27, 0
    %p120 = por %p118, %p119
    %s122 = sadd.s32 %s121, 1
    %p125 = scmp.eq.s32.totalorder %s21, 1
    %p126 = scmp.ne.s32.totalorder %s121, %s123
    %p127 = scmp.eq.s32.totalorder %s21, 0
    %p128 = por %p126, %p127
    %p129 = scmp.ne.s32.totalorder %s121, %s123
    %p130 = scmp.eq.s32.totalorder %s26, 1
    %p131 = por %p129, %p130
    %p132 = scmp.ne.s32.totalorder %s123, %s124
    %p133 = scmp.eq.s32.totalorder %s26, 0
    %p134 = por %p132, %p133
    %p135 = scmp.ne.s32.totalorder %s123, %s124
    %p136 = scmp.eq.s32.totalorder %s27, 1
    %p137 = por %p135, %p136
    %p139 = scmp.ne.s32.totalorder %s124, %s138
    %p140 = scmp.eq.s32.totalorder %s27, 0
    %p141 = por %p139, %p140
    %s143 = sadd.s32 %s142, 1
    %p146 = scmp.eq.s32.totalorder %s21, 1
    %p147 = scmp.ne.s32.totalorder %s142, %s144
    %p148 = scmp.eq.s32.totalorder %s21, 0
    %p149 = por %p147, %p148
    %p150 = scmp.ne.s32.totalorder %s142, %s144
    %p151 = scmp.eq.s32.totalorder %s26, 1
    %p152 = por %p150, %p151
    %p153 = scmp.ne.s32.totalorder %s144, %s145
    %p154 = scmp.eq.s32.totalorder %s26, 0
    %p155 = por %p153, %p154
    %p156 = scmp.ne.s32.totalorder %s144, %s145
    %p157 = scmp.eq.s32.totalorder %s27, 1
    %p158 = por %p156, %p157
    %p160 = scmp.ne.s32.totalorder %s145, %s159
    %p161 = scmp.eq.s32.totalorder %s27, 0
    %p162 = por %p160, %p161
    %s164 = sadd.s32 %s163, 1
    %p167 = scmp.eq.s32.totalorder %s21, 1
    %p168 = scmp.ne.s32.totalorder %s163, %s165
    %p169 = scmp.eq.s32.totalorder %s21, 0
    %p170 = por %p168, %p169
    %p171 = scmp.ne.s32.totalorder %s163, %s165
    %p172 = scmp.eq.s32.totalorder %s26, 1
    %p173 = por %p171, %p172
    %p174 = scmp.ne.s32.totalorder %s165, %s166
    %p175 = scmp.eq.s32.totalorder %s26, 0
    %p176 = por %p174, %p175
    %p177 = scmp.ne.s32.totalorder %s165, %s166
    %p178 = scmp.eq.s32.totalorder %s27, 1
    %p179 = por %p177, %p178
    %p181 = scmp.ne.s32.totalorder %s166, %s180
    %p182 = scmp.eq.s32.totalorder %s27, 0
    %p183 = por %p181, %p182
    %s185 = sadd.s32 %s184, 1
    %p188 = scmp.eq.s32.totalorder %s21, 1
    %p189 = scmp.ne.s32.totalorder %s184, %s186
    %p190 = scmp.eq.s32.totalorder %s21, 0
    %p191 = por %p189, %p190
    %p192 = scmp.ne.s32.totalorder %s184, %s186
    %p193 = scmp.eq.s32.totalorder %s26, 1
    %p194 = por %p192, %p193
    %p195 = scmp.ne.s32.totalorder %s186, %s187
    %p196 = scmp.eq.s32.totalorder %s26, 0
    %p197 = por %p195, %p196
    %p198 = scmp.ne.s32.totalorder %s186, %s187
    %p199 = scmp.eq.s32.totalorder %s27, 1
    %p200 = por %p198, %p199
    %p202 = scmp.ne.s32.totalorder %s187, %s201
    %p203 = scmp.eq.s32.totalorder %s27, 0
    %p204 = por %p202, %p203
    %s206 = sadd.s32 %s205, 1
    %p209 = scmp.eq.s32.totalorder %s21, 1
    %p210 = scmp.ne.s32.totalorder %s205, %s207
    %p211 = scmp.eq.s32.totalorder %s21, 0
    %p212 = por %p210, %p211
    %p213 = scmp.ne.s32.totalorder %s205, %s207
    %p214 = scmp.eq.s32.totalorder %s26, 1
    %p215 = por %p213, %p214
    %p216 = scmp.ne.s32.totalorder %s207, %s208
    %p217 = scmp.eq.s32.totalorder %s26, 0
    %p218 = por %p216, %p217
    %p219 = scmp.ne.s32.totalorder %s207, %s208
    %p220 = scmp.eq.s32.totalorder %s27, 1
    %p221 = por %p219, %p220
    %p223 = scmp.ne.s32.totalorder %s208, %s222
    %p224 = scmp.eq.s32.totalorder %s27, 0
    %p225 = por %p223, %p224
    %s227 = sadd.s32 %s226, 1
    %p230 = scmp.eq.s32.totalorder %s21, 1
    %p231 = scmp.ne.s32.totalorder %s226, %s228
    %p232 = scmp.eq.s32.totalorder %s21, 0
    %p233 = por %p231, %p232
    %p234 = scmp.ne.s32.totalorder %s226, %s228
    %p235 = scmp.eq.s32.totalorder %s26, 1
    %p236 = por %p234, %p235
    %p237 = scmp.ne.s32.totalorder %s228, %s229
    %p238 = scmp.eq.s32.totalorder %s26, 0
    %p239 = por %p237, %p238
    %p240 = scmp.ne.s32.totalorder %s228, %s229
    %p241 = scmp.eq.s32.totalorder %s27, 1
    %p242 = por %p240, %p241
    %p244 = scmp.ne.s32.totalorder %s229, %s243
    %p245 = scmp.eq.s32.totalorder %s27, 0
    %p246 = por %p244, %p245
    %s248 = sadd.s32 %s247, 1
    %p251 = scmp.eq.s32.totalorder %s21, 1
    %p252 = scmp.ne.s32.totalorder %s247, %s249
    %p253 = scmp.eq.s32.totalorder %s21, 0
    %p254 = por %p252, %p253
    %p255 = scmp.ne.s32.totalorder %s247, %s249
    %p256 = scmp.eq.s32.totalorder %s26, 1
    %p257 = por %p255, %p256
    %p258 = scmp.ne.s32.totalorder %s249, %s250
    %p259 = scmp.eq.s32.totalorder %s26, 0
    %p260 = por %p258, %p259
    %p261 = scmp.ne.s32.totalorder %s249, %s250
    %p262 = scmp.eq.s32.totalorder %s27, 1
    %p263 = por %p261, %p262
    %p265 = scmp.ne.s32.totalorder %s250, %s264
    %p266 = scmp.eq.s32.totalorder %s27, 0
    %p267 = por %p265, %p266
    %s269 = sadd.s32 %s268, 1
    %p272 = scmp.eq.s32.totalorder %s21, 1
    %p273 = scmp.ne.s32.totalorder %s268, %s270
    %p274 = scmp.eq.s32.totalorder %s21, 0
    %p275 = por %p273, %p274
    %p276 = scmp.ne.s32.totalorder %s268, %s270
    %p277 = scmp.eq.s32.totalorder %s26, 1
    %p278 = por %p276, %p277
    %p279 = scmp.ne.s32.totalorder %s270, %s271
    %p280 = scmp.eq.s32.totalorder %s26, 0
    %p281 = por %p279, %p280
    %p282 = scmp.ne.s32.totalorder %s270, %s271
    %p283 = scmp.eq.s32.totalorder %s27, 1
    %p284 = por %p282, %p283
    %p286 = scmp.ne.s32.totalorder %s271, %s285
    %p287 = scmp.eq.s32.totalorder %s27, 0
    %p288 = por %p286, %p287
    %s290 = sadd.s32 %s289, 1
    %p293 = scmp.eq.s32.totalorder %s21, 1
    %p294 = scmp.ne.s32.totalorder %s289, %s291
    %p295 = scmp.eq.s32.totalorder %s21, 0
    %p296 = por %p294, %p295
    %p297 = scmp.ne.s32.totalorder %s289, %s291
    %p298 = scmp.eq.s32.totalorder %s26, 1
    %p299 = por %p297, %p298
    %p300 = scmp.ne.s32.totalorder %s291, %s292
    %p301 = scmp.eq.s32.totalorder %s26, 0
    %p302 = por %p300, %p301
    %p303 = scmp.ne.s32.totalorder %s291, %s292
    %p304 = scmp.eq.s32.totalorder %s27, 1
    %p305 = por %p303, %p304
    %p307 = scmp.ne.s32.totalorder %s292, %s306
    %p308 = scmp.eq.s32.totalorder %s27, 0
    %p309 = por %p307, %p308
    %s311 = sadd.s32 %s310, 1
    %p314 = scmp.eq.s32.totalorder %s21, 1
    %p315 = scmp.ne.s32.totalorder %s310, %s312
    %p316 = scmp.eq.s32.totalorder %s21, 0
    %p317 = por %p315, %p316
    %p318 = scmp.ne.s32.totalorder %s310, %s312
    %p319 = scmp.eq.s32.totalorder %s26, 1
    %p320 = por %p318, %p319
    %p321 = scmp.ne.s32.totalorder %s312, %s313
    %p322 = scmp.eq.s32.totalorder %s26, 0
    %p323 = por %p321, %p322
    %p324 = scmp.ne.s32.totalorder %s312, %s313
    %p325 = scmp.eq.s32.totalorder %s27, 1
    %p326 = por %p324, %p325
    %p328 = scmp.ne.s32.totalorder %s313, %s327
    %p329 = scmp.eq.s32.totalorder %s27, 0
    %p330 = por %p328, %p329
    %s332 = sadd.s32 %s331, 1
    %p335 = scmp.eq.s32.totalorder %s21, 1
    %p336 = scmp.ne.s32.totalorder %s331, %s333
    %p337 = scmp.eq.s32.totalorder %s21, 0
    %p338 = por %p336, %p337
    %p339 = scmp.ne.s32.totalorder %s331, %s333
    %p340 = scmp.eq.s32.totalorder %s26, 1
    %p341 = por %p339, %p340
    %p342 = scmp.ne.s32.totalorder %s333, %s334
    %p343 = scmp.eq.s32.totalorder %s26, 0
    %p344 = por %p342, %p343
    %p345 = scmp.ne.s32.totalorder %s333, %s334
    %p346 = scmp.eq.s32.totalorder %s27, 1
    %p347 = por %p345, %p346
    %p349 = scmp.ne.s32.totalorder %s334, %s348
    %p350 = scmp.eq.s32.totalorder %s27, 0
    %p351 = por %p349, %p350
    %s353 = sadd.s32 %s352, 1
    %p356 = scmp.eq.s32.totalorder %s21, 1
    %p357 = scmp.ne.s32.totalorder %s352, %s354
    %p358 = scmp.eq.s32.totalorder %s21, 0
    %p359 = por %p357, %p358
    %p360 = scmp.ne.s32.totalorder %s352, %s354
    %p361 = scmp.eq.s32.totalorder %s26, 1
    %p362 = por %p360, %p361
    %p363 = scmp.ne.s32.totalorder %s354, %s355
    %p364 = scmp.eq.s32.totalorder %s26, 0
    %p365 = por %p363, %p364
    %p366 = scmp.ne.s32.totalorder %s354, %s355
    %p367 = scmp.eq.s32.totalorder %s27, 1
    %p368 = por %p366, %p367
    %p370 = scmp.ne.s32.totalorder %s355, %s369
    %p371 = scmp.eq.s32.totalorder %s27, 0
    %p372 = por %p370, %p371
    %s373 = ssub.s32 %s28, %s40
    %s374 = ssub.s32 %s29, %s36
    %s375 = sor.u32 %s373, %s374
    %p376 = scmp.eq.s32.totalorder %s375, 0
    %s378 = sadd.s32 %s377, 1
    %s379 = scalar_select %p376, %s377, %s378
    %p382 = pneg %p376
    %p383 = scmp.eq.s32.totalorder %s21, 1
    %p384 = por %p382, %p383
    %p385 = scmp.ne.s32.totalorder %s377, %s380
    %p386 = scmp.eq.s32.totalorder %s21, 0
    %p387 = por %p385, %p386
    %p388 = scmp.ne.s32.totalorder %s377, %s380
    %p389 = scmp.eq.s32.totalorder %s26, 1
    %p390 = por %p388, %p389
    %p391 = scmp.ne.s32.totalorder %s380, %s381
    %p392 = scmp.eq.s32.totalorder %s26, 0
    %p393 = por %p391, %p392
    %p394 = scmp.ne.s32.totalorder %s380, %s381
    %p395 = scmp.eq.s32.totalorder %s27, 1
    %p396 = por %p394, %p395
    %p398 = scmp.ne.s32.totalorder %s381, %s397
    %p399 = scmp.eq.s32.totalorder %s27, 0
    %p400 = por %p398, %p399
    %p401 = scmp.le.s32.totalorder 1, %s21
    %p402 = scmp.lt.s32.totalorder %s21, 3
    %p403 = pnand %p401, %p402
    %p404 = pneg %p403
    // Predicated region
    $region9: #{transformer_decoder_pallas.5} parent=5 // pred_check
      _
    $region10: #{transformer_decoder_pallas.5} parent=5 // pred_check_branch
      %406 = sbr.rel (%p403) target = $region12
    $region11: #{transformer_decoder_pallas.5} parent=5 // pred_region
      %s407 = ssub.s32 %s21, 1
      // Predicated region
      $region13: #{transformer_decoder_pallas.5} parent=11 // pred_check
        %p408 = pneg %p134
      $region14: #{transformer_decoder_pallas.5} parent=11 // pred_check_branch
        %410 = sbr.rel (%p408) target = $region16
      $region15: #{transformer_decoder_pallas.5} parent=11 // pred_region
        _
      $region16: #{transformer_decoder_pallas.5} parent=11 // pred_fallthru
        _
      // Predicated region
      $region17: #{transformer_decoder_pallas.5} parent=11 // pred_check
        %p411 = pneg %p155
      $region18: #{transformer_decoder_pallas.5} parent=11 // pred_check_branch
        %413 = sbr.rel (%p411) target = $region20
      $region19: #{transformer_decoder_pallas.5} parent=11 // pred_region
        _
      $region20: #{transformer_decoder_pallas.5} parent=11 // pred_fallthru
        _
      // Predicated region
      $region21: #{transformer_decoder_pallas.5} parent=11 // pred_check
        %p414 = pneg %p176
      $region22: #{transformer_decoder_pallas.5} parent=11 // pred_check_branch
        %416 = sbr.rel (%p414) target = $region24
      $region23: #{transformer_decoder_pallas.5} parent=11 // pred_region
        _
      $region24: #{transformer_decoder_pallas.5} parent=11 // pred_fallthru
        _
      // Predicated region
      $region25: #{transformer_decoder_pallas.5} parent=11 // pred_check
        %p417 = pneg %p197
      $region26: #{transformer_decoder_pallas.5} parent=11 // pred_check_branch
        %419 = sbr.rel (%p417) target = $region28
      $region27: #{transformer_decoder_pallas.5} parent=11 // pred_region
        _
      $region28: #{transformer_decoder_pallas.5} parent=11 // pred_fallthru
        _
      // Predicated region
      $region29: #{transformer_decoder_pallas.5} parent=11 // pred_check
        %p420 = pneg %p218
      $region30: #{transformer_decoder_pallas.5} parent=11 // pred_check_branch
        %422 = sbr.rel (%p420) target = $region32
      $region31: #{transformer_decoder_pallas.5} parent=11 // pred_region
        _
      $region32: #{transformer_decoder_pallas.5} parent=11 // pred_fallthru
        _
      // Predicated region
      $region33: #{transformer_decoder_pallas.5} parent=11 // pred_check
        %p423 = pneg %p239
      $region34: #{transformer_decoder_pallas.5} parent=11 // pred_check_branch
        %425 = sbr.rel (%p423) target = $region36
      $region35: #{transformer_decoder_pallas.5} parent=11 // pred_region
        _
      $region36: #{transformer_decoder_pallas.5} parent=11 // pred_fallthru
        _
      // Predicated region
      $region37: #{transformer_decoder_pallas.5} parent=11 // pred_check
        %p426 = pneg %p260
      $region38: #{transformer_decoder_pallas.5} parent=11 // pred_check_branch
        %428 = sbr.rel (%p426) target = $region40
      $region39: #{transformer_decoder_pallas.5} parent=11 // pred_region
        _
      $region40: #{transformer_decoder_pallas.5} parent=11 // pred_fallthru
        _
      // Predicated region
      $region41: #{transformer_decoder_pallas.5} parent=11 // pred_check
        %p429 = pneg %p281
      $region42: #{transformer_decoder_pallas.5} parent=11 // pred_check_branch
        %431 = sbr.rel (%p429) target = $region44
      $region43: #{transformer_decoder_pallas.5} parent=11 // pred_region
        _
      $region44: #{transformer_decoder_pallas.5} parent=11 // pred_fallthru
        _
      // Predicated region
      $region45: #{transformer_decoder_pallas.5} parent=11 // pred_check
        %p432 = pneg %p302
      $region46: #{transformer_decoder_pallas.5} parent=11 // pred_check_branch
        %434 = sbr.rel (%p432) target = $region48
      $region47: #{transformer_decoder_pallas.5} parent=11 // pred_region
        _
      $region48: #{transformer_decoder_pallas.5} parent=11 // pred_fallthru
        _
      // Predicated region
      $region49: #{transformer_decoder_pallas.5} parent=11 // pred_check
        %p435 = pneg %p323
      $region50: #{transformer_decoder_pallas.5} parent=11 // pred_check_branch
        %437 = sbr.rel (%p435) target = $region52
      $region51: #{transformer_decoder_pallas.5} parent=11 // pred_region
        _
      $region52: #{transformer_decoder_pallas.5} parent=11 // pred_fallthru
        _
      // Predicated region
      $region53: #{transformer_decoder_pallas.5} parent=11 // pred_check
        %p438 = pneg %p344
      $region54: #{transformer_decoder_pallas.5} parent=11 // pred_check_branch
        %440 = sbr.rel (%p438) target = $region56
      $region55: #{transformer_decoder_pallas.5} parent=11 // pred_region
        _
      $region56: #{transformer_decoder_pallas.5} parent=11 // pred_fallthru
        _
      // Predicated region
      $region57: #{transformer_decoder_pallas.5} parent=11 // pred_check
        %p441 = pneg %p365
      $region58: #{transformer_decoder_pallas.5} parent=11 // pred_check_branch
        %443 = sbr.rel (%p441) target = $region60
      $region59: #{transformer_decoder_pallas.5} parent=11 // pred_region
        _
      $region60: #{transformer_decoder_pallas.5} parent=11 // pred_fallthru
        _
    $region12: #{transformer_decoder_pallas.5} parent=5 // pred_fallthru
      _
    %p444 = scmp.lt.s32.totalorder %s21, 2
    // Predicated region
    $region61: #{transformer_decoder_pallas.5} parent=5 // pred_check
      %p445 = pneg %p444
    $region62: #{transformer_decoder_pallas.5} parent=5 // pred_check_branch
      %447 = sbr.rel (%p445) target = $region64
    $region63: #{transformer_decoder_pallas.5} parent=5 // pred_region
      // Predicated region
      $region65: #{transformer_decoder_pallas.5} parent=63 // pred_check
        %p448 = pneg %p55
      $region66: #{transformer_decoder_pallas.5} parent=63 // pred_check_branch
        %450 = sbr.rel (%p448) target = $region68
      $region67: #{transformer_decoder_pallas.5} parent=63 // pred_region
        %p451 = scmp.lt.s32.totalorder %s28, 1
        %s452 = scalar_select %p451, %s28, 1
        %p453 = scmp.lt.s32.totalorder %s29, 0
        %s454 = scalar_select %p453, %s29, 0
        %s455 = sadd.s32 %s454, %s452
        %s456 = smul.addr %s455, 8
        %s457 = scalar_lea.vmem %s0, %s456
      $region68: #{transformer_decoder_pallas.5} parent=63 // pred_fallthru
        _
      // Predicated region
      $region69: #{transformer_decoder_pallas.5} parent=63 // pred_check
        %p458 = pneg %p81
      $region70: #{transformer_decoder_pallas.5} parent=63 // pred_check_branch
        %460 = sbr.rel (%p458) target = $region72
      $region71: #{transformer_decoder_pallas.5} parent=63 // pred_region
        %p461 = scmp.lt.s32.totalorder %s28, 1
        %s462 = scalar_select %p461, %s28, 1
        %s463 = smul.addr %s462, 4
        %s464 = scalar_lea.vmem %s1, %s463
      $region72: #{transformer_decoder_pallas.5} parent=63 // pred_fallthru
        _
      // Predicated region
      $region73: #{transformer_decoder_pallas.5} parent=63 // pred_check
        %p465 = pneg %p107
      $region74: #{transformer_decoder_pallas.5} parent=63 // pred_check_branch
        %467 = sbr.rel (%p465) target = $region76
      $region75: #{transformer_decoder_pallas.5} parent=63 // pred_region
        %p468 = scmp.lt.s32.totalorder %s28, 1
        %s469 = scalar_select %p468, %s28, 1
        %s470 = smul.addr %s469, 4
        %s471 = scalar_lea.vmem %s2, %s470
      $region76: #{transformer_decoder_pallas.5} parent=63 // pred_fallthru
        _
    $region64: #{transformer_decoder_pallas.5} parent=5 // pred_fallthru
      _
    %p472 = scmp.le.s32.totalorder 1, %s21
    %p473 = scmp.lt.s32.totalorder %s21, 3
    %p474 = pnand %p472, %p473
    %p475 = pneg %p474
    // Predicated region
    $region77: #{transformer_decoder_pallas.5} parent=5 // pred_check
      _
    $region78: #{transformer_decoder_pallas.5} parent=5 // pred_check_branch
      %477 = sbr.rel (%p474) target = $region80
    $region79: #{transformer_decoder_pallas.5} parent=5 // pred_region
      %s478 = ssub.s32 %s21, 1
      %p479 = scmp.lt.s32.totalorder %s30, 1
      %s480 = scalar_select %p479, %s30, 1
      %p481 = scmp.lt.s32.totalorder %s31, 0
      %s482 = scalar_select %p481, %s31, 0
      %s483 = sadd.s32 %s482, %s480
      %s484 = smul.addr %s483, 8
      %s485 = scalar_lea.vmem %s0, %s484
      %p486 = pneg %p61
      %p487 = pneg %p58
      %p488 = scmp.lt.s32.totalorder %s30, 1
      %s489 = scalar_select %p488, %s30, 1
      %s490 = smul.addr %s489, 4
      %s491 = scalar_lea.vmem %s1, %s490
      %p492 = pneg %p87
      %p493 = pneg %p84
      %p494 = scmp.lt.s32.totalorder %s30, 1
      %s495 = scalar_select %p494, %s30, 1
      %s496 = smul.addr %s495, 4
      %s497 = scalar_lea.vmem %s2, %s496
      %p498 = pneg %p113
      %p499 = pneg %p110
      %p500 = pneg %p134
      %p501 = pneg %p131
      %p502 = pneg %p155
      %p503 = pneg %p152
      %p504 = pneg %p176
      %p505 = pneg %p173
      %p506 = pneg %p197
      %p507 = pneg %p194
      %p508 = pneg %p218
      %p509 = pneg %p215
      %p510 = pneg %p239
      %p511 = pneg %p236
      %p512 = pneg %p260
      %p513 = pneg %p257
      %p514 = pneg %p281
      %p515 = pneg %p278
      %p516 = pneg %p302
      %p517 = pneg %p299
      %p518 = pneg %p323
      %p519 = pneg %p320
      %p520 = pneg %p344
      %p521 = pneg %p341
      %p522 = pneg %p365
      %p523 = pneg %p362
      %p524 = pneg %p393
      %p525 = pneg %p390
      %p526 = scmp.lt.s32.totalorder %s30, 1
      %s527 = scalar_select %p526, %s30, 1
      %p528 = scmp.lt.s32.totalorder %s31, 0
      %s529 = scalar_select %p528, %s31, 0
      %s530 = sadd.s32 %s529, %s527
      %s531 = smul.addr %s530, 8
      %s532 = scalar_lea.vmem %s15, %s531
      %p533 = scmp.lt.s32.totalorder %s30, 1
      %s534 = scalar_select %p533, %s30, 1
      %p535 = scmp.lt.s32.totalorder %s31, 0
      %s536 = scalar_select %p535, %s31, 0
      %s537 = sadd.s32 %s536, %s534
      %s538 = smul.addr %s537, 8
      %s539 = scalar_lea.vmem %s0, %s538
      %p540 = scmp.lt.s32.totalorder %s30, 1
      %s541 = scalar_select %p540, %s30, 1
      %s542 = smul.addr %s541, 4
      %s543 = scalar_lea.vmem %s1, %s542
      %p544 = scmp.lt.s32.totalorder %s30, 1
      %s545 = scalar_select %p544, %s30, 1
      %s546 = smul.addr %s545, 4
      %s547 = scalar_lea.vmem %s2, %s546
      %p548 = scmp.lt.s32.totalorder %s30, 1
      %s549 = scalar_select %p548, %s30, 1
      %p550 = scmp.lt.s32.totalorder %s31, 0
      %s551 = scalar_select %p550, %s31, 0
      %s552 = sadd.s32 %s551, %s549
      %s553 = smul.addr %s552, 8
      %s554 = scalar_lea.vmem %s15, %s553
      %v556 = vld [vmem:[%s539] sm:$0xff]
      %v557 = vpack.c.bf16 %v556, %v556
      %v558 = vld [vmem:[%s3] sm:$0xf]
      %v559 = vld [vmem:[%s3 + $0x4] sm:$0xf]
      %v560 = vld [vmem:[%s3 + $0x8] sm:$0xf]
      %v561 = vld [vmem:[%s3 + $0xc] sm:$0xf]
      %v562 = vld [vmem:[%s4] sm:$0x1]
      %v564 = vlaneseq
      %v565 = vshrl.u32 %v564, 7
      %v566 = vsub.s32 0, %v565
      %v567 = vrot.slane %v562, %v566
      %v573 = vunpack.c.l.b16 %v558
      %v574 = vunpack.c.l.b16 %v559
      %v575 = vunpack.c.l.b16 %v560
      %v576 = vunpack.c.l.b16 %v561
      %v577 = vpack.c.b16 %v574, %v573
      %v578 = vpack.c.b16 %v576, %v575
      %vm581 = vcmask 261120
      %v583 = vsel %vm581, %v557, 0
      %585 = vmatprep.subr.bf16.mxu0 0
      %586 = vmatpush1.bf16.msra.mxu0 %v577
      %587 = vmatprep.subr.bf16.mxu0 0
      %588 = vmatpush1.bf16.msra.mxu0 %v578
      %589 = vmatprep.subr.bf16.mxu0 0
      %590 = vmatpush1.bf16.msra.mxu0 0
      %591 = vmatprep.subr.bf16.mxu0 0
      %592 = vmatpush1.bf16.msra.mxu0 0
      %593 = vmatprep.subr.bf16.mxu0 0
      %594 = vmatpush1.bf16.msra.mxu0 0
      %595 = vmatprep.subr.bf16.mxu0 0
      %596 = vmatpush1.bf16.msra.mxu0 0
      %597 = vmatprep.subr.bf16.mxu0 0
      %598 = vmatpush1.bf16.msra.mxu0 0
      %599 = vmatprep.subr.bf16.mxu0 0
      %600 = vmatpush1.bf16.msra.mxu0 0
      %601 = vmatprep.subr.bf16.mxu0 0
      %602 = vmatpush1.bf16.msra.mxu0 0
      %603 = vmatprep.subr.bf16.mxu0 0
      %604 = vmatpush1.bf16.msra.mxu0 0
      %605 = vmatprep.subr.bf16.mxu0 0
      %606 = vmatpush1.bf16.msra.mxu0 0
      %607 = vmatprep.subr.bf16.mxu0 0
      %608 = vmatpush1.bf16.msra.mxu0 0
      %609 = vmatprep.subr.bf16.mxu0 0
      %610 = vmatpush1.bf16.msra.mxu0 0
      %611 = vmatprep.subr.bf16.mxu0 0
      %612 = vmatpush1.bf16.msra.mxu0 0
      %613 = vmatprep.subr.bf16.mxu0 0
      %614 = vmatpush1.bf16.msra.mxu0 0
      %615 = vmatprep.subr.bf16.mxu0 0
      %616 = vmatpush1.bf16.msra.mxu0 0
      %617 = vmatprep.mubr.bf16.mxu0 0
      %618 = vmatmul.mubr.bf16.gmra.mrb[0].mxu0 %v583
      %v619 = vpop.f32.mrb[0].mxu0
      %v620 = vadd.f32 %v567, %v619
      %v621 = vpop.f32.mrb[0].mxu0
      %v622 = vpop.f32.mrb[0].mxu0
      %v623 = vpop.f32.mrb[0].mxu0
      %624 = vdwg.mxu0
      %v625 = vmul.f32 %v620, 0.35355338
      %v626 = vpack.c.bf16 %v625, %v625
      %v627 = vld [vmem:[%s543] sm:$0xf]
      %v628 = vld [vmem:[%s547] sm:$0xf]
      %s629 = smul.u32 %s31, 8
      %v630 = vlaneseq
      %v631 = vshrl.u32 %v630, 7
      %v632 = vstv %s629
      %v633 = vadd.s32 %v632, %v631
      %v634 = vlaneseq
      %v635 = vand.u32 %v634, 127
      %vm636 = vcmp.ge.s32.totalorder %v633, %v635
      %v637 = vsel %vm636, 0.0, -1e+09
      %vm638 = vcmask 64512
      %v640 = vsel %vm638, %v626, 0
      %v643 = vsel %vm638, %v627, 0
      %645 = vmatprep.subr.bf16.mxu0 0
      %646 = vmatpush1.bf16.xpose.msra.mxu0 %v643
      %647 = vmatprep.subr.bf16.mxu0 0
      %648 = vmatpush1.bf16.xpose.msra.mxu0 0
      %649 = vmatprep.subr.bf16.mxu0 0
      %650 = vmatpush1.bf16.xpose.msra.mxu0 0
      %651 = vmatprep.subr.bf16.mxu0 0
      %652 = vmatpush1.bf16.xpose.msra.mxu0 0
      %653 = vmatprep.subr.bf16.mxu0 0
      %654 = vmatpush1.bf16.xpose.msra.mxu0 0
      %655 = vmatprep.subr.bf16.mxu0 0
      %656 = vmatpush1.bf16.xpose.msra.mxu0 0
      %657 = vmatprep.subr.bf16.mxu0 0
      %658 = vmatpush1.bf16.xpose.msra.mxu0 0
      %659 = vmatprep.subr.bf16.mxu0 0
      %660 = vmatpush1.bf16.xpose.msra.mxu0 0
      %661 = vmatprep.subr.bf16.mxu0 0
      %662 = vmatpush1.bf16.xpose.msra.mxu0 0
      %663 = vmatprep.subr.bf16.mxu0 0
      %664 = vmatpush1.bf16.xpose.msra.mxu0 0
      %665 = vmatprep.subr.bf16.mxu0 0
      %666 = vmatpush1.bf16.xpose.msra.mxu0 0
      %667 = vmatprep.subr.bf16.mxu0 0
      %668 = vmatpush1.bf16.xpose.msra.mxu0 0
      %669 = vmatprep.subr.bf16.mxu0 0
      %670 = vmatpush1.bf16.xpose.msra.mxu0 0
      %671 = vmatprep.subr.bf16.mxu0 0
      %672 = vmatpush1.bf16.xpose.msra.mxu0 0
      %673 = vmatprep.subr.bf16.mxu0 0
      %674 = vmatpush1.bf16.xpose.msra.mxu0 0
      %675 = vmatprep.subr.bf16.mxu0 0
      %676 = vmatpush1.bf16.xpose.msra.mxu0 0
      %677 = vmatprep.mubr.bf16.mxu0 0
      %678 = vmatmul.mubr.bf16.gmra.mrb[0].mxu0 %v640
      %v679 = vpop.f32.mrb[0].mxu0
      %v680 = vadd.f32 %v637, %v679
      %v681 = vpop.f32.mrb[0].mxu0
      %v682 = vpop.f32.mrb[0].mxu0
      %v683 = vpop.f32.mrb[0].mxu0
      %684 = vdwg.mxu0
      %v685 = vsel %vm638, %v680, -inf
      %686 = vmax.xlane.f32.xlu0 %v685
      %v687 = vpop.xlane.xlu0 %686
      %v688 = vsub.f32 %v680, %v687
      %v689 = vmul.f32 %v688, 1.442695
      %v690 = vpow.pop %v689
      %v691 = vsel %vm638, %v690, 0.0
      %692 = vadd.xlane.f32.xlu0 %v691
      %v693 = vpop.xlane.xlu0 %692
      %v694 = vrcp.pop %v693
      %v695 = vmul.f32 %v690, %v694
      %v696 = vpack.c.bf16 %v695, %v695
      %v698 = vsel %vm638, %v696, 0
      %vm700 = vcmask 1043456
      %v702 = vsel %vm700, %v628, 0
      %704 = vmatprep.subr.bf16.mxu0 0
      %705 = vmatpush1.bf16.msra.mxu0 %v702
      %706 = vmatprep.subr.bf16.mxu0 0
      %707 = vmatpush1.bf16.msra.mxu0 0
      %708 = vmatprep.subr.bf16.mxu0 0
      %709 = vmatpush1.bf16.msra.mxu0 0
      %710 = vmatprep.subr.bf16.mxu0 0
      %711 = vmatpush1.bf16.msra.mxu0 0
      %712 = vmatprep.subr.bf16.mxu0 0
      %713 = vmatpush1.bf16.msra.mxu0 0
      %714 = vmatprep.subr.bf16.mxu0 0
      %715 = vmatpush1.bf16.msra.mxu0 0
      %716 = vmatprep.subr.bf16.mxu0 0
      %717 = vmatpush1.bf16.msra.mxu0 0
      %718 = vmatprep.subr.bf16.mxu0 0
      %719 = vmatpush1.bf16.msra.mxu0 0
      %720 = vmatprep.subr.bf16.mxu0 0
      %721 = vmatpush1.bf16.msra.mxu0 0
      %722 = vmatprep.subr.bf16.mxu0 0
      %723 = vmatpush1.bf16.msra.mxu0 0
      %724 = vmatprep.subr.bf16.mxu0 0
      %725 = vmatpush1.bf16.msra.mxu0 0
      %726 = vmatprep.subr.bf16.mxu0 0
      %727 = vmatpush1.bf16.msra.mxu0 0
      %728 = vmatprep.subr.bf16.mxu0 0
      %729 = vmatpush1.bf16.msra.mxu0 0
      %730 = vmatprep.subr.bf16.mxu0 0
      %731 = vmatpush1.bf16.msra.mxu0 0
      %732 = vmatprep.subr.bf16.mxu0 0
      %733 = vmatpush1.bf16.msra.mxu0 0
      %734 = vmatprep.subr.bf16.mxu0 0
      %735 = vmatpush1.bf16.msra.mxu0 0
      %736 = vmatprep.mubr.bf16.mxu0 0
      %737 = vmatmul.mubr.bf16.gmra.mrb[0].mxu0 %v698
      %v738 = vpop.f32.mrb[0].mxu0
      %v739 = vadd.f32 0.0, %v738
      %v740 = vpop.f32.mrb[0].mxu0
      %v741 = vpop.f32.mrb[0].mxu0
      %v742 = vpop.f32.mrb[0].mxu0
      %743 = vdwg.mxu0
      %v744 = vpack.c.bf16 %v739, %v739
      %vm745 = vcmask 60416
      %746 = vst.msk [vmem:[#allocation2] sm:$0xf] %vm745, %v744
      %748 = vrot.lane.b32.xlu0 %v626, 120
      %v749 = vpop.permute.xlu0 %748
      %v751 = vunpack.c.l.b16 %v627
      %v752 = vpack.c.b16 %v751, %v751
      %753 = vrot.lane.b32.xlu0 %v752, 120
      %v754 = vpop.permute.xlu0 %753
      %v756 = vsel %vm638, %v749, 0
      %v759 = vsel %vm638, %v754, 0
      %761 = vmatprep.subr.bf16.mxu0 0
      %762 = vmatpush1.bf16.xpose.msra.mxu0 %v759
      %763 = vmatprep.subr.bf16.mxu0 0
      %764 = vmatpush1.bf16.xpose.msra.mxu0 0
      %765 = vmatprep.subr.bf16.mxu0 0
      %766 = vmatpush1.bf16.xpose.msra.mxu0 0
      %767 = vmatprep.subr.bf16.mxu0 0
      %768 = vmatpush1.bf16.xpose.msra.mxu0 0
      %769 = vmatprep.subr.bf16.mxu0 0
      %770 = vmatpush1.bf16.xpose.msra.mxu0 0
      %771 = vmatprep.subr.bf16.mxu0 0
      %772 = vmatpush1.bf16.xpose.msra.mxu0 0
      %773 = vmatprep.subr.bf16.mxu0 0
      %774 = vmatpush1.bf16.xpose.msra.mxu0 0
      %775 = vmatprep.subr.bf16.mxu0 0
      %776 = vmatpush1.bf16.xpose.msra.mxu0 0
      %777 = vmatprep.subr.bf16.mxu0 0
      %778 = vmatpush1.bf16.xpose.msra.mxu0 0
      %779 = vmatprep.subr.bf16.mxu0 0
      %780 = vmatpush1.bf16.xpose.msra.mxu0 0
      %781 = vmatprep.subr.bf16.mxu0 0
      %782 = vmatpush1.bf16.xpose.msra.mxu0 0
      %783 = vmatprep.subr.bf16.mxu0 0
      %784 = vmatpush1.bf16.xpose.msra.mxu0 0
      %785 = vmatprep.subr.bf16.mxu0 0
      %786 = vmatpush1.bf16.xpose.msra.mxu0 0
      %787 = vmatprep.subr.bf16.mxu0 0
      %788 = vmatpush1.bf16.xpose.msra.mxu0 0
      %789 = vmatprep.subr.bf16.mxu0 0
      %790 = vmatpush1.bf16.xpose.msra.mxu0 0
      %791 = vmatprep.subr.bf16.mxu0 0
      %792 = vmatpush1.bf16.xpose.msra.mxu0 0
      %793 = vmatprep.mubr.bf16.mxu0 0
      %794 = vmatmul.mubr.bf16.gmra.mrb[0].mxu0 %v756
      %v795 = vpop.f32.mrb[0].mxu0
      %v796 = vadd.f32 %v637, %v795
      %v797 = vpop.f32.mrb[0].mxu0
      %v798 = vpop.f32.mrb[0].mxu0
      %v799 = vpop.f32.mrb[0].mxu0
      %800 = vdwg.mxu0
      %v801 = vsel %vm638, %v796, -inf
      %802 = vmax.xlane.f32.xlu0 %v801
      %v803 = vpop.xlane.xlu0 %802
      %v804 = vsub.f32 %v796, %v803
      %v805 = vmul.f32 %v804, 1.442695
      %v806 = vpow.pop %v805
      %v807 = vsel %vm638, %v806, 0.0
      %808 = vadd.xlane.f32.xlu0 %v807
      %v809 = vpop.xlane.xlu0 %808
      %v810 = vrcp.pop %v809
      %v811 = vmul.f32 %v806, %v810
      %v812 = vpack.c.bf16 %v811, %v811
      %v814 = vunpack.c.l.b16 %v628
      %v815 = vpack.c.b16 %v814, %v814
      %816 = vrot.lane.b32.xlu0 %v815, 120
      %v817 = vpop.permute.xlu0 %816
      %v819 = vsel %vm638, %v812, 0
      %v822 = vsel %vm700, %v817, 0
      %824 = vmatprep.subr.bf16.mxu0 0
      %825 = vmatpush1.bf16.msra.mxu0 %v822
      %826 = vmatprep.subr.bf16.mxu0 0
      %827 = vmatpush1.bf16.msra.mxu0 0
      %828 = vmatprep.subr.bf16.mxu0 0
      %829 = vmatpush1.bf16.msra.mxu0 0
      %830 = vmatprep.subr.bf16.mxu0 0
      %831 = vmatpush1.bf16.msra.mxu0 0
      %832 = vmatprep.subr.bf16.mxu0 0
      %833 = vmatpush1.bf16.msra.mxu0 0
      %834 = vmatprep.subr.bf16.mxu0 0
      %835 = vmatpush1.bf16.msra.mxu0 0
      %836 = vmatprep.subr.bf16.mxu0 0
      %837 = vmatpush1.bf16.msra.mxu0 0
      %838 = vmatprep.subr.bf16.mxu0 0
      %839 = vmatpush1.bf16.msra.mxu0 0
      %840 = vmatprep.subr.bf16.mxu0 0
      %841 = vmatpush1.bf16.msra.mxu0 0
      %842 = vmatprep.subr.bf16.mxu0 0
      %843 = vmatpush1.bf16.msra.mxu0 0
      %844 = vmatprep.subr.bf16.mxu0 0
      %845 = vmatpush1.bf16.msra.mxu0 0
      %846 = vmatprep.subr.bf16.mxu0 0
      %847 = vmatpush1.bf16.msra.mxu0 0
      %848 = vmatprep.subr.bf16.mxu0 0
      %849 = vmatpush1.bf16.msra.mxu0 0
      %850 = vmatprep.subr.bf16.mxu0 0
      %851 = vmatpush1.bf16.msra.mxu0 0
      %852 = vmatprep.subr.bf16.mxu0 0
      %853 = vmatpush1.bf16.msra.mxu0 0
      %854 = vmatprep.subr.bf16.mxu0 0
      %855 = vmatpush1.bf16.msra.mxu0 0
      %856 = vmatprep.mubr.bf16.mxu0 0
      %857 = vmatmul.mubr.bf16.gmra.mrb[0].mxu0 %v819
      %v858 = vpop.f32.mrb[0].mxu0
      %v859 = vadd.f32 0.0, %v858
      %v860 = vpop.f32.mrb[0].mxu0
      %v861 = vpop.f32.mrb[0].mxu0
      %v862 = vpop.f32.mrb[0].mxu0
      %863 = vdwg.mxu0
      %v864 = vpack.c.bf16 %v859, %v859
      %v866 = vunpack.c.l.b16 %v864
      %v867 = vpack.c.b16 %v866, %v866
      %868 = vrot.lane.b32.xlu0 %v867, 8
      %v869 = vpop.permute.xlu0 %868
      %vm871 = vcmask 126016
      %872 = vst.msk [vmem:[#allocation2] sm:$0xf] %vm871, %v869
      %873 = vrot.lane.b32.xlu0 %v626, 112
      %v874 = vpop.permute.xlu0 %873
      %875 = vrot.lane.b32.xlu0 %v752, 112
      %v876 = vpop.permute.xlu0 %875
      %v878 = vsel %vm638, %v874, 0
      %v881 = vsel %vm638, %v876, 0
      %883 = vmatprep.subr.bf16.mxu0 0
      %884 = vmatpush1.bf16.xpose.msra.mxu0 %v881
      %885 = vmatprep.subr.bf16.mxu0 0
      %886 = vmatpush1.bf16.xpose.msra.mxu0 0
      %887 = vmatprep.subr.bf16.mxu0 0
      %888 = vmatpush1.bf16.xpose.msra.mxu0 0
      %889 = vmatprep.subr.bf16.mxu0 0
      %890 = vmatpush1.bf16.xpose.msra.mxu0 0
      %891 = vmatprep.subr.bf16.mxu0 0
      %892 = vmatpush1.bf16.xpose.msra.mxu0 0
      %893 = vmatprep.subr.bf16.mxu0 0
      %894 = vmatpush1.bf16.xpose.msra.mxu0 0
      %895 = vmatprep.subr.bf16.mxu0 0
      %896 = vmatpush1.bf16.xpose.msra.mxu0 0
      %897 = vmatprep.subr.bf16.mxu0 0
      %898 = vmatpush1.bf16.xpose.msra.mxu0 0
      %899 = vmatprep.subr.bf16.mxu0 0
      %900 = vmatpush1.bf16.xpose.msra.mxu0 0
      %901 = vmatprep.subr.bf16.mxu0 0
      %902 = vmatpush1.bf16.xpose.msra.mxu0 0
      %903 = vmatprep.subr.bf16.mxu0 0
      %904 = vmatpush1.bf16.xpose.msra.mxu0 0
      %905 = vmatprep.subr.bf16.mxu0 0
      %906 = vmatpush1.bf16.xpose.msra.mxu0 0
      %907 = vmatprep.subr.bf16.mxu0 0
      %908 = vmatpush1.bf16.xpose.msra.mxu0 0
      %909 = vmatprep.subr.bf16.mxu0 0
      %910 = vmatpush1.bf16.xpose.msra.mxu0 0
      %911 = vmatprep.subr.bf16.mxu0 0
      %912 = vmatpush1.bf16.xpose.msra.mxu0 0
      %913 = vmatprep.subr.bf16.mxu0 0
      %914 = vmatpush1.bf16.xpose.msra.mxu0 0
      %915 = vmatprep.mubr.bf16.mxu0 0
      %916 = vmatmul.mubr.bf16.gmra.mrb[0].mxu0 %v878
      %v917 = vpop.f32.mrb[0].mxu0
      %v918 = vadd.f32 %v637, %v917
      %v919 = vpop.f32.mrb[0].mxu0
      %v920 = vpop.f32.mrb[0].mxu0
      %v921 = vpop.f32.mrb[0].mxu0
      %922 = vdwg.mxu0
      %v923 = vsel %vm638, %v918, -inf
      %924 = vmax.xlane.f32.xlu0 %v923
      %v925 = vpop.xlane.xlu0 %924
      %v926 = vsub.f32 %v918, %v925
      %v927 = vmul.f32 %v926, 1.442695
      %v928 = vpow.pop %v927
      %v929 = vsel %vm638, %v928, 0.0
      %930 = vadd.xlane.f32.xlu0 %v929
      %v931 = vpop.xlane.xlu0 %930
      %v932 = vrcp.pop %v931
      %v933 = vmul.f32 %v928, %v932
      %v934 = vpack.c.bf16 %v933, %v933
      %935 = vrot.lane.b32.xlu0 %v815, 112
      %v936 = vpop.permute.xlu0 %935
      %v938 = vsel %vm638, %v934, 0
      %v941 = vsel %vm700, %v936, 0
      %943 = vmatprep.subr.bf16.mxu0 0
      %944 = vmatpush1.bf16.msra.mxu0 %v941
      %945 = vmatprep.subr.bf16.mxu0 0
      %946 = vmatpush1.bf16.msra.mxu0 0
      %947 = vmatprep.subr.bf16.mxu0 0
      %948 = vmatpush1.bf16.msra.mxu0 0
      %949 = vmatprep.subr.bf16.mxu0 0
      %950 = vmatpush1.bf16.msra.mxu0 0
      %951 = vmatprep.subr.bf16.mxu0 0
      %952 = vmatpush1.bf16.msra.mxu0 0
      %953 = vmatprep.subr.bf16.mxu0 0
      %954 = vmatpush1.bf16.msra.mxu0 0
      %955 = vmatprep.subr.bf16.mxu0 0
      %956 = vmatpush1.bf16.msra.mxu0 0
      %957 = vmatprep.subr.bf16.mxu0 0
      %958 = vmatpush1.bf16.msra.mxu0 0
      %959 = vmatprep.subr.bf16.mxu0 0
      %960 = vmatpush1.bf16.msra.mxu0 0
      %961 = vmatprep.subr.bf16.mxu0 0
      %962 = vmatpush1.bf16.msra.mxu0 0
      %963 = vmatprep.subr.bf16.mxu0 0
      %964 = vmatpush1.bf16.msra.mxu0 0
      %965 = vmatprep.subr.bf16.mxu0 0
      %966 = vmatpush1.bf16.msra.mxu0 0
      %967 = vmatprep.subr.bf16.mxu0 0
      %968 = vmatpush1.bf16.msra.mxu0 0
      %969 = vmatprep.subr.bf16.mxu0 0
      %970 = vmatpush1.bf16.msra.mxu0 0
      %971 = vmatprep.subr.bf16.mxu0 0
      %972 = vmatpush1.bf16.msra.mxu0 0
      %973 = vmatprep.subr.bf16.mxu0 0
      %974 = vmatpush1.bf16.msra.mxu0 0
      %975 = vmatprep.mubr.bf16.mxu0 0
      %976 = vmatmul.mubr.bf16.gmra.mrb[0].mxu0 %v938
      %v977 = vpop.f32.mrb[0].mxu0
      %v978 = vadd.f32 0.0, %v977
      %v979 = vpop.f32.mrb[0].mxu0
      %v980 = vpop.f32.mrb[0].mxu0
      %v981 = vpop.f32.mrb[0].mxu0
      %982 = vdwg.mxu0
      %v983 = vpack.c.bf16 %v978, %v978
      %v985 = vunpack.c.l.b16 %v983
      %v986 = vpack.c.b16 %v985, %v985
      %987 = vrot.lane.b32.xlu0 %v986, 16
      %v988 = vpop.permute.xlu0 %987
      %vm990 = vcmask 191616
      %991 = vst.msk [vmem:[#allocation2] sm:$0xf] %vm990, %v988
      %992 = vrot.lane.b32.xlu0 %v626, 104
      %v993 = vpop.permute.xlu0 %992
      %994 = vrot.lane.b32.xlu0 %v752, 104
      %v995 = vpop.permute.xlu0 %994
      %v997 = vsel %vm638, %v993, 0
      %v1000 = vsel %vm638, %v995, 0
      %1002 = vmatprep.subr.bf16.mxu0 0
      %1003 = vmatpush1.bf16.xpose.msra.mxu0 %v1000
      %1004 = vmatprep.subr.bf16.mxu0 0
      %1005 = vmatpush1.bf16.xpose.msra.mxu0 0
      %1006 = vmatprep.subr.bf16.mxu0 0
      %1007 = vmatpush1.bf16.xpose.msra.mxu0 0
      %1008 = vmatprep.subr.bf16.mxu0 0
      %1009 = vmatpush1.bf16.xpose.msra.mxu0 0
      %1010 = vmatprep.subr.bf16.mxu0 0
      %1011 = vmatpush1.bf16.xpose.msra.mxu0 0
      %1012 = vmatprep.subr.bf16.mxu0 0
      %1013 = vmatpush1.bf16.xpose.msra.mxu0 0
      %1014 = vmatprep.subr.bf16.mxu0 0
      %1015 = vmatpush1.bf16.xpose.msra.mxu0 0
      %1016 = vmatprep.subr.bf16.mxu0 0
      %1017 = vmatpush1.bf16.xpose.msra.mxu0 0
      %1018 = vmatprep.subr.bf16.mxu0 0
      %1019 = vmatpush1.bf16.xpose.msra.mxu0 0
      %1020 = vmatprep.subr.bf16.mxu0 0
      %1021 = vmatpush1.bf16.xpose.msra.mxu0 0
      %1022 = vmatprep.subr.bf16.mxu0 0
      %1023 = vmatpush1.bf16.xpose.msra.mxu0 0
      %1024 = vmatprep.subr.bf16.mxu0 0
      %1025 = vmatpush1.bf16.xpose.msra.mxu0 0
      %1026 = vmatprep.subr.bf16.mxu0 0
      %1027 = vmatpush1.bf16.xpose.msra.mxu0 0
      %1028 = vmatprep.subr.bf16.mxu0 0
      %1029 = vmatpush1.bf16.xpose.msra.mxu0 0
      %1030 = vmatprep.subr.bf16.mxu0 0
      %1031 = vmatpush1.bf16.xpose.msra.mxu0 0
      %1032 = vmatprep.subr.bf16.mxu0 0
      %1033 = vmatpush1.bf16.xpose.msra.mxu0 0
      %1034 = vmatprep.mubr.bf16.mxu0 0
      %1035 = vmatmul.mubr.bf16.gmra.mrb[0].mxu0 %v997
      %v1036 = vpop.f32.mrb[0].mxu0
      %v1037 = vadd.f32 %v637, %v1036
      %v1038 = vpop.f32.mrb[0].mxu0
      %v1039 = vpop.f32.mrb[0].mxu0
      %v1040 = vpop.f32.mrb[0].mxu0
      %1041 = vdwg.mxu0
      %v1042 = vsel %vm638, %v1037, -inf
      %1043 = vmax.xlane.f32.xlu0 %v1042
      %v1044 = vpop.xlane.xlu0 %1043
      %v1045 = vsub.f32 %v1037, %v1044
      %v1046 = vmul.f32 %v1045, 1.442695
      %v1047 = vpow.pop %v1046
      %v1048 = vsel %vm638, %v1047, 0.0
      %1049 = vadd.xlane.f32.xlu0 %v1048
      %v1050 = vpop.xlane.xlu0 %1049
      %v1051 = vrcp.pop %v1050
      %v1052 = vmul.f32 %v1047, %v1051
      %v1053 = vpack.c.bf16 %v1052, %v1052
      %1054 = vrot.lane.b32.xlu0 %v815, 104
      %v1055 = vpop.permute.xlu0 %1054
      %v1057 = vsel %vm638, %v1053, 0
      %v1060 = vsel %vm700, %v1055, 0
      %1062 = vmatprep.subr.bf16.mxu0 0
      %1063 = vmatpush1.bf16.msra.mxu0 %v1060
      %1064 = vmatprep.subr.bf16.mxu0 0
      %1065 = vmatpush1.bf16.msra.mxu0 0
      %1066 = vmatprep.subr.bf16.mxu0 0
      %1067 = vmatpush1.bf16.msra.mxu0 0
      %1068 = vmatprep.subr.bf16.mxu0 0
      %1069 = vmatpush1.bf16.msra.mxu0 0
      %1070 = vmatprep.subr.bf16.mxu0 0
      %1071 = vmatpush1.bf16.msra.mxu0 0
      %1072 = vmatprep.subr.bf16.mxu0 0
      %1073 = vmatpush1.bf16.msra.mxu0 0
      %1074 = vmatprep.subr.bf16.mxu0 0
      %1075 = vmatpush1.bf16.msra.mxu0 0
      %1076 = vmatprep.subr.bf16.mxu0 0
      %1077 = vmatpush1.bf16.msra.mxu0 0
      %1078 = vmatprep.subr.bf16.mxu0 0
      %1079 = vmatpush1.bf16.msra.mxu0 0
      %1080 = vmatprep.subr.bf16.mxu0 0
      %1081 = vmatpush1.bf16.msra.mxu0 0
      %1082 = vmatprep.subr.bf16.mxu0 0
      %1083 = vmatpush1.bf16.msra.mxu0 0
      %1084 = vmatprep.subr.bf16.mxu0 0
      %1085 = vmatpush1.bf16.msra.mxu0 0
      %1086 = vmatprep.subr.bf16.mxu0 0
      %1087 = vmatpush1.bf16.msra.mxu0 0
      %1088 = vmatprep.subr.bf16.mxu0 0
      %1089 = vmatpush1.bf16.msra.mxu0 0
      %1090 = vmatprep.subr.bf16.mxu0 0
      %1091 = vmatpush1.bf16.msra.mxu0 0
      %1092 = vmatprep.subr.bf16.mxu0 0
      %1093 = vmatpush1.bf16.msra.mxu0 0
      %1094 = vmatprep.mubr.bf16.mxu0 0
      %1095 = vmatmul.mubr.bf16.gmra.mrb[0].mxu0 %v1057
      %v1096 = vpop.f32.mrb[0].mxu0
      %v1097 = vadd.f32 0.0, %v1096
      %v1098 = vpop.f32.mrb[0].mxu0
      %v1099 = vpop.f32.mrb[0].mxu0
      %v1100 = vpop.f32.mrb[0].mxu0
      %1101 = vdwg.mxu0
      %v1102 = vpack.c.bf16 %v1097, %v1097
      %v1104 = vunpack.c.l.b16 %v1102
      %v1105 = vpack.c.b16 %v1104, %v1104
      %1106 = vrot.lane.b32.xlu0 %v1105, 24
      %v1107 = vpop.permute.xlu0 %1106
      %vm1109 = vcmask 257216
      %1110 = vst.msk [vmem:[#allocation2] sm:$0xf] %vm1109, %v1107
      %v1111 = vld [vmem:[#allocation2] sm:$0xf]
      %v1112 = vld [vmem:[%s5] sm:$0xf]
      %v1113 = vld [vmem:[%s5 + $0x4] sm:$0xf]
      %v1114 = vld [vmem:[%s5 + $0x8] sm:$0xf]
      %v1115 = vld [vmem:[%s5 + $0xc] sm:$0xf]
      %v1116 = vld [vmem:[%s6] sm:$0x1]
      %v1118 = vlaneseq
      %v1119 = vshrl.u32 %v1118, 7
      %v1120 = vsub.s32 0, %v1119
      %v1121 = vrot.slane %v1116, %v1120
      %v1127 = vunpack.c.l.b16 %v1112
      %v1128 = vunpack.c.l.b16 %v1113
      %v1129 = vunpack.c.l.b16 %v1114
      %v1130 = vunpack.c.l.b16 %v1115
      %v1131 = vpack.c.b16 %v1128, %v1127
      %v1132 = vpack.c.b16 %v1130, %v1129
      %v1136 = vsel %vm581, %v1111, 0
      %1138 = vmatprep.subr.bf16.mxu0 0
      %1139 = vmatpush1.bf16.msra.mxu0 %v1131
      %1140 = vmatprep.subr.bf16.mxu0 0
      %1141 = vmatpush1.bf16.msra.mxu0 %v1132
      %1142 = vmatprep.subr.bf16.mxu0 0
      %1143 = vmatpush1.bf16.msra.mxu0 0
      %1144 = vmatprep.subr.bf16.mxu0 0
      %1145 = vmatpush1.bf16.msra.mxu0 0
      %1146 = vmatprep.subr.bf16.mxu0 0
      %1147 = vmatpush1.bf16.msra.mxu0 0
      %1148 = vmatprep.subr.bf16.mxu0 0
      %1149 = vmatpush1.bf16.msra.mxu0 0
      %1150 = vmatprep.subr.bf16.mxu0 0
      %1151 = vmatpush1.bf16.msra.mxu0 0
      %1152 = vmatprep.subr.bf16.mxu0 0
      %1153 = vmatpush1.bf16.msra.mxu0 0
      %1154 = vmatprep.subr.bf16.mxu0 0
      %1155 = vmatpush1.bf16.msra.mxu0 0
      %1156 = vmatprep.subr.bf16.mxu0 0
      %1157 = vmatpush1.bf16.msra.mxu0 0
      %1158 = vmatprep.subr.bf16.mxu0 0
      %1159 = vmatpush1.bf16.msra.mxu0 0
      %1160 = vmatprep.subr.bf16.mxu0 0
      %1161 = vmatpush1.bf16.msra.mxu0 0
      %1162 = vmatprep.subr.bf16.mxu0 0
      %1163 = vmatpush1.bf16.msra.mxu0 0
      %1164 = vmatprep.subr.bf16.mxu0 0
      %1165 = vmatpush1.bf16.msra.mxu0 0
      %1166 = vmatprep.subr.bf16.mxu0 0
      %1167 = vmatpush1.bf16.msra.mxu0 0
      %1168 = vmatprep.subr.bf16.mxu0 0
      %1169 = vmatpush1.bf16.msra.mxu0 0
      %1170 = vmatprep.mubr.bf16.mxu0 0
      %1171 = vmatmul.mubr.bf16.gmra.mrb[0].mxu0 %v1136
      %v1172 = vpop.f32.mrb[0].mxu0
      %v1173 = vadd.f32 %v1121, %v1172
      %v1174 = vpop.f32.mrb[0].mxu0
      %v1175 = vpop.f32.mrb[0].mxu0
      %v1176 = vpop.f32.mrb[0].mxu0
      %1177 = vdwg.mxu0
      %v1178 = vld [vmem:[%s11] sm:$0x1]
      %v1179 = vld [vmem:[%s12] sm:$0x1]
      %v1180 = vsel %vm581, %v1173, 0.0
      %1181 = vadd.xlane.f32.xlu0 %v1180
      %v1182 = vpop.xlane.xlu0 %1181
      %v1183 = vrcp.pop 32.0
      %v1184 = vmul.f32 %v1182, %v1183
      %v1185 = vsub.f32 %v1173, %v1184
      %v1186 = vmul.f32 %v1185, %v1185
      %v1187 = vsel %vm581, %v1186, 0.0
      %1188 = vadd.xlane.f32.xlu0 %v1187
      %v1189 = vpop.xlane.xlu0 %1188
      %v1190 = vmul.f32 %v1189, %v1183
      %v1191 = vadd.f32 %v1190, 1e-05
      %v1192 = vrsqrt.pop %v1191
      %v1193 = vmul.f32 %v1185, %v1192
      %v1195 = vlaneseq
      %v1196 = vshrl.u32 %v1195, 7
      %v1197 = vsub.s32 0, %v1196
      %v1198 = vrot.slane %v1178, %v1197
      %v1200 = vmul.f32 %v1193, %v1198
      %v1202 = vlaneseq
      %v1203 = vshrl.u32 %v1202, 7
      %v1204 = vsub.s32 0, %v1203
      %v1205 = vrot.slane %v1179, %v1204
      %v1207 = vadd.f32 %v1200, %v1205
      %v1208 = vadd.f32 %v556, %v1207
      %v1209 = vpack.c.bf16 %v1208, %v1208
      %v1210 = vld [vmem:[%s7] sm:$0xf]
      %v1211 = vld [vmem:[%s7 + $0x4] sm:$0xf]
      %v1212 = vld [vmem:[%s7 + $0x8] sm:$0xf]
      %v1213 = vld [vmem:[%s7 + $0xc] sm:$0xf]
      %v1214 = vld [vmem:[%s8] sm:$0x1]
      %v1216 = vlaneseq
      %v1217 = vshrl.u32 %v1216, 7
      %v1218 = vsub.s32 0, %v1217
      %v1219 = vrot.slane %v1214, %v1218
      %v1225 = vunpack.c.l.b16 %v1210
      %v1226 = vunpack.c.l.b16 %v1211
      %v1227 = vunpack.c.l.b16 %v1212
      %v1228 = vunpack.c.l.b16 %v1213
      %v1229 = vpack.c.b16 %v1226, %v1225
      %v1230 = vpack.c.b16 %v1228, %v1227
      %v1234 = vsel %vm581, %v1209, 0
      %1236 = vmatprep.subr.bf16.mxu0 0
      %1237 = vmatpush1.bf16.msra.mxu0 %v1229
      %1238 = vmatprep.subr.bf16.mxu0 0
      %1239 = vmatpush1.bf16.msra.mxu0 %v1230
      %1240 = vmatprep.subr.bf16.mxu0 0
      %1241 = vmatpush1.bf16.msra.mxu0 0
      %1242 = vmatprep.subr.bf16.mxu0 0
      %1243 = vmatpush1.bf16.msra.mxu0 0
      %1244 = vmatprep.subr.bf16.mxu0 0
      %1245 = vmatpush1.bf16.msra.mxu0 0
      %1246 = vmatprep.subr.bf16.mxu0 0
      %1247 = vmatpush1.bf16.msra.mxu0 0
      %1248 = vmatprep.subr.bf16.mxu0 0
      %1249 = vmatpush1.bf16.msra.mxu0 0
      %1250 = vmatprep.subr.bf16.mxu0 0
      %1251 = vmatpush1.bf16.msra.mxu0 0
      %1252 = vmatprep.subr.bf16.mxu0 0
      %1253 = vmatpush1.bf16.msra.mxu0 0
      %1254 = vmatprep.subr.bf16.mxu0 0
      %1255 = vmatpush1.bf16.msra.mxu0 0
      %1256 = vmatprep.subr.bf16.mxu0 0
      %1257 = vmatpush1.bf16.msra.mxu0 0
      %1258 = vmatprep.subr.bf16.mxu0 0
      %1259 = vmatpush1.bf16.msra.mxu0 0
      %1260 = vmatprep.subr.bf16.mxu0 0
      %1261 = vmatpush1.bf16.msra.mxu0 0
      %1262 = vmatprep.subr.bf16.mxu0 0
      %1263 = vmatpush1.bf16.msra.mxu0 0
      %1264 = vmatprep.subr.bf16.mxu0 0
      %1265 = vmatpush1.bf16.msra.mxu0 0
      %1266 = vmatprep.subr.bf16.mxu0 0
      %1267 = vmatpush1.bf16.msra.mxu0 0
      %1268 = vmatprep.mubr.bf16.mxu0 0
      %1269 = vmatmul.mubr.bf16.gmra.mrb[0].mxu0 %v1234
      %v1270 = vpop.f32.mrb[0].mxu0
      %v1271 = vadd.f32 %v1219, %v1270
      %v1272 = vpop.f32.mrb[0].mxu0
      %v1273 = vpop.f32.mrb[0].mxu0
      %v1274 = vpop.f32.mrb[0].mxu0
      %1275 = vdwg.mxu0
      %v1276 = vmax.f32 %v1271, 0.0
      %v1277 = vpack.c.bf16 %v1276, %v1276
      %v1278 = vld [vmem:[%s9] sm:$0xf]
      %v1279 = vld [vmem:[%s9 + $0x4] sm:$0xf]
      %v1280 = vld [vmem:[%s9 + $0x8] sm:$0xf]
      %v1281 = vld [vmem:[%s9 + $0xc] sm:$0xf]
      %v1282 = vld [vmem:[%s9 + $0x10] sm:$0xf]
      %v1283 = vld [vmem:[%s9 + $0x14] sm:$0xf]
      %v1284 = vld [vmem:[%s9 + $0x18] sm:$0xf]
      %v1285 = vld [vmem:[%s9 + $0x1c] sm:$0xf]
      %v1286 = vld [vmem:[%s10] sm:$0x1]
      %v1288 = vlaneseq
      %v1289 = vshrl.u32 %v1288, 7
      %v1290 = vsub.s32 0, %v1289
      %v1291 = vrot.slane %v1286, %v1290
      %v1301 = vunpack.c.l.b16 %v1278
      %v1302 = vunpack.c.l.b16 %v1279
      %v1303 = vunpack.c.l.b16 %v1280
      %v1304 = vunpack.c.l.b16 %v1281
      %v1305 = vunpack.c.l.b16 %v1282
      %v1306 = vunpack.c.l.b16 %v1283
      %v1307 = vunpack.c.l.b16 %v1284
      %v1308 = vunpack.c.l.b16 %v1285
      %v1309 = vpack.c.b16 %v1302, %v1301
      %v1310 = vpack.c.b16 %v1304, %v1303
      %v1311 = vpack.c.b16 %v1306, %v1305
      %v1312 = vpack.c.b16 %v1308, %v1307
      %vm1317 = vcmask 523264
      %v1319 = vsel %vm1317, %v1277, 0
      %1321 = vmatprep.subr.bf16.mxu0 0
      %1322 = vmatpush1.bf16.msra.mxu0 %v1309
      %1323 = vmatprep.subr.bf16.mxu0 0
      %1324 = vmatpush1.bf16.msra.mxu0 %v1310
      %1325 = vmatprep.subr.bf16.mxu0 0
      %1326 = vmatpush1.bf16.msra.mxu0 %v1311
      %1327 = vmatprep.subr.bf16.mxu0 0
      %1328 = vmatpush1.bf16.msra.mxu0 %v1312
      %1329 = vmatprep.subr.bf16.mxu0 0
      %1330 = vmatpush1.bf16.msra.mxu0 0
      %1331 = vmatprep.subr.bf16.mxu0 0
      %1332 = vmatpush1.bf16.msra.mxu0 0
      %1333 = vmatprep.subr.bf16.mxu0 0
      %1334 = vmatpush1.bf16.msra.mxu0 0
      %1335 = vmatprep.subr.bf16.mxu0 0
      %1336 = vmatpush1.bf16.msra.mxu0 0
      %1337 = vmatprep.subr.bf16.mxu0 0
      %1338 = vmatpush1.bf16.msra.mxu0 0
      %1339 = vmatprep.subr.bf16.mxu0 0
      %1340 = vmatpush1.bf16.msra.mxu0 0
      %1341 = vmatprep.subr.bf16.mxu0 0
      %1342 = vmatpush1.bf16.msra.mxu0 0
      %1343 = vmatprep.subr.bf16.mxu0 0
      %1344 = vmatpush1.bf16.msra.mxu0 0
      %1345 = vmatprep.subr.bf16.mxu0 0
      %1346 = vmatpush1.bf16.msra.mxu0 0
      %1347 = vmatprep.subr.bf16.mxu0 0
      %1348 = vmatpush1.bf16.msra.mxu0 0
      %1349 = vmatprep.subr.bf16.mxu0 0
      %1350 = vmatpush1.bf16.msra.mxu0 0
      %1351 = vmatprep.subr.bf16.mxu0 0
      %1352 = vmatpush1.bf16.msra.mxu0 0
      %1353 = vmatprep.mubr.bf16.mxu0 0
      %1354 = vmatmul.mubr.bf16.gmra.mrb[0].mxu0 %v1319
      %v1355 = vpop.f32.mrb[0].mxu0
      %v1356 = vadd.f32 %v1291, %v1355
      %v1357 = vpop.f32.mrb[0].mxu0
      %v1358 = vpop.f32.mrb[0].mxu0
      %v1359 = vpop.f32.mrb[0].mxu0
      %1360 = vdwg.mxu0
      %v1361 = vld [vmem:[%s13] sm:$0x1]
      %v1362 = vld [vmem:[%s14] sm:$0x1]
      %v1363 = vsel %vm581, %v1356, 0.0
      %1364 = vadd.xlane.f32.xlu0 %v1363
      %v1365 = vpop.xlane.xlu0 %1364
      %v1366 = vmul.f32 %v1365, %v1183
      %v1367 = vsub.f32 %v1356, %v1366
      %v1368 = vmul.f32 %v1367, %v1367
      %v1369 = vsel %vm581, %v1368, 0.0
      %1370 = vadd.xlane.f32.xlu0 %v1369
      %v1371 = vpop.xlane.xlu0 %1370
      %v1372 = vmul.f32 %v1371, %v1183
      %v1373 = vadd.f32 %v1372, 1e-05
      %v1374 = vrsqrt.pop %v1373
      %v1375 = vmul.f32 %v1367, %v1374
      %v1377 = vlaneseq
      %v1378 = vshrl.u32 %v1377, 7
      %v1379 = vsub.s32 0, %v1378
      %v1380 = vrot.slane %v1361, %v1379
      %v1382 = vmul.f32 %v1375, %v1380
      %v1384 = vlaneseq
      %v1385 = vshrl.u32 %v1384, 7
      %v1386 = vsub.s32 0, %v1385
      %v1387 = vrot.slane %v1362, %v1386
      %v1389 = vadd.f32 %v1382, %v1387
      %v1390 = vadd.f32 %v1208, %v1389
      %1391 = vst.msk [vmem:[%s554] sm:$0xff] %vm581, %v1390
      %p1392 = scmp.lt.s32.totalorder %s30, 1
      %s1393 = scalar_select %p1392, %s30, 1
      %p1394 = scmp.lt.s32.totalorder %s31, 0
      %s1395 = scalar_select %p1394, %s31, 0
      %s1396 = sadd.s32 %s1395, %s1393
      %s1397 = smul.addr %s1396, 8
      %s1398 = scalar_lea.vmem %s15, %s1397
      // Predicated region
      $region81: #{transformer_decoder_pallas.5} parent=79 // pred_check
        %p1399 = pneg %p390
      $region82: #{transformer_decoder_pallas.5} parent=79 // pred_check_branch
        %1401 = sbr.rel (%p1399) target = $region84
      $region83: #{transformer_decoder_pallas.5} parent=79 // pred_region
        _
      $region84: #{transformer_decoder_pallas.5} parent=79 // pred_fallthru
        _
    $region80: #{transformer_decoder_pallas.5} parent=5 // pred_fallthru
      _
    %p1402 = scmp.le.s32.totalorder 2, %s21
    // Predicated region
    $region85: #{transformer_decoder_pallas.5} parent=5 // pred_check
      %p1403 = pneg %p1402
    $region86: #{transformer_decoder_pallas.5} parent=5 // pred_check_branch
      %1405 = sbr.rel (%p1403) target = $region88
    $region87: #{transformer_decoder_pallas.5} parent=5 // pred_region
      %s1406 = ssub.s32 %s21, 2
      // Predicated region
      $region89: #{transformer_decoder_pallas.5} parent=87 // pred_check
        %p1407 = pneg %p396
      $region90: #{transformer_decoder_pallas.5} parent=87 // pred_check_branch
        %1409 = sbr.rel (%p1407) target = $region92
      $region91: #{transformer_decoder_pallas.5} parent=87 // pred_region
        %p1410 = scmp.lt.s32.totalorder %s32, 1
        %s1411 = scalar_select %p1410, %s32, 1
        %p1412 = scmp.lt.s32.totalorder %s33, 0
        %s1413 = scalar_select %p1412, %s33, 0
        %s1414 = sadd.s32 %s1413, %s1411
        %s1415 = smul.addr %s1414, 8
        %s1416 = scalar_lea.vmem %s15, %s1415
      $region92: #{transformer_decoder_pallas.5} parent=87 // pred_fallthru
        _
    $region88: #{transformer_decoder_pallas.5} parent=5 // pred_fallthru
      _
  $region6: #{transformer_decoder_pallas.5} parent=0 // loop_footer
    %s25 = sadd.s32 1, %s21
  $region7: #{transformer_decoder_pallas.5} parent=0 // loop_footer_branch
    %20 = sbr.rel target = $region3
  $region8: #{transformer_decoder_pallas.5} parent=0 // loop_exit
    _

// kernel: transformer_decoder_pallas.7
$region0: #{transformer_decoder_pallas.7}
  #allocation0 [shape = 'u32[]', space=smem, size = 0x4, offset = 0x4, fixed_abs, tag = 'smem constant byte address 0x4 - core index']
  #allocation1 [shape = 'u32[144,128]{1,0:T(1,128)}', space=vmem, size = 0x12000, scoped, tag = 'internal scratch']
  #allocation2 [shape = 'bf16[8,32]{1,0:T(8,128)(2,1)}', space=vmem, size = 0x800, scoped, tag = 'scratch operand']
  %s0 = inlined_call_operand.hbm [shape: f32[2,8,32], index: 0, kind: input, shape index: {}, may-alias: {0,15}]
  %s1 = inlined_call_operand.vmem [shape: bf16[2,8,32], index: 1, kind: input, shape index: {}]
  %s2 = inlined_call_operand.vmem [shape: bf16[2,8,32], index: 2, kind: input, shape index: {}]
  %s3 = inlined_call_operand.vmem [shape: bf16[32,32], index: 3, kind: input, shape index: {}]
  %s4 = inlined_call_operand.vmem [shape: f32[1,32], index: 4, kind: input, shape index: {}]
  %s5 = inlined_call_operand.vmem [shape: bf16[32,32], index: 5, kind: input, shape index: {}]
  %s6 = inlined_call_operand.vmem [shape: f32[1,32], index: 6, kind: input, shape index: {}]
  %s7 = inlined_call_operand.vmem [shape: bf16[32,64], index: 7, kind: input, shape index: {}]
  %s8 = inlined_call_operand.vmem [shape: f32[1,64], index: 8, kind: input, shape index: {}]
  %s9 = inlined_call_operand.vmem [shape: bf16[64,32], index: 9, kind: input, shape index: {}]
  %s10 = inlined_call_operand.vmem [shape: f32[1,32], index: 10, kind: input, shape index: {}]
  %s11 = inlined_call_operand.vmem [shape: f32[1,32], index: 11, kind: input, shape index: {}]
  %s12 = inlined_call_operand.vmem [shape: f32[1,32], index: 12, kind: input, shape index: {}]
  %s13 = inlined_call_operand.vmem [shape: f32[1,32], index: 13, kind: input, shape index: {}]
  %s14 = inlined_call_operand.vmem [shape: f32[1,32], index: 14, kind: input, shape index: {}]
  %s15 = inlined_call_operand.hbm [shape: f32[2,8,32], index: 15, kind: output, shape index: {}, may-alias: {0,15}]
  %s16 = sld [smem:[#allocation0]]
  $region97: #{transformer_decoder_pallas.7} parent=0
    _
  %s18 = ssub.s32 1, %s16
  %s19 = scalar_select 0, %s18, %s16
  $region1: #{transformer_decoder_pallas.7} parent=0
    #allocation3 [shape = 'u8[8192]{0}', space=vmem, size = 0x2000, scoped, tag = 'input window, operand 0']
    #allocation4 [shape = 's32[2]{0}', space=sflag, size = 0x8, scoped, tag = 'scoped memory for transformer_decoder_pallas.7']
    #allocation5 [shape = 's32[2]{0}', space=sflag, size = 0x8, scoped, tag = 'scoped memory for transformer_decoder_pallas.7']
    #allocation6 [shape = 'u8[8192]{0}', space=vmem, size = 0x2000, scoped, tag = 'output window, operand 0']
    %20 = vsyncpa [#allocation4], 0
    %s21 = scalar_lea.sflag [#allocation4], 1
    %22 = vsyncpa %s21, 0
    %23 = vsyncpa [#allocation5], 0
    %s24 = scalar_lea.sflag [#allocation5], 1
    %25 = vsyncpa %s24, 0
    loop: start=0, step=1, limit=4
    $region2: #{transformer_decoder_pallas.7} parent=1 // loop_pre_header
      _
    $region3: #{transformer_decoder_pallas.7} parent=1 // loop_header
      %s27 = sphi 0, %s31
      %p28 = scmp.ge.s32.totalorder %s27, 4
      %s34 = sphi 0, %s46
      %s35 = sphi 0, %s42
      %s36 = sphi 0, %s34
      %s37 = sphi 0, %s35
      %s38 = sphi 0, %s36
      %s39 = sphi 0, %s37
      %s51 = sphi 0, %s53
      %s54 = sphi 0, %s51
      %s55 = sphi 0, %s54
      %s71 = sphi 0, %s55
      %s77 = sphi 0, %s79
      %s80 = sphi 0, %s77
      %s81 = sphi 0, %s80
      %s97 = sphi 0, %s81
      %s103 = sphi 0, %s105
      %s106 = sphi 0, %s103
      %s107 = sphi 0, %s106
      %s123 = sphi 0, %s107
      %s127 = sphi 0, %s127
      %s129 = sphi 0, %s127
      %s130 = sphi 0, %s129
      %s144 = sphi 0, %s130
      %s148 = sphi 0, %s148
      %s150 = sphi 0, %s148
      %s151 = sphi 0, %s150
      %s165 = sphi 0, %s151
      %s169 = sphi 0, %s169
      %s171 = sphi 0, %s169
      %s172 = sphi 0, %s171
      %s186 = sphi 0, %s172
      %s190 = sphi 0, %s190
      %s192 = sphi 0, %s190
      %s193 = sphi 0, %s192
      %s207 = sphi 0, %s193
      %s211 = sphi 0, %s211
      %s213 = sphi 0, %s211
      %s214 = sphi 0, %s213
      %s228 = sphi 0, %s214
      %s232 = sphi 0, %s232
      %s234 = sphi 0, %s232
      %s235 = sphi 0, %s234
      %s249 = sphi 0, %s235
      %s253 = sphi 0, %s253
      %s255 = sphi 0, %s253
      %s256 = sphi 0, %s255
      %s270 = sphi 0, %s256
      %s274 = sphi 0, %s274
      %s276 = sphi 0, %s274
      %s277 = sphi 0, %s276
      %s291 = sphi 0, %s277
      %s295 = sphi 0, %s295
      %s297 = sphi 0, %s295
      %s298 = sphi 0, %s297
      %s312 = sphi 0, %s298
      %s316 = sphi 0, %s316
      %s318 = sphi 0, %s316
      %s319 = sphi 0, %s318
      %s333 = sphi 0, %s319
      %s337 = sphi 0, %s337
      %s339 = sphi 0, %s337
      %s340 = sphi 0, %s339
      %s354 = sphi 0, %s340
      %s358 = sphi 0, %s358
      %s360 = sphi 0, %s358
      %s361 = sphi 0, %s360
      %s375 = sphi 0, %s361
      %s383 = sphi 0, %s385
      %s386 = sphi 0, %s383
      %s387 = sphi 0, %s386
      %s403 = sphi 0, %s387
    $region4: #{transformer_decoder_pallas.7} parent=1 // loop_header_branch
      %30 = sbr.rel (%p28) target = $region8
    $region5: #{transformer_decoder_pallas.7} parent=1 // loop_body
      %s32 = ssub.s32 %s27, 1
      %s33 = ssub.s32 %s27, 2
      %s40 = sadd.s32 1, %s35
      %p41 = scmp.ge.s32.totalorder %s40, 1
      %s42 = scalar_select %p41, 0, %s40
      %s43 = sadd.s32 1, %s34
      %s44 = scalar_select %p41, %s43, %s34
      %p45 = scmp.ge.s32.totalorder %s44, 2
      %s46 = scalar_select %p45, 0, %s44
      %s47 = ssub.s32 %s34, %s46
      %s48 = ssub.s32 %s35, %s42
      %s49 = sor.u32 %s47, %s48
      %p50 = scmp.eq.s32.totalorder %s49, 0
      %s52 = sadd.s32 %s51, 1
      %s53 = scalar_select %p50, %s51, %s52
      %p56 = pneg %p50
      %p57 = scmp.eq.s32.totalorder %s27, 1
      %p58 = por %p56, %p57
      %p59 = scmp.ne.s32.totalorder %s51, %s54
      %p60 = scmp.eq.s32.totalorder %s27, 0
      %p61 = por %p59, %p60
      %p62 = scmp.ne.s32.totalorder %s51, %s54
      %p63 = scmp.eq.s32.totalorder %s32, 1
      %p64 = por %p62, %p63
      %p65 = scmp.ne.s32.totalorder %s54, %s55
      %p66 = scmp.eq.s32.totalorder %s32, 0
      %p67 = por %p65, %p66
      %p68 = scmp.ne.s32.totalorder %s54, %s55
      %p69 = scmp.eq.s32.totalorder %s33, 1
      %p70 = por %p68, %p69
      %p72 = scmp.ne.s32.totalorder %s55, %s71
      %p73 = scmp.eq.s32.totalorder %s33, 0
      %p74 = por %p72, %p73
      %s75 = ssub.s32 %s34, %s46
      %p76 = scmp.eq.s32.totalorder %s75, 0
      %s78 = sadd.s32 %s77, 1
      %s79 = scalar_select %p76, %s77, %s78
      %p82 = pneg %p76
      %p83 = scmp.eq.s32.totalorder %s27, 1
      %p84 = por %p82, %p83
      %p85 = scmp.ne.s32.totalorder %s77, %s80
      %p86 = scmp.eq.s32.totalorder %s27, 0
      %p87 = por %p85, %p86
      %p88 = scmp.ne.s32.totalorder %s77, %s80
      %p89 = scmp.eq.s32.totalorder %s32, 1
      %p90 = por %p88, %p89
      %p91 = scmp.ne.s32.totalorder %s80, %s81
      %p92 = scmp.eq.s32.totalorder %s32, 0
      %p93 = por %p91, %p92
      %p94 = scmp.ne.s32.totalorder %s80, %s81
      %p95 = scmp.eq.s32.totalorder %s33, 1
      %p96 = por %p94, %p95
      %p98 = scmp.ne.s32.totalorder %s81, %s97
      %p99 = scmp.eq.s32.totalorder %s33, 0
      %p100 = por %p98, %p99
      %s101 = ssub.s32 %s34, %s46
      %p102 = scmp.eq.s32.totalorder %s101, 0
      %s104 = sadd.s32 %s103, 1
      %s105 = scalar_select %p102, %s103, %s104
      %p108 = pneg %p102
      %p109 = scmp.eq.s32.totalorder %s27, 1
      %p110 = por %p108, %p109
      %p111 = scmp.ne.s32.totalorder %s103, %s106
      %p112 = scmp.eq.s32.totalorder %s27, 0
      %p113 = por %p111, %p112
      %p114 = scmp.ne.s32.totalorder %s103, %s106
      %p115 = scmp.eq.s32.totalorder %s32, 1
      %p116 = por %p114, %p115
      %p117 = scmp.ne.s32.totalorder %s106, %s107
      %p118 = scmp.eq.s32.totalorder %s32, 0
      %p119 = por %p117, %p118
      %p120 = scmp.ne.s32.totalorder %s106, %s107
      %p121 = scmp.eq.s32.totalorder %s33, 1
      %p122 = por %p120, %p121
      %p124 = scmp.ne.s32.totalorder %s107, %s123
      %p125 = scmp.eq.s32.totalorder %s33, 0
      %p126 = por %p124, %p125
      %s128 = sadd.s32 %s127, 1
      %p131 = scmp.eq.s32.totalorder %s27, 1
      %p132 = scmp.ne.s32.totalorder %s127, %s129
      %p133 = scmp.eq.s32.totalorder %s27, 0
      %p134 = por %p132, %p133
      %p135 = scmp.ne.s32.totalorder %s127, %s129
      %p136 = scmp.eq.s32.totalorder %s32, 1
      %p137 = por %p135, %p136
      %p138 = scmp.ne.s32.totalorder %s129, %s130
      %p139 = scmp.eq.s32.totalorder %s32, 0
      %p140 = por %p138, %p139
      %p141 = scmp.ne.s32.totalorder %s129, %s130
      %p142 = scmp.eq.s32.totalorder %s33, 1
      %p143 = por %p141, %p142
      %p145 = scmp.ne.s32.totalorder %s130, %s144
      %p146 = scmp.eq.s32.totalorder %s33, 0
      %p147 = por %p145, %p146
      %s149 = sadd.s32 %s148, 1
      %p152 = scmp.eq.s32.totalorder %s27, 1
      %p153 = scmp.ne.s32.totalorder %s148, %s150
      %p154 = scmp.eq.s32.totalorder %s27, 0
      %p155 = por %p153, %p154
      %p156 = scmp.ne.s32.totalorder %s148, %s150
      %p157 = scmp.eq.s32.totalorder %s32, 1
      %p158 = por %p156, %p157
      %p159 = scmp.ne.s32.totalorder %s150, %s151
      %p160 = scmp.eq.s32.totalorder %s32, 0
      %p161 = por %p159, %p160
      %p162 = scmp.ne.s32.totalorder %s150, %s151
      %p163 = scmp.eq.s32.totalorder %s33, 1
      %p164 = por %p162, %p163
      %p166 = scmp.ne.s32.totalorder %s151, %s165
      %p167 = scmp.eq.s32.totalorder %s33, 0
      %p168 = por %p166, %p167
      %s170 = sadd.s32 %s169, 1
      %p173 = scmp.eq.s32.totalorder %s27, 1
      %p174 = scmp.ne.s32.totalorder %s169, %s171
      %p175 = scmp.eq.s32.totalorder %s27, 0
      %p176 = por %p174, %p175
      %p177 = scmp.ne.s32.totalorder %s169, %s171
      %p178 = scmp.eq.s32.totalorder %s32, 1
      %p179 = por %p177, %p178
      %p180 = scmp.ne.s32.totalorder %s171, %s172
      %p181 = scmp.eq.s32.totalorder %s32, 0
      %p182 = por %p180, %p181
      %p183 = scmp.ne.s32.totalorder %s171, %s172
      %p184 = scmp.eq.s32.totalorder %s33, 1
      %p185 = por %p183, %p184
      %p187 = scmp.ne.s32.totalorder %s172, %s186
      %p188 = scmp.eq.s32.totalorder %s33, 0
      %p189 = por %p187, %p188
      %s191 = sadd.s32 %s190, 1
      %p194 = scmp.eq.s32.totalorder %s27, 1
      %p195 = scmp.ne.s32.totalorder %s190, %s192
      %p196 = scmp.eq.s32.totalorder %s27, 0
      %p197 = por %p195, %p196
      %p198 = scmp.ne.s32.totalorder %s190, %s192
      %p199 = scmp.eq.s32.totalorder %s32, 1
      %p200 = por %p198, %p199
      %p201 = scmp.ne.s32.totalorder %s192, %s193
      %p202 = scmp.eq.s32.totalorder %s32, 0
      %p203 = por %p201, %p202
      %p204 = scmp.ne.s32.totalorder %s192, %s193
      %p205 = scmp.eq.s32.totalorder %s33, 1
      %p206 = por %p204, %p205
      %p208 = scmp.ne.s32.totalorder %s193, %s207
      %p209 = scmp.eq.s32.totalorder %s33, 0
      %p210 = por %p208, %p209
      %s212 = sadd.s32 %s211, 1
      %p215 = scmp.eq.s32.totalorder %s27, 1
      %p216 = scmp.ne.s32.totalorder %s211, %s213
      %p217 = scmp.eq.s32.totalorder %s27, 0
      %p218 = por %p216, %p217
      %p219 = scmp.ne.s32.totalorder %s211, %s213
      %p220 = scmp.eq.s32.totalorder %s32, 1
      %p221 = por %p219, %p220
      %p222 = scmp.ne.s32.totalorder %s213, %s214
      %p223 = scmp.eq.s32.totalorder %s32, 0
      %p224 = por %p222, %p223
      %p225 = scmp.ne.s32.totalorder %s213, %s214
      %p226 = scmp.eq.s32.totalorder %s33, 1
      %p227 = por %p225, %p226
      %p229 = scmp.ne.s32.totalorder %s214, %s228
      %p230 = scmp.eq.s32.totalorder %s33, 0
      %p231 = por %p229, %p230
      %s233 = sadd.s32 %s232, 1
      %p236 = scmp.eq.s32.totalorder %s27, 1
      %p237 = scmp.ne.s32.totalorder %s232, %s234
      %p238 = scmp.eq.s32.totalorder %s27, 0
      %p239 = por %p237, %p238
      %p240 = scmp.ne.s32.totalorder %s232, %s234
      %p241 = scmp.eq.s32.totalorder %s32, 1
      %p242 = por %p240, %p241
      %p243 = scmp.ne.s32.totalorder %s234, %s235
      %p244 = scmp.eq.s32.totalorder %s32, 0
      %p245 = por %p243, %p244
      %p246 = scmp.ne.s32.totalorder %s234, %s235
      %p247 = scmp.eq.s32.totalorder %s33, 1
      %p248 = por %p246, %p247
      %p250 = scmp.ne.s32.totalorder %s235, %s249
      %p251 = scmp.eq.s32.totalorder %s33, 0
      %p252 = por %p250, %p251
      %s254 = sadd.s32 %s253, 1
      %p257 = scmp.eq.s32.totalorder %s27, 1
      %p258 = scmp.ne.s32.totalorder %s253, %s255
      %p259 = scmp.eq.s32.totalorder %s27, 0
      %p260 = por %p258, %p259
      %p261 = scmp.ne.s32.totalorder %s253, %s255
      %p262 = scmp.eq.s32.totalorder %s32, 1
      %p263 = por %p261, %p262
      %p264 = scmp.ne.s32.totalorder %s255, %s256
      %p265 = scmp.eq.s32.totalorder %s32, 0
      %p266 = por %p264, %p265
      %p267 = scmp.ne.s32.totalorder %s255, %s256
      %p268 = scmp.eq.s32.totalorder %s33, 1
      %p269 = por %p267, %p268
      %p271 = scmp.ne.s32.totalorder %s256, %s270
      %p272 = scmp.eq.s32.totalorder %s33, 0
      %p273 = por %p271, %p272
      %s275 = sadd.s32 %s274, 1
      %p278 = scmp.eq.s32.totalorder %s27, 1
      %p279 = scmp.ne.s32.totalorder %s274, %s276
      %p280 = scmp.eq.s32.totalorder %s27, 0
      %p281 = por %p279, %p280
      %p282 = scmp.ne.s32.totalorder %s274, %s276
      %p283 = scmp.eq.s32.totalorder %s32, 1
      %p284 = por %p282, %p283
      %p285 = scmp.ne.s32.totalorder %s276, %s277
      %p286 = scmp.eq.s32.totalorder %s32, 0
      %p287 = por %p285, %p286
      %p288 = scmp.ne.s32.totalorder %s276, %s277
      %p289 = scmp.eq.s32.totalorder %s33, 1
      %p290 = por %p288, %p289
      %p292 = scmp.ne.s32.totalorder %s277, %s291
      %p293 = scmp.eq.s32.totalorder %s33, 0
      %p294 = por %p292, %p293
      %s296 = sadd.s32 %s295, 1
      %p299 = scmp.eq.s32.totalorder %s27, 1
      %p300 = scmp.ne.s32.totalorder %s295, %s297
      %p301 = scmp.eq.s32.totalorder %s27, 0
      %p302 = por %p300, %p301
      %p303 = scmp.ne.s32.totalorder %s295, %s297
      %p304 = scmp.eq.s32.totalorder %s32, 1
      %p305 = por %p303, %p304
      %p306 = scmp.ne.s32.totalorder %s297, %s298
      %p307 = scmp.eq.s32.totalorder %s32, 0
      %p308 = por %p306, %p307
      %p309 = scmp.ne.s32.totalorder %s297, %s298
      %p310 = scmp.eq.s32.totalorder %s33, 1
      %p311 = por %p309, %p310
      %p313 = scmp.ne.s32.totalorder %s298, %s312
      %p314 = scmp.eq.s32.totalorder %s33, 0
      %p315 = por %p313, %p314
      %s317 = sadd.s32 %s316, 1
      %p320 = scmp.eq.s32.totalorder %s27, 1
      %p321 = scmp.ne.s32.totalorder %s316, %s318
      %p322 = scmp.eq.s32.totalorder %s27, 0
      %p323 = por %p321, %p322
      %p324 = scmp.ne.s32.totalorder %s316, %s318
      %p325 = scmp.eq.s32.totalorder %s32, 1
      %p326 = por %p324, %p325
      %p327 = scmp.ne.s32.totalorder %s318, %s319
      %p328 = scmp.eq.s32.totalorder %s32, 0
      %p329 = por %p327, %p328
      %p330 = scmp.ne.s32.totalorder %s318, %s319
      %p331 = scmp.eq.s32.totalorder %s33, 1
      %p332 = por %p330, %p331
      %p334 = scmp.ne.s32.totalorder %s319, %s333
      %p335 = scmp.eq.s32.totalorder %s33, 0
      %p336 = por %p334, %p335
      %s338 = sadd.s32 %s337, 1
      %p341 = scmp.eq.s32.totalorder %s27, 1
      %p342 = scmp.ne.s32.totalorder %s337, %s339
      %p343 = scmp.eq.s32.totalorder %s27, 0
      %p344 = por %p342, %p343
      %p345 = scmp.ne.s32.totalorder %s337, %s339
      %p346 = scmp.eq.s32.totalorder %s32, 1
      %p347 = por %p345, %p346
      %p348 = scmp.ne.s32.totalorder %s339, %s340
      %p349 = scmp.eq.s32.totalorder %s32, 0
      %p350 = por %p348, %p349
      %p351 = scmp.ne.s32.totalorder %s339, %s340
      %p352 = scmp.eq.s32.totalorder %s33, 1
      %p353 = por %p351, %p352
      %p355 = scmp.ne.s32.totalorder %s340, %s354
      %p356 = scmp.eq.s32.totalorder %s33, 0
      %p357 = por %p355, %p356
      %s359 = sadd.s32 %s358, 1
      %p362 = scmp.eq.s32.totalorder %s27, 1
      %p363 = scmp.ne.s32.totalorder %s358, %s360
      %p364 = scmp.eq.s32.totalorder %s27, 0
      %p365 = por %p363, %p364
      %p366 = scmp.ne.s32.totalorder %s358, %s360
      %p367 = scmp.eq.s32.totalorder %s32, 1
      %p368 = por %p366, %p367
      %p369 = scmp.ne.s32.totalorder %s360, %s361
      %p370 = scmp.eq.s32.totalorder %s32, 0
      %p371 = por %p369, %p370
      %p372 = scmp.ne.s32.totalorder %s360, %s361
      %p373 = scmp.eq.s32.totalorder %s33, 1
      %p374 = por %p372, %p373
      %p376 = scmp.ne.s32.totalorder %s361, %s375
      %p377 = scmp.eq.s32.totalorder %s33, 0
      %p378 = por %p376, %p377
      %s379 = ssub.s32 %s34, %s46
      %s380 = ssub.s32 %s35, %s42
      %s381 = sor.u32 %s379, %s380
      %p382 = scmp.eq.s32.totalorder %s381, 0
      %s384 = sadd.s32 %s383, 1
      %s385 = scalar_select %p382, %s383, %s384
      %p388 = pneg %p382
      %p389 = scmp.eq.s32.totalorder %s27, 1
      %p390 = por %p388, %p389
      %p391 = scmp.ne.s32.totalorder %s383, %s386
      %p392 = scmp.eq.s32.totalorder %s27, 0
      %p393 = por %p391, %p392
      %p394 = scmp.ne.s32.totalorder %s383, %s386
      %p395 = scmp.eq.s32.totalorder %s32, 1
      %p396 = por %p394, %p395
      %p397 = scmp.ne.s32.totalorder %s386, %s387
      %p398 = scmp.eq.s32.totalorder %s32, 0
      %p399 = por %p397, %p398
      %p400 = scmp.ne.s32.totalorder %s386, %s387
      %p401 = scmp.eq.s32.totalorder %s33, 1
      %p402 = por %p400, %p401
      %p404 = scmp.ne.s32.totalorder %s387, %s403
      %p405 = scmp.eq.s32.totalorder %s33, 0
      %p406 = por %p404, %p405
      %p407 = scmp.le.s32.totalorder 1, %s27
      %p408 = scmp.lt.s32.totalorder %s27, 3
      %p409 = pnand %p407, %p408
      %p410 = pneg %p409
      // Predicated region
      $region9: #{transformer_decoder_pallas.7} parent=5 // pred_check
        _
      $region10: #{transformer_decoder_pallas.7} parent=5 // pred_check_branch
        %412 = sbr.rel (%p409) target = $region12
      $region11: #{transformer_decoder_pallas.7} parent=5 // pred_region
        %s413 = ssub.s32 %s27, 1
        // Predicated region
        $region13: #{transformer_decoder_pallas.7} parent=11 // pred_check
          %p414 = pneg %p140
        $region14: #{transformer_decoder_pallas.7} parent=11 // pred_check_branch
          %416 = sbr.rel (%p414) target = $region16
        $region15: #{transformer_decoder_pallas.7} parent=11 // pred_region
          _
        $region16: #{transformer_decoder_pallas.7} parent=11 // pred_fallthru
          _
        // Predicated region
        $region17: #{transformer_decoder_pallas.7} parent=11 // pred_check
          %p417 = pneg %p161
        $region18: #{transformer_decoder_pallas.7} parent=11 // pred_check_branch
          %419 = sbr.rel (%p417) target = $region20
        $region19: #{transformer_decoder_pallas.7} parent=11 // pred_region
          _
        $region20: #{transformer_decoder_pallas.7} parent=11 // pred_fallthru
          _
        // Predicated region
        $region21: #{transformer_decoder_pallas.7} parent=11 // pred_check
          %p420 = pneg %p182
        $region22: #{transformer_decoder_pallas.7} parent=11 // pred_check_branch
          %422 = sbr.rel (%p420) target = $region24
        $region23: #{transformer_decoder_pallas.7} parent=11 // pred_region
          _
        $region24: #{transformer_decoder_pallas.7} parent=11 // pred_fallthru
          _
        // Predicated region
        $region25: #{transformer_decoder_pallas.7} parent=11 // pred_check
          %p423 = pneg %p203
        $region26: #{transformer_decoder_pallas.7} parent=11 // pred_check_branch
          %425 = sbr.rel (%p423) target = $region28
        $region27: #{transformer_decoder_pallas.7} parent=11 // pred_region
          _
        $region28: #{transformer_decoder_pallas.7} parent=11 // pred_fallthru
          _
        // Predicated region
        $region29: #{transformer_decoder_pallas.7} parent=11 // pred_check
          %p426 = pneg %p224
        $region30: #{transformer_decoder_pallas.7} parent=11 // pred_check_branch
          %428 = sbr.rel (%p426) target = $region32
        $region31: #{transformer_decoder_pallas.7} parent=11 // pred_region
          _
        $region32: #{transformer_decoder_pallas.7} parent=11 // pred_fallthru
          _
        // Predicated region
        $region33: #{transformer_decoder_pallas.7} parent=11 // pred_check
          %p429 = pneg %p245
        $region34: #{transformer_decoder_pallas.7} parent=11 // pred_check_branch
          %431 = sbr.rel (%p429) target = $region36
        $region35: #{transformer_decoder_pallas.7} parent=11 // pred_region
          _
        $region36: #{transformer_decoder_pallas.7} parent=11 // pred_fallthru
          _
        // Predicated region
        $region37: #{transformer_decoder_pallas.7} parent=11 // pred_check
          %p432 = pneg %p266
        $region38: #{transformer_decoder_pallas.7} parent=11 // pred_check_branch
          %434 = sbr.rel (%p432) target = $region40
        $region39: #{transformer_decoder_pallas.7} parent=11 // pred_region
          _
        $region40: #{transformer_decoder_pallas.7} parent=11 // pred_fallthru
          _
        // Predicated region
        $region41: #{transformer_decoder_pallas.7} parent=11 // pred_check
          %p435 = pneg %p287
        $region42: #{transformer_decoder_pallas.7} parent=11 // pred_check_branch
          %437 = sbr.rel (%p435) target = $region44
        $region43: #{transformer_decoder_pallas.7} parent=11 // pred_region
          _
        $region44: #{transformer_decoder_pallas.7} parent=11 // pred_fallthru
          _
        // Predicated region
        $region45: #{transformer_decoder_pallas.7} parent=11 // pred_check
          %p438 = pneg %p308
        $region46: #{transformer_decoder_pallas.7} parent=11 // pred_check_branch
          %440 = sbr.rel (%p438) target = $region48
        $region47: #{transformer_decoder_pallas.7} parent=11 // pred_region
          _
        $region48: #{transformer_decoder_pallas.7} parent=11 // pred_fallthru
          _
        // Predicated region
        $region49: #{transformer_decoder_pallas.7} parent=11 // pred_check
          %p441 = pneg %p329
        $region50: #{transformer_decoder_pallas.7} parent=11 // pred_check_branch
          %443 = sbr.rel (%p441) target = $region52
        $region51: #{transformer_decoder_pallas.7} parent=11 // pred_region
          _
        $region52: #{transformer_decoder_pallas.7} parent=11 // pred_fallthru
          _
        // Predicated region
        $region53: #{transformer_decoder_pallas.7} parent=11 // pred_check
          %p444 = pneg %p350
        $region54: #{transformer_decoder_pallas.7} parent=11 // pred_check_branch
          %446 = sbr.rel (%p444) target = $region56
        $region55: #{transformer_decoder_pallas.7} parent=11 // pred_region
          _
        $region56: #{transformer_decoder_pallas.7} parent=11 // pred_fallthru
          _
        // Predicated region
        $region57: #{transformer_decoder_pallas.7} parent=11 // pred_check
          %p447 = pneg %p371
        $region58: #{transformer_decoder_pallas.7} parent=11 // pred_check_branch
          %449 = sbr.rel (%p447) target = $region60
        $region59: #{transformer_decoder_pallas.7} parent=11 // pred_region
          _
        $region60: #{transformer_decoder_pallas.7} parent=11 // pred_fallthru
          _
      $region12: #{transformer_decoder_pallas.7} parent=5 // pred_fallthru
        _
      %p450 = scmp.lt.s32.totalorder %s27, 2
      // Predicated region
      $region61: #{transformer_decoder_pallas.7} parent=5 // pred_check
        %p451 = pneg %p450
      $region62: #{transformer_decoder_pallas.7} parent=5 // pred_check_branch
        %453 = sbr.rel (%p451) target = $region64
      $region63: #{transformer_decoder_pallas.7} parent=5 // pred_region
        // Predicated region
        $region65: #{transformer_decoder_pallas.7} parent=63 // pred_check
          %p454 = pneg %p61
        $region66: #{transformer_decoder_pallas.7} parent=63 // pred_check_branch
          %456 = sbr.rel (%p454) target = $region68
        $region67: #{transformer_decoder_pallas.7} parent=63 // pred_region
          %s457 = sand.u32 %s51, 1
          %s458 = scalar_lea.sflag [#allocation4], %s457
          %s459 = sand.u32 %s51, 1
          %s460 = smul.addr %s459, 8
          %s461 = scalar_lea.vmem [#allocation3], %s460
          %s463 = ssub.s32 128, 128
          %464 = vsyncadd %s458, %s463
          %s465 = sadd.s32 %s35, %s34
          %s466 = smul.addr %s465, 128
          %s467 = scalar_lea.hbm %s0, %s466
          %s469 = sshll.u32 %s461, 4
          %s470 = int_to_ptr.vmem [resolvable:$true] %s469
          %472 = dma.hbm_to_vmem [thread:$0]  %s467, 128, %s470, %s458
        $region68: #{transformer_decoder_pallas.7} parent=63 // pred_fallthru
          _
        // Predicated region
        $region69: #{transformer_decoder_pallas.7} parent=63 // pred_check
          %p473 = pneg %p87
        $region70: #{transformer_decoder_pallas.7} parent=63 // pred_check_branch
          %475 = sbr.rel (%p473) target = $region72
        $region71: #{transformer_decoder_pallas.7} parent=63 // pred_region
          %p476 = scmp.lt.s32.totalorder %s34, 1
          %s477 = scalar_select %p476, %s34, 1
          %s478 = smul.addr %s477, 4
          %s479 = scalar_lea.vmem %s1, %s478
        $region72: #{transformer_decoder_pallas.7} parent=63 // pred_fallthru
          _
        // Predicated region
        $region73: #{transformer_decoder_pallas.7} parent=63 // pred_check
          %p480 = pneg %p113
        $region74: #{transformer_decoder_pallas.7} parent=63 // pred_check_branch
          %482 = sbr.rel (%p480) target = $region76
        $region75: #{transformer_decoder_pallas.7} parent=63 // pred_region
          %p483 = scmp.lt.s32.totalorder %s34, 1
          %s484 = scalar_select %p483, %s34, 1
          %s485 = smul.addr %s484, 4
          %s486 = scalar_lea.vmem %s2, %s485
        $region76: #{transformer_decoder_pallas.7} parent=63 // pred_fallthru
          _
      $region64: #{transformer_decoder_pallas.7} parent=5 // pred_fallthru
        _
      %p487 = scmp.le.s32.totalorder 1, %s27
      %p488 = scmp.lt.s32.totalorder %s27, 3
      %p489 = pnand %p487, %p488
      %p490 = pneg %p489
      // Predicated region
      $region77: #{transformer_decoder_pallas.7} parent=5 // pred_check
        _
      $region78: #{transformer_decoder_pallas.7} parent=5 // pred_check_branch
        %492 = sbr.rel (%p489) target = $region80
      $region79: #{transformer_decoder_pallas.7} parent=5 // pred_region
        %s493 = ssub.s32 %s27, 1
        %s494 = sand.u32 %s54, 1
        %s495 = scalar_lea.sflag [#allocation4], %s494
        %s496 = sand.u32 %s54, 1
        %s497 = smul.addr %s496, 8
        %s498 = scalar_lea.vmem [#allocation3], %s497
        // Predicated region
        $region81: #{transformer_decoder_pallas.7} parent=79 // pred_check
          %p499 = pneg %p67
        $region82: #{transformer_decoder_pallas.7} parent=79 // pred_check_branch
          %501 = sbr.rel (%p499) target = $region84
        $region83: #{transformer_decoder_pallas.7} parent=79 // pred_region
          %502 = dma.done %s495, 128
        $region84: #{transformer_decoder_pallas.7} parent=79 // pred_fallthru
          _
        %s503 = sand.u32 %s54, 1
        %s504 = scalar_lea.sflag [#allocation4], %s503
        %s505 = sand.u32 %s54, 1
        %s506 = smul.addr %s505, 8
        %s507 = scalar_lea.vmem [#allocation3], %s506
        %p508 = pneg %p67
        %p509 = pneg %p64
        %p510 = scmp.lt.s32.totalorder %s36, 1
        %s511 = scalar_select %p510, %s36, 1
        %s512 = smul.addr %s511, 4
        %s513 = scalar_lea.vmem %s1, %s512
        %p514 = pneg %p93
        %p515 = pneg %p90
        %p516 = scmp.lt.s32.totalorder %s36, 1
        %s517 = scalar_select %p516, %s36, 1
        %s518 = smul.addr %s517, 4
        %s519 = scalar_lea.vmem %s2, %s518
        %p520 = pneg %p119
        %p521 = pneg %p116
        %p522 = pneg %p140
        %p523 = pneg %p137
        %p524 = pneg %p161
        %p525 = pneg %p158
        %p526 = pneg %p182
        %p527 = pneg %p179
        %p528 = pneg %p203
        %p529 = pneg %p200
        %p530 = pneg %p224
        %p531 = pneg %p221
        %p532 = pneg %p245
        %p533 = pneg %p242
        %p534 = pneg %p266
        %p535 = pneg %p263
        %p536 = pneg %p287
        %p537 = pneg %p284
        %p538 = pneg %p308
        %p539 = pneg %p305
        %p540 = pneg %p329
        %p541 = pneg %p326
        %p542 = pneg %p350
        %p543 = pneg %p347
        %p544 = pneg %p371
        %p545 = pneg %p368
        %p546 = pneg %p399
        %p547 = pneg %p396
        %s548 = sand.u32 %s386, 1
        %s549 = scalar_lea.sflag [#allocation5], %s548
        %s550 = sand.u32 %s386, 1
        %s551 = smul.addr %s550, 8
        %s552 = scalar_lea.vmem [#allocation6], %s551
        %p553 = scmp.lt.s32.totalorder %s36, 1
        %s554 = scalar_select %p553, %s36, 1
        %s555 = smul.addr %s554, 4
        %s556 = scalar_lea.vmem %s1, %s555
        %p557 = scmp.lt.s32.totalorder %s36, 1
        %s558 = scalar_select %p557, %s36, 1
        %s559 = smul.addr %s558, 4
        %s560 = scalar_lea.vmem %s2, %s559
        %v562 = vld [vmem:[%s498] sm:$0xff]
        %v563 = vpack.c.bf16 %v562, %v562
        %v564 = vld [vmem:[%s3] sm:$0xf]
        %v565 = vld [vmem:[%s3 + $0x4] sm:$0xf]
        %v566 = vld [vmem:[%s3 + $0x8] sm:$0xf]
        %v567 = vld [vmem:[%s3 + $0xc] sm:$0xf]
        %v568 = vld [vmem:[%s4] sm:$0x1]
        %v570 = vlaneseq
        %v571 = vshrl.u32 %v570, 7
        %v572 = vsub.s32 0, %v571
        %v573 = vrot.slane %v568, %v572
        %v579 = vunpack.c.l.b16 %v564
        %v580 = vunpack.c.l.b16 %v565
        %v581 = vunpack.c.l.b16 %v566
        %v582 = vunpack.c.l.b16 %v567
        %v583 = vpack.c.b16 %v580, %v579
        %v584 = vpack.c.b16 %v582, %v581
        %vm587 = vcmask 261120
        %v589 = vsel %vm587, %v563, 0
        %591 = vmatprep.subr.bf16.mxu0 0
        %592 = vmatpush1.bf16.msra.mxu0 %v583
        %593 = vmatprep.subr.bf16.mxu0 0
        %594 = vmatpush1.bf16.msra.mxu0 %v584
        %595 = vmatprep.subr.bf16.mxu0 0
        %596 = vmatpush1.bf16.msra.mxu0 0
        %597 = vmatprep.subr.bf16.mxu0 0
        %598 = vmatpush1.bf16.msra.mxu0 0
        %599 = vmatprep.subr.bf16.mxu0 0
        %600 = vmatpush1.bf16.msra.mxu0 0
        %601 = vmatprep.subr.bf16.mxu0 0
        %602 = vmatpush1.bf16.msra.mxu0 0
        %603 = vmatprep.subr.bf16.mxu0 0
        %604 = vmatpush1.bf16.msra.mxu0 0
        %605 = vmatprep.subr.bf16.mxu0 0
        %606 = vmatpush1.bf16.msra.mxu0 0
        %607 = vmatprep.subr.bf16.mxu0 0
        %608 = vmatpush1.bf16.msra.mxu0 0
        %609 = vmatprep.subr.bf16.mxu0 0
        %610 = vmatpush1.bf16.msra.mxu0 0
        %611 = vmatprep.subr.bf16.mxu0 0
        %612 = vmatpush1.bf16.msra.mxu0 0
        %613 = vmatprep.subr.bf16.mxu0 0
        %614 = vmatpush1.bf16.msra.mxu0 0
        %615 = vmatprep.subr.bf16.mxu0 0
        %616 = vmatpush1.bf16.msra.mxu0 0
        %617 = vmatprep.subr.bf16.mxu0 0
        %618 = vmatpush1.bf16.msra.mxu0 0
        %619 = vmatprep.subr.bf16.mxu0 0
        %620 = vmatpush1.bf16.msra.mxu0 0
        %621 = vmatprep.subr.bf16.mxu0 0
        %622 = vmatpush1.bf16.msra.mxu0 0
        %623 = vmatprep.mubr.bf16.mxu0 0
        %624 = vmatmul.mubr.bf16.gmra.mrb[0].mxu0 %v589
        %v625 = vpop.f32.mrb[0].mxu0
        %v626 = vadd.f32 %v573, %v625
        %v627 = vpop.f32.mrb[0].mxu0
        %v628 = vpop.f32.mrb[0].mxu0
        %v629 = vpop.f32.mrb[0].mxu0
        %630 = vdwg.mxu0
        %v631 = vmul.f32 %v626, 0.35355338
        %v632 = vpack.c.bf16 %v631, %v631
        %v633 = vld [vmem:[%s556] sm:$0xf]
        %v634 = vld [vmem:[%s560] sm:$0xf]
        %s635 = smul.u32 %s37, 8
        %v636 = vlaneseq
        %v637 = vshrl.u32 %v636, 7
        %v638 = vstv %s635
        %v639 = vadd.s32 %v638, %v637
        %v640 = vlaneseq
        %v641 = vand.u32 %v640, 127
        %vm642 = vcmp.ge.s32.totalorder %v639, %v641
        %v643 = vsel %vm642, 0.0, -1e+09
        %vm644 = vcmask 64512
        %v646 = vsel %vm644, %v632, 0
        %v649 = vsel %vm644, %v633, 0
        %651 = vmatprep.subr.bf16.mxu0 0
        %652 = vmatpush1.bf16.xpose.msra.mxu0 %v649
        %653 = vmatprep.subr.bf16.mxu0 0
        %654 = vmatpush1.bf16.xpose.msra.mxu0 0
        %655 = vmatprep.subr.bf16.mxu0 0
        %656 = vmatpush1.bf16.xpose.msra.mxu0 0
        %657 = vmatprep.subr.bf16.mxu0 0
        %658 = vmatpush1.bf16.xpose.msra.mxu0 0
        %659 = vmatprep.subr.bf16.mxu0 0
        %660 = vmatpush1.bf16.xpose.msra.mxu0 0
        %661 = vmatprep.subr.bf16.mxu0 0
        %662 = vmatpush1.bf16.xpose.msra.mxu0 0
        %663 = vmatprep.subr.bf16.mxu0 0
        %664 = vmatpush1.bf16.xpose.msra.mxu0 0
        %665 = vmatprep.subr.bf16.mxu0 0
        %666 = vmatpush1.bf16.xpose.msra.mxu0 0
        %667 = vmatprep.subr.bf16.mxu0 0
        %668 = vmatpush1.bf16.xpose.msra.mxu0 0
        %669 = vmatprep.subr.bf16.mxu0 0
        %670 = vmatpush1.bf16.xpose.msra.mxu0 0
        %671 = vmatprep.subr.bf16.mxu0 0
        %672 = vmatpush1.bf16.xpose.msra.mxu0 0
        %673 = vmatprep.subr.bf16.mxu0 0
        %674 = vmatpush1.bf16.xpose.msra.mxu0 0
        %675 = vmatprep.subr.bf16.mxu0 0
        %676 = vmatpush1.bf16.xpose.msra.mxu0 0
        %677 = vmatprep.subr.bf16.mxu0 0
        %678 = vmatpush1.bf16.xpose.msra.mxu0 0
        %679 = vmatprep.subr.bf16.mxu0 0
        %680 = vmatpush1.bf16.xpose.msra.mxu0 0
        %681 = vmatprep.subr.bf16.mxu0 0
        %682 = vmatpush1.bf16.xpose.msra.mxu0 0
        %683 = vmatprep.mubr.bf16.mxu0 0
        %684 = vmatmul.mubr.bf16.gmra.mrb[0].mxu0 %v646
        %v685 = vpop.f32.mrb[0].mxu0
        %v686 = vadd.f32 %v643, %v685
        %v687 = vpop.f32.mrb[0].mxu0
        %v688 = vpop.f32.mrb[0].mxu0
        %v689 = vpop.f32.mrb[0].mxu0
        %690 = vdwg.mxu0
        %v691 = vsel %vm644, %v686, -inf
        %692 = vmax.xlane.f32.xlu0 %v691
        %v693 = vpop.xlane.xlu0 %692
        %v694 = vsub.f32 %v686, %v693
        %v695 = vmul.f32 %v694, 1.442695
        %v696 = vpow.pop %v695
        %v697 = vsel %vm644, %v696, 0.0
        %698 = vadd.xlane.f32.xlu0 %v697
        %v699 = vpop.xlane.xlu0 %698
        %v700 = vrcp.pop %v699
        %v701 = vmul.f32 %v696, %v700
        %v702 = vpack.c.bf16 %v701, %v701
        %v704 = vsel %vm644, %v702, 0
        %vm706 = vcmask 1043456
        %v708 = vsel %vm706, %v634, 0
        %710 = vmatprep.subr.bf16.mxu0 0
        %711 = vmatpush1.bf16.msra.mxu0 %v708
        %712 = vmatprep.subr.bf16.mxu0 0
        %713 = vmatpush1.bf16.msra.mxu0 0
        %714 = vmatprep.subr.bf16.mxu0 0
        %715 = vmatpush1.bf16.msra.mxu0 0
        %716 = vmatprep.subr.bf16.mxu0 0
        %717 = vmatpush1.bf16.msra.mxu0 0
        %718 = vmatprep.subr.bf16.mxu0 0
        %719 = vmatpush1.bf16.msra.mxu0 0
        %720 = vmatprep.subr.bf16.mxu0 0
        %721 = vmatpush1.bf16.msra.mxu0 0
        %722 = vmatprep.subr.bf16.mxu0 0
        %723 = vmatpush1.bf16.msra.mxu0 0
        %724 = vmatprep.subr.bf16.mxu0 0
        %725 = vmatpush1.bf16.msra.mxu0 0
        %726 = vmatprep.subr.bf16.mxu0 0
        %727 = vmatpush1.bf16.msra.mxu0 0
        %728 = vmatprep.subr.bf16.mxu0 0
        %729 = vmatpush1.bf16.msra.mxu0 0
        %730 = vmatprep.subr.bf16.mxu0 0
        %731 = vmatpush1.bf16.msra.mxu0 0
        %732 = vmatprep.subr.bf16.mxu0 0
        %733 = vmatpush1.bf16.msra.mxu0 0
        %734 = vmatprep.subr.bf16.mxu0 0
        %735 = vmatpush1.bf16.msra.mxu0 0
        %736 = vmatprep.subr.bf16.mxu0 0
        %737 = vmatpush1.bf16.msra.mxu0 0
        %738 = vmatprep.subr.bf16.mxu0 0
        %739 = vmatpush1.bf16.msra.mxu0 0
        %740 = vmatprep.subr.bf16.mxu0 0
        %741 = vmatpush1.bf16.msra.mxu0 0
        %742 = vmatprep.mubr.bf16.mxu0 0
        %743 = vmatmul.mubr.bf16.gmra.mrb[0].mxu0 %v704
        %v744 = vpop.f32.mrb[0].mxu0
        %v745 = vadd.f32 0.0, %v744
        %v746 = vpop.f32.mrb[0].mxu0
        %v747 = vpop.f32.mrb[0].mxu0
        %v748 = vpop.f32.mrb[0].mxu0
        %749 = vdwg.mxu0
        %v750 = vpack.c.bf16 %v745, %v745
        %vm751 = vcmask 60416
        %752 = vst.msk [vmem:[#allocation2] sm:$0xf] %vm751, %v750
        %754 = vrot.lane.b32.xlu0 %v632, 120
        %v755 = vpop.permute.xlu0 %754
        %v757 = vunpack.c.l.b16 %v633
        %v758 = vpack.c.b16 %v757, %v757
        %759 = vrot.lane.b32.xlu0 %v758, 120
        %v760 = vpop.permute.xlu0 %759
        %v762 = vsel %vm644, %v755, 0
        %v765 = vsel %vm644, %v760, 0
        %767 = vmatprep.subr.bf16.mxu0 0
        %768 = vmatpush1.bf16.xpose.msra.mxu0 %v765
        %769 = vmatprep.subr.bf16.mxu0 0
        %770 = vmatpush1.bf16.xpose.msra.mxu0 0
        %771 = vmatprep.subr.bf16.mxu0 0
        %772 = vmatpush1.bf16.xpose.msra.mxu0 0
        %773 = vmatprep.subr.bf16.mxu0 0
        %774 = vmatpush1.bf16.xpose.msra.mxu0 0
        %775 = vmatprep.subr.bf16.mxu0 0
        %776 = vmatpush1.bf16.xpose.msra.mxu0 0
        %777 = vmatprep.subr.bf16.mxu0 0
        %778 = vmatpush1.bf16.xpose.msra.mxu0 0
        %779 = vmatprep.subr.bf16.mxu0 0
        %780 = vmatpush1.bf16.xpose.msra.mxu0 0
        %781 = vmatprep.subr.bf16.mxu0 0
        %782 = vmatpush1.bf16.xpose.msra.mxu0 0
        %783 = vmatprep.subr.bf16.mxu0 0
        %784 = vmatpush1.bf16.xpose.msra.mxu0 0
        %785 = vmatprep.subr.bf16.mxu0 0
        %786 = vmatpush1.bf16.xpose.msra.mxu0 0
        %787 = vmatprep.subr.bf16.mxu0 0
        %788 = vmatpush1.bf16.xpose.msra.mxu0 0
        %789 = vmatprep.subr.bf16.mxu0 0
        %790 = vmatpush1.bf16.xpose.msra.mxu0 0
        %791 = vmatprep.subr.bf16.mxu0 0
        %792 = vmatpush1.bf16.xpose.msra.mxu0 0
        %793 = vmatprep.subr.bf16.mxu0 0
        %794 = vmatpush1.bf16.xpose.msra.mxu0 0
        %795 = vmatprep.subr.bf16.mxu0 0
        %796 = vmatpush1.bf16.xpose.msra.mxu0 0
        %797 = vmatprep.subr.bf16.mxu0 0
        %798 = vmatpush1.bf16.xpose.msra.mxu0 0
        %799 = vmatprep.mubr.bf16.mxu0 0
        %800 = vmatmul.mubr.bf16.gmra.mrb[0].mxu0 %v762
        %v801 = vpop.f32.mrb[0].mxu0
        %v802 = vadd.f32 %v643, %v801
        %v803 = vpop.f32.mrb[0].mxu0
        %v804 = vpop.f32.mrb[0].mxu0
        %v805 = vpop.f32.mrb[0].mxu0
        %806 = vdwg.mxu0
        %v807 = vsel %vm644, %v802, -inf
        %808 = vmax.xlane.f32.xlu0 %v807
        %v809 = vpop.xlane.xlu0 %808
        %v810 = vsub.f32 %v802, %v809
        %v811 = vmul.f32 %v810, 1.442695
        %v812 = vpow.pop %v811
        %v813 = vsel %vm644, %v812, 0.0
        %814 = vadd.xlane.f32.xlu0 %v813
        %v815 = vpop.xlane.xlu0 %814
        %v816 = vrcp.pop %v815
        %v817 = vmul.f32 %v812, %v816
        %v818 = vpack.c.bf16 %v817, %v817
        %v820 = vunpack.c.l.b16 %v634
        %v821 = vpack.c.b16 %v820, %v820
        %822 = vrot.lane.b32.xlu0 %v821, 120
        %v823 = vpop.permute.xlu0 %822
        %v825 = vsel %vm644, %v818, 0
        %v828 = vsel %vm706, %v823, 0
        %830 = vmatprep.subr.bf16.mxu0 0
        %831 = vmatpush1.bf16.msra.mxu0 %v828
        %832 = vmatprep.subr.bf16.mxu0 0
        %833 = vmatpush1.bf16.msra.mxu0 0
        %834 = vmatprep.subr.bf16.mxu0 0
        %835 = vmatpush1.bf16.msra.mxu0 0
        %836 = vmatprep.subr.bf16.mxu0 0
        %837 = vmatpush1.bf16.msra.mxu0 0
        %838 = vmatprep.subr.bf16.mxu0 0
        %839 = vmatpush1.bf16.msra.mxu0 0
        %840 = vmatprep.subr.bf16.mxu0 0
        %841 = vmatpush1.bf16.msra.mxu0 0
        %842 = vmatprep.subr.bf16.mxu0 0
        %843 = vmatpush1.bf16.msra.mxu0 0
        %844 = vmatprep.subr.bf16.mxu0 0
        %845 = vmatpush1.bf16.msra.mxu0 0
        %846 = vmatprep.subr.bf16.mxu0 0
        %847 = vmatpush1.bf16.msra.mxu0 0
        %848 = vmatprep.subr.bf16.mxu0 0
        %849 = vmatpush1.bf16.msra.mxu0 0
        %850 = vmatprep.subr.bf16.mxu0 0
        %851 = vmatpush1.bf16.msra.mxu0 0
        %852 = vmatprep.subr.bf16.mxu0 0
        %853 = vmatpush1.bf16.msra.mxu0 0
        %854 = vmatprep.subr.bf16.mxu0 0
        %855 = vmatpush1.bf16.msra.mxu0 0
        %856 = vmatprep.subr.bf16.mxu0 0
        %857 = vmatpush1.bf16.msra.mxu0 0
        %858 = vmatprep.subr.bf16.mxu0 0
        %859 = vmatpush1.bf16.msra.mxu0 0
        %860 = vmatprep.subr.bf16.mxu0 0
        %861 = vmatpush1.bf16.msra.mxu0 0
        %862 = vmatprep.mubr.bf16.mxu0 0
        %863 = vmatmul.mubr.bf16.gmra.mrb[0].mxu0 %v825
        %v864 = vpop.f32.mrb[0].mxu0
        %v865 = vadd.f32 0.0, %v864
        %v866 = vpop.f32.mrb[0].mxu0
        %v867 = vpop.f32.mrb[0].mxu0
        %v868 = vpop.f32.mrb[0].mxu0
        %869 = vdwg.mxu0
        %v870 = vpack.c.bf16 %v865, %v865
        %v872 = vunpack.c.l.b16 %v870
        %v873 = vpack.c.b16 %v872, %v872
        %874 = vrot.lane.b32.xlu0 %v873, 8
        %v875 = vpop.permute.xlu0 %874
        %vm877 = vcmask 126016
        %878 = vst.msk [vmem:[#allocation2] sm:$0xf] %vm877, %v875
        %879 = vrot.lane.b32.xlu0 %v632, 112
        %v880 = vpop.permute.xlu0 %879
        %881 = vrot.lane.b32.xlu0 %v758, 112
        %v882 = vpop.permute.xlu0 %881
        %v884 = vsel %vm644, %v880, 0
        %v887 = vsel %vm644, %v882, 0
        %889 = vmatprep.subr.bf16.mxu0 0
        %890 = vmatpush1.bf16.xpose.msra.mxu0 %v887
        %891 = vmatprep.subr.bf16.mxu0 0
        %892 = vmatpush1.bf16.xpose.msra.mxu0 0
        %893 = vmatprep.subr.bf16.mxu0 0
        %894 = vmatpush1.bf16.xpose.msra.mxu0 0
        %895 = vmatprep.subr.bf16.mxu0 0
        %896 = vmatpush1.bf16.xpose.msra.mxu0 0
        %897 = vmatprep.subr.bf16.mxu0 0
        %898 = vmatpush1.bf16.xpose.msra.mxu0 0
        %899 = vmatprep.subr.bf16.mxu0 0
        %900 = vmatpush1.bf16.xpose.msra.mxu0 0
        %901 = vmatprep.subr.bf16.mxu0 0
        %902 = vmatpush1.bf16.xpose.msra.mxu0 0
        %903 = vmatprep.subr.bf16.mxu0 0
        %904 = vmatpush1.bf16.xpose.msra.mxu0 0
        %905 = vmatprep.subr.bf16.mxu0 0
        %906 = vmatpush1.bf16.xpose.msra.mxu0 0
        %907 = vmatprep.subr.bf16.mxu0 0
        %908 = vmatpush1.bf16.xpose.msra.mxu0 0
        %909 = vmatprep.subr.bf16.mxu0 0
        %910 = vmatpush1.bf16.xpose.msra.mxu0 0
        %911 = vmatprep.subr.bf16.mxu0 0
        %912 = vmatpush1.bf16.xpose.msra.mxu0 0
        %913 = vmatprep.subr.bf16.mxu0 0
        %914 = vmatpush1.bf16.xpose.msra.mxu0 0
        %915 = vmatprep.subr.bf16.mxu0 0
        %916 = vmatpush1.bf16.xpose.msra.mxu0 0
        %917 = vmatprep.subr.bf16.mxu0 0
        %918 = vmatpush1.bf16.xpose.msra.mxu0 0
        %919 = vmatprep.subr.bf16.mxu0 0
        %920 = vmatpush1.bf16.xpose.msra.mxu0 0
        %921 = vmatprep.mubr.bf16.mxu0 0
        %922 = vmatmul.mubr.bf16.gmra.mrb[0].mxu0 %v884
        %v923 = vpop.f32.mrb[0].mxu0
        %v924 = vadd.f32 %v643, %v923
        %v925 = vpop.f32.mrb[0].mxu0
        %v926 = vpop.f32.mrb[0].mxu0
        %v927 = vpop.f32.mrb[0].mxu0
        %928 = vdwg.mxu0
        %v929 = vsel %vm644, %v924, -inf
        %930 = vmax.xlane.f32.xlu0 %v929
        %v931 = vpop.xlane.xlu0 %930
        %v932 = vsub.f32 %v924, %v931
        %v933 = vmul.f32 %v932, 1.442695
        %v934 = vpow.pop %v933
        %v935 = vsel %vm644, %v934, 0.0
        %936 = vadd.xlane.f32.xlu0 %v935
        %v937 = vpop.xlane.xlu0 %936
        %v938 = vrcp.pop %v937
        %v939 = vmul.f32 %v934, %v938
        %v940 = vpack.c.bf16 %v939, %v939
        %941 = vrot.lane.b32.xlu0 %v821, 112
        %v942 = vpop.permute.xlu0 %941
        %v944 = vsel %vm644, %v940, 0
        %v947 = vsel %vm706, %v942, 0
        %949 = vmatprep.subr.bf16.mxu0 0
        %950 = vmatpush1.bf16.msra.mxu0 %v947
        %951 = vmatprep.subr.bf16.mxu0 0
        %952 = vmatpush1.bf16.msra.mxu0 0
        %953 = vmatprep.subr.bf16.mxu0 0
        %954 = vmatpush1.bf16.msra.mxu0 0
        %955 = vmatprep.subr.bf16.mxu0 0
        %956 = vmatpush1.bf16.msra.mxu0 0
        %957 = vmatprep.subr.bf16.mxu0 0
        %958 = vmatpush1.bf16.msra.mxu0 0
        %959 = vmatprep.subr.bf16.mxu0 0
        %960 = vmatpush1.bf16.msra.mxu0 0
        %961 = vmatprep.subr.bf16.mxu0 0
        %962 = vmatpush1.bf16.msra.mxu0 0
        %963 = vmatprep.subr.bf16.mxu0 0
        %964 = vmatpush1.bf16.msra.mxu0 0
        %965 = vmatprep.subr.bf16.mxu0 0
        %966 = vmatpush1.bf16.msra.mxu0 0
        %967 = vmatprep.subr.bf16.mxu0 0
        %968 = vmatpush1.bf16.msra.mxu0 0
        %969 = vmatprep.subr.bf16.mxu0 0
        %970 = vmatpush1.bf16.msra.mxu0 0
        %971 = vmatprep.subr.bf16.mxu0 0
        %972 = vmatpush1.bf16.msra.mxu0 0
        %973 = vmatprep.subr.bf16.mxu0 0
        %974 = vmatpush1.bf16.msra.mxu0 0
        %975 = vmatprep.subr.bf16.mxu0 0
        %976 = vmatpush1.bf16.msra.mxu0 0
        %977 = vmatprep.subr.bf16.mxu0 0
        %978 = vmatpush1.bf16.msra.mxu0 0
        %979 = vmatprep.subr.bf16.mxu0 0
        %980 = vmatpush1.bf16.msra.mxu0 0
        %981 = vmatprep.mubr.bf16.mxu0 0
        %982 = vmatmul.mubr.bf16.gmra.mrb[0].mxu0 %v944
        %v983 = vpop.f32.mrb[0].mxu0
        %v984 = vadd.f32 0.0, %v983
        %v985 = vpop.f32.mrb[0].mxu0
        %v986 = vpop.f32.mrb[0].mxu0
        %v987 = vpop.f32.mrb[0].mxu0
        %988 = vdwg.mxu0
        %v989 = vpack.c.bf16 %v984, %v984
        %v991 = vunpack.c.l.b16 %v989
        %v992 = vpack.c.b16 %v991, %v991
        %993 = vrot.lane.b32.xlu0 %v992, 16
        %v994 = vpop.permute.xlu0 %993
        %vm996 = vcmask 191616
        %997 = vst.msk [vmem:[#allocation2] sm:$0xf] %vm996, %v994
        %998 = vrot.lane.b32.xlu0 %v632, 104
        %v999 = vpop.permute.xlu0 %998
        %1000 = vrot.lane.b32.xlu0 %v758, 104
        %v1001 = vpop.permute.xlu0 %1000
        %v1003 = vsel %vm644, %v999, 0
        %v1006 = vsel %vm644, %v1001, 0
        %1008 = vmatprep.subr.bf16.mxu0 0
        %1009 = vmatpush1.bf16.xpose.msra.mxu0 %v1006
        %1010 = vmatprep.subr.bf16.mxu0 0
        %1011 = vmatpush1.bf16.xpose.msra.mxu0 0
        %1012 = vmatprep.subr.bf16.mxu0 0
        %1013 = vmatpush1.bf16.xpose.msra.mxu0 0
        %1014 = vmatprep.subr.bf16.mxu0 0
        %1015 = vmatpush1.bf16.xpose.msra.mxu0 0
        %1016 = vmatprep.subr.bf16.mxu0 0
        %1017 = vmatpush1.bf16.xpose.msra.mxu0 0
        %1018 = vmatprep.subr.bf16.mxu0 0
        %1019 = vmatpush1.bf16.xpose.msra.mxu0 0
        %1020 = vmatprep.subr.bf16.mxu0 0
        %1021 = vmatpush1.bf16.xpose.msra.mxu0 0
        %1022 = vmatprep.subr.bf16.mxu0 0
        %1023 = vmatpush1.bf16.xpose.msra.mxu0 0
        %1024 = vmatprep.subr.bf16.mxu0 0
        %1025 = vmatpush1.bf16.xpose.msra.mxu0 0
        %1026 = vmatprep.subr.bf16.mxu0 0
        %1027 = vmatpush1.bf16.xpose.msra.mxu0 0
        %1028 = vmatprep.subr.bf16.mxu0 0
        %1029 = vmatpush1.bf16.xpose.msra.mxu0 0
        %1030 = vmatprep.subr.bf16.mxu0 0
        %1031 = vmatpush1.bf16.xpose.msra.mxu0 0
        %1032 = vmatprep.subr.bf16.mxu0 0
        %1033 = vmatpush1.bf16.xpose.msra.mxu0 0
        %1034 = vmatprep.subr.bf16.mxu0 0
        %1035 = vmatpush1.bf16.xpose.msra.mxu0 0
        %1036 = vmatprep.subr.bf16.mxu0 0
        %1037 = vmatpush1.bf16.xpose.msra.mxu0 0
        %1038 = vmatprep.subr.bf16.mxu0 0
        %1039 = vmatpush1.bf16.xpose.msra.mxu0 0
        %1040 = vmatprep.mubr.bf16.mxu0 0
        %1041 = vmatmul.mubr.bf16.gmra.mrb[0].mxu0 %v1003
        %v1042 = vpop.f32.mrb[0].mxu0
        %v1043 = vadd.f32 %v643, %v1042
        %v1044 = vpop.f32.mrb[0].mxu0
        %v1045 = vpop.f32.mrb[0].mxu0
        %v1046 = vpop.f32.mrb[0].mxu0
        %1047 = vdwg.mxu0
        %v1048 = vsel %vm644, %v1043, -inf
        %1049 = vmax.xlane.f32.xlu0 %v1048
        %v1050 = vpop.xlane.xlu0 %1049
        %v1051 = vsub.f32 %v1043, %v1050
        %v1052 = vmul.f32 %v1051, 1.442695
        %v1053 = vpow.pop %v1052
        %v1054 = vsel %vm644, %v1053, 0.0
        %1055 = vadd.xlane.f32.xlu0 %v1054
        %v1056 = vpop.xlane.xlu0 %1055
        %v1057 = vrcp.pop %v1056
        %v1058 = vmul.f32 %v1053, %v1057
        %v1059 = vpack.c.bf16 %v1058, %v1058
        %1060 = vrot.lane.b32.xlu0 %v821, 104
        %v1061 = vpop.permute.xlu0 %1060
        %v1063 = vsel %vm644, %v1059, 0
        %v1066 = vsel %vm706, %v1061, 0
        %1068 = vmatprep.subr.bf16.mxu0 0
        %1069 = vmatpush1.bf16.msra.mxu0 %v1066
        %1070 = vmatprep.subr.bf16.mxu0 0
        %1071 = vmatpush1.bf16.msra.mxu0 0
        %1072 = vmatprep.subr.bf16.mxu0 0
        %1073 = vmatpush1.bf16.msra.mxu0 0
        %1074 = vmatprep.subr.bf16.mxu0 0
        %1075 = vmatpush1.bf16.msra.mxu0 0
        %1076 = vmatprep.subr.bf16.mxu0 0
        %1077 = vmatpush1.bf16.msra.mxu0 0
        %1078 = vmatprep.subr.bf16.mxu0 0
        %1079 = vmatpush1.bf16.msra.mxu0 0
        %1080 = vmatprep.subr.bf16.mxu0 0
        %1081 = vmatpush1.bf16.msra.mxu0 0
        %1082 = vmatprep.subr.bf16.mxu0 0
        %1083 = vmatpush1.bf16.msra.mxu0 0
        %1084 = vmatprep.subr.bf16.mxu0 0
        %1085 = vmatpush1.bf16.msra.mxu0 0
        %1086 = vmatprep.subr.bf16.mxu0 0
        %1087 = vmatpush1.bf16.msra.mxu0 0
        %1088 = vmatprep.subr.bf16.mxu0 0
        %1089 = vmatpush1.bf16.msra.mxu0 0
        %1090 = vmatprep.subr.bf16.mxu0 0
        %1091 = vmatpush1.bf16.msra.mxu0 0
        %1092 = vmatprep.subr.bf16.mxu0 0
        %1093 = vmatpush1.bf16.msra.mxu0 0
        %1094 = vmatprep.subr.bf16.mxu0 0
        %1095 = vmatpush1.bf16.msra.mxu0 0
        %1096 = vmatprep.subr.bf16.mxu0 0
        %1097 = vmatpush1.bf16.msra.mxu0 0
        %1098 = vmatprep.subr.bf16.mxu0 0
        %1099 = vmatpush1.bf16.msra.mxu0 0
        %1100 = vmatprep.mubr.bf16.mxu0 0
        %1101 = vmatmul.mubr.bf16.gmra.mrb[0].mxu0 %v1063
        %v1102 = vpop.f32.mrb[0].mxu0
        %v1103 = vadd.f32 0.0, %v1102
        %v1104 = vpop.f32.mrb[0].mxu0
        %v1105 = vpop.f32.mrb[0].mxu0
        %v1106 = vpop.f32.mrb[0].mxu0
        %1107 = vdwg.mxu0
        %v1108 = vpack.c.bf16 %v1103, %v1103
        %v1110 = vunpack.c.l.b16 %v1108
        %v1111 = vpack.c.b16 %v1110, %v1110
        %1112 = vrot.lane.b32.xlu0 %v1111, 24
        %v1113 = vpop.permute.xlu0 %1112
        %vm1115 = vcmask 257216
        %1116 = vst.msk [vmem:[#allocation2] sm:$0xf] %vm1115, %v1113
        %v1117 = vld [vmem:[#allocation2] sm:$0xf]
        %v1118 = vld [vmem:[%s5] sm:$0xf]
        %v1119 = vld [vmem:[%s5 + $0x4] sm:$0xf]
        %v1120 = vld [vmem:[%s5 + $0x8] sm:$0xf]
        %v1121 = vld [vmem:[%s5 + $0xc] sm:$0xf]
        %v1122 = vld [vmem:[%s6] sm:$0x1]
        %v1124 = vlaneseq
        %v1125 = vshrl.u32 %v1124, 7
        %v1126 = vsub.s32 0, %v1125
        %v1127 = vrot.slane %v1122, %v1126
        %v1133 = vunpack.c.l.b16 %v1118
        %v1134 = vunpack.c.l.b16 %v1119
        %v1135 = vunpack.c.l.b16 %v1120
        %v1136 = vunpack.c.l.b16 %v1121
        %v1137 = vpack.c.b16 %v1134, %v1133
        %v1138 = vpack.c.b16 %v1136, %v1135
        %v1142 = vsel %vm587, %v1117, 0
        %1144 = vmatprep.subr.bf16.mxu0 0
        %1145 = vmatpush1.bf16.msra.mxu0 %v1137
        %1146 = vmatprep.subr.bf16.mxu0 0
        %1147 = vmatpush1.bf16.msra.mxu0 %v1138
        %1148 = vmatprep.subr.bf16.mxu0 0
        %1149 = vmatpush1.bf16.msra.mxu0 0
        %1150 = vmatprep.subr.bf16.mxu0 0
        %1151 = vmatpush1.bf16.msra.mxu0 0
        %1152 = vmatprep.subr.bf16.mxu0 0
        %1153 = vmatpush1.bf16.msra.mxu0 0
        %1154 = vmatprep.subr.bf16.mxu0 0
        %1155 = vmatpush1.bf16.msra.mxu0 0
        %1156 = vmatprep.subr.bf16.mxu0 0
        %1157 = vmatpush1.bf16.msra.mxu0 0
        %1158 = vmatprep.subr.bf16.mxu0 0
        %1159 = vmatpush1.bf16.msra.mxu0 0
        %1160 = vmatprep.subr.bf16.mxu0 0
        %1161 = vmatpush1.bf16.msra.mxu0 0
        %1162 = vmatprep.subr.bf16.mxu0 0
        %1163 = vmatpush1.bf16.msra.mxu0 0
        %1164 = vmatprep.subr.bf16.mxu0 0
        %1165 = vmatpush1.bf16.msra.mxu0 0
        %1166 = vmatprep.subr.bf16.mxu0 0
        %1167 = vmatpush1.bf16.msra.mxu0 0
        %1168 = vmatprep.subr.bf16.mxu0 0
        %1169 = vmatpush1.bf16.msra.mxu0 0
        %1170 = vmatprep.subr.bf16.mxu0 0
        %1171 = vmatpush1.bf16.msra.mxu0 0
        %1172 = vmatprep.subr.bf16.mxu0 0
        %1173 = vmatpush1.bf16.msra.mxu0 0
        %1174 = vmatprep.subr.bf16.mxu0 0
        %1175 = vmatpush1.bf16.msra.mxu0 0
        %1176 = vmatprep.mubr.bf16.mxu0 0
        %1177 = vmatmul.mubr.bf16.gmra.mrb[0].mxu0 %v1142
        %v1178 = vpop.f32.mrb[0].mxu0
        %v1179 = vadd.f32 %v1127, %v1178
        %v1180 = vpop.f32.mrb[0].mxu0
        %v1181 = vpop.f32.mrb[0].mxu0
        %v1182 = vpop.f32.mrb[0].mxu0
        %1183 = vdwg.mxu0
        %v1184 = vld [vmem:[%s11] sm:$0x1]
        %v1185 = vld [vmem:[%s12] sm:$0x1]
        %v1186 = vsel %vm587, %v1179, 0.0
        %1187 = vadd.xlane.f32.xlu0 %v1186
        %v1188 = vpop.xlane.xlu0 %1187
        %v1189 = vrcp.pop 32.0
        %v1190 = vmul.f32 %v1188, %v1189
        %v1191 = vsub.f32 %v1179, %v1190
        %v1192 = vmul.f32 %v1191, %v1191
        %v1193 = vsel %vm587, %v1192, 0.0
        %1194 = vadd.xlane.f32.xlu0 %v1193
        %v1195 = vpop.xlane.xlu0 %1194
        %v1196 = vmul.f32 %v1195, %v1189
        %v1197 = vadd.f32 %v1196, 1e-05
        %v1198 = vrsqrt.pop %v1197
        %v1199 = vmul.f32 %v1191, %v1198
        %v1201 = vlaneseq
        %v1202 = vshrl.u32 %v1201, 7
        %v1203 = vsub.s32 0, %v1202
        %v1204 = vrot.slane %v1184, %v1203
        %v1206 = vmul.f32 %v1199, %v1204
        %v1208 = vlaneseq
        %v1209 = vshrl.u32 %v1208, 7
        %v1210 = vsub.s32 0, %v1209
        %v1211 = vrot.slane %v1185, %v1210
        %v1213 = vadd.f32 %v1206, %v1211
        %v1214 = vadd.f32 %v562, %v1213
        %v1215 = vpack.c.bf16 %v1214, %v1214
        %v1216 = vld [vmem:[%s7] sm:$0xf]
        %v1217 = vld [vmem:[%s7 + $0x4] sm:$0xf]
        %v1218 = vld [vmem:[%s7 + $0x8] sm:$0xf]
        %v1219 = vld [vmem:[%s7 + $0xc] sm:$0xf]
        %v1220 = vld [vmem:[%s8] sm:$0x1]
        %v1222 = vlaneseq
        %v1223 = vshrl.u32 %v1222, 7
        %v1224 = vsub.s32 0, %v1223
        %v1225 = vrot.slane %v1220, %v1224
        %v1231 = vunpack.c.l.b16 %v1216
        %v1232 = vunpack.c.l.b16 %v1217
        %v1233 = vunpack.c.l.b16 %v1218
        %v1234 = vunpack.c.l.b16 %v1219
        %v1235 = vpack.c.b16 %v1232, %v1231
        %v1236 = vpack.c.b16 %v1234, %v1233
        %v1240 = vsel %vm587, %v1215, 0
        %1242 = vmatprep.subr.bf16.mxu0 0
        %1243 = vmatpush1.bf16.msra.mxu0 %v1235
        %1244 = vmatprep.subr.bf16.mxu0 0
        %1245 = vmatpush1.bf16.msra.mxu0 %v1236
        %1246 = vmatprep.subr.bf16.mxu0 0
        %1247 = vmatpush1.bf16.msra.mxu0 0
        %1248 = vmatprep.subr.bf16.mxu0 0
        %1249 = vmatpush1.bf16.msra.mxu0 0
        %1250 = vmatprep.subr.bf16.mxu0 0
        %1251 = vmatpush1.bf16.msra.mxu0 0
        %1252 = vmatprep.subr.bf16.mxu0 0
        %1253 = vmatpush1.bf16.msra.mxu0 0
        %1254 = vmatprep.subr.bf16.mxu0 0
        %1255 = vmatpush1.bf16.msra.mxu0 0
        %1256 = vmatprep.subr.bf16.mxu0 0
        %1257 = vmatpush1.bf16.msra.mxu0 0
        %1258 = vmatprep.subr.bf16.mxu0 0
        %1259 = vmatpush1.bf16.msra.mxu0 0
        %1260 = vmatprep.subr.bf16.mxu0 0
        %1261 = vmatpush1.bf16.msra.mxu0 0
        %1262 = vmatprep.subr.bf16.mxu0 0
        %1263 = vmatpush1.bf16.msra.mxu0 0
        %1264 = vmatprep.subr.bf16.mxu0 0
        %1265 = vmatpush1.bf16.msra.mxu0 0
        %1266 = vmatprep.subr.bf16.mxu0 0
        %1267 = vmatpush1.bf16.msra.mxu0 0
        %1268 = vmatprep.subr.bf16.mxu0 0
        %1269 = vmatpush1.bf16.msra.mxu0 0
        %1270 = vmatprep.subr.bf16.mxu0 0
        %1271 = vmatpush1.bf16.msra.mxu0 0
        %1272 = vmatprep.subr.bf16.mxu0 0
        %1273 = vmatpush1.bf16.msra.mxu0 0
        %1274 = vmatprep.mubr.bf16.mxu0 0
        %1275 = vmatmul.mubr.bf16.gmra.mrb[0].mxu0 %v1240
        %v1276 = vpop.f32.mrb[0].mxu0
        %v1277 = vadd.f32 %v1225, %v1276
        %v1278 = vpop.f32.mrb[0].mxu0
        %v1279 = vpop.f32.mrb[0].mxu0
        %v1280 = vpop.f32.mrb[0].mxu0
        %1281 = vdwg.mxu0
        %v1282 = vmax.f32 %v1277, 0.0
        %v1283 = vpack.c.bf16 %v1282, %v1282
        %v1284 = vld [vmem:[%s9] sm:$0xf]
        %v1285 = vld [vmem:[%s9 + $0x4] sm:$0xf]
        %v1286 = vld [vmem:[%s9 + $0x8] sm:$0xf]
        %v1287 = vld [vmem:[%s9 + $0xc] sm:$0xf]
        %v1288 = vld [vmem:[%s9 + $0x10] sm:$0xf]
        %v1289 = vld [vmem:[%s9 + $0x14] sm:$0xf]
        %v1290 = vld [vmem:[%s9 + $0x18] sm:$0xf]
        %v1291 = vld [vmem:[%s9 + $0x1c] sm:$0xf]
        %v1292 = vld [vmem:[%s10] sm:$0x1]
        %v1294 = vlaneseq
        %v1295 = vshrl.u32 %v1294, 7
        %v1296 = vsub.s32 0, %v1295
        %v1297 = vrot.slane %v1292, %v1296
        %v1307 = vunpack.c.l.b16 %v1284
        %v1308 = vunpack.c.l.b16 %v1285
        %v1309 = vunpack.c.l.b16 %v1286
        %v1310 = vunpack.c.l.b16 %v1287
        %v1311 = vunpack.c.l.b16 %v1288
        %v1312 = vunpack.c.l.b16 %v1289
        %v1313 = vunpack.c.l.b16 %v1290
        %v1314 = vunpack.c.l.b16 %v1291
        %v1315 = vpack.c.b16 %v1308, %v1307
        %v1316 = vpack.c.b16 %v1310, %v1309
        %v1317 = vpack.c.b16 %v1312, %v1311
        %v1318 = vpack.c.b16 %v1314, %v1313
        %vm1323 = vcmask 523264
        %v1325 = vsel %vm1323, %v1283, 0
        %1327 = vmatprep.subr.bf16.mxu0 0
        %1328 = vmatpush1.bf16.msra.mxu0 %v1315
        %1329 = vmatprep.subr.bf16.mxu0 0
        %1330 = vmatpush1.bf16.msra.mxu0 %v1316
        %1331 = vmatprep.subr.bf16.mxu0 0
        %1332 = vmatpush1.bf16.msra.mxu0 %v1317
        %1333 = vmatprep.subr.bf16.mxu0 0
        %1334 = vmatpush1.bf16.msra.mxu0 %v1318
        %1335 = vmatprep.subr.bf16.mxu0 0
        %1336 = vmatpush1.bf16.msra.mxu0 0
        %1337 = vmatprep.subr.bf16.mxu0 0
        %1338 = vmatpush1.bf16.msra.mxu0 0
        %1339 = vmatprep.subr.bf16.mxu0 0
        %1340 = vmatpush1.bf16.msra.mxu0 0
        %1341 = vmatprep.subr.bf16.mxu0 0
        %1342 = vmatpush1.bf16.msra.mxu0 0
        %1343 = vmatprep.subr.bf16.mxu0 0
        %1344 = vmatpush1.bf16.msra.mxu0 0
        %1345 = vmatprep.subr.bf16.mxu0 0
        %1346 = vmatpush1.bf16.msra.mxu0 0
        %1347 = vmatprep.subr.bf16.mxu0 0
        %1348 = vmatpush1.bf16.msra.mxu0 0
        %1349 = vmatprep.subr.bf16.mxu0 0
        %1350 = vmatpush1.bf16.msra.mxu0 0
        %1351 = vmatprep.subr.bf16.mxu0 0
        %1352 = vmatpush1.bf16.msra.mxu0 0
        %1353 = vmatprep.subr.bf16.mxu0 0
        %1354 = vmatpush1.bf16.msra.mxu0 0
        %1355 = vmatprep.subr.bf16.mxu0 0
        %1356 = vmatpush1.bf16.msra.mxu0 0
        %1357 = vmatprep.subr.bf16.mxu0 0
        %1358 = vmatpush1.bf16.msra.mxu0 0
        %1359 = vmatprep.mubr.bf16.mxu0 0
        %1360 = vmatmul.mubr.bf16.gmra.mrb[0].mxu0 %v1325
        %v1361 = vpop.f32.mrb[0].mxu0
        %v1362 = vadd.f32 %v1297, %v1361
        %v1363 = vpop.f32.mrb[0].mxu0
        %v1364 = vpop.f32.mrb[0].mxu0
        %v1365 = vpop.f32.mrb[0].mxu0
        %1366 = vdwg.mxu0
        %v1367 = vld [vmem:[%s13] sm:$0x1]
        %v1368 = vld [vmem:[%s14] sm:$0x1]
        %v1369 = vsel %vm587, %v1362, 0.0
        %1370 = vadd.xlane.f32.xlu0 %v1369
        %v1371 = vpop.xlane.xlu0 %1370
        %v1372 = vmul.f32 %v1371, %v1189
        %v1373 = vsub.f32 %v1362, %v1372
        %v1374 = vmul.f32 %v1373, %v1373
        %v1375 = vsel %vm587, %v1374, 0.0
        %1376 = vadd.xlane.f32.xlu0 %v1375
        %v1377 = vpop.xlane.xlu0 %1376
        %v1378 = vmul.f32 %v1377, %v1189
        %v1379 = vadd.f32 %v1378, 1e-05
        %v1380 = vrsqrt.pop %v1379
        %v1381 = vmul.f32 %v1373, %v1380
        %v1383 = vlaneseq
        %v1384 = vshrl.u32 %v1383, 7
        %v1385 = vsub.s32 0, %v1384
        %v1386 = vrot.slane %v1367, %v1385
        %v1388 = vmul.f32 %v1381, %v1386
        %v1390 = vlaneseq
        %v1391 = vshrl.u32 %v1390, 7
        %v1392 = vsub.s32 0, %v1391
        %v1393 = vrot.slane %v1368, %v1392
        %v1395 = vadd.f32 %v1388, %v1393
        %v1396 = vadd.f32 %v1214, %v1395
        %1397 = vst.msk [vmem:[%s552] sm:$0xff] %vm587, %v1396
        %s1398 = sand.u32 %s386, 1
        %s1399 = scalar_lea.sflag [#allocation5], %s1398
        %s1400 = sand.u32 %s386, 1
        %s1401 = smul.addr %s1400, 8
        %s1402 = scalar_lea.vmem [#allocation6], %s1401
        // Predicated region
        $region85: #{transformer_decoder_pallas.7} parent=79 // pred_check
          %p1403 = pneg %p396
        $region86: #{transformer_decoder_pallas.7} parent=79 // pred_check_branch
          %1405 = sbr.rel (%p1403) target = $region88
        $region87: #{transformer_decoder_pallas.7} parent=79 // pred_region
          %s1407 = ssub.s32 128, 128
          %1408 = vsyncadd %s1399, %s1407
          %s1409 = sadd.s32 %s37, %s36
          %s1410 = smul.addr %s1409, 128
          %s1411 = scalar_lea.hbm %s15, %s1410
          %s1413 = sshll.u32 %s1402, 4
          %s1414 = int_to_ptr.vmem [resolvable:$true] %s1413
          %1416 = dma.vmem_to_hbm [thread:$0]  %s1414, 128, %s1411, %s1399
        $region88: #{transformer_decoder_pallas.7} parent=79 // pred_fallthru
          _
      $region80: #{transformer_decoder_pallas.7} parent=5 // pred_fallthru
        _
      %p1417 = scmp.le.s32.totalorder 2, %s27
      // Predicated region
      $region89: #{transformer_decoder_pallas.7} parent=5 // pred_check
        %p1418 = pneg %p1417
      $region90: #{transformer_decoder_pallas.7} parent=5 // pred_check_branch
        %1420 = sbr.rel (%p1418) target = $region92
      $region91: #{transformer_decoder_pallas.7} parent=5 // pred_region
        %s1421 = ssub.s32 %s27, 2
        // Predicated region
        $region93: #{transformer_decoder_pallas.7} parent=91 // pred_check
          %p1422 = pneg %p402
        $region94: #{transformer_decoder_pallas.7} parent=91 // pred_check_branch
          %1424 = sbr.rel (%p1422) target = $region96
        $region95: #{transformer_decoder_pallas.7} parent=91 // pred_region
          %s1425 = sand.u32 %s387, 1
          %s1426 = scalar_lea.sflag [#allocation5], %s1425
          %s1427 = sand.u32 %s387, 1
          %s1428 = smul.addr %s1427, 8
          %s1429 = scalar_lea.vmem [#allocation6], %s1428
          %1430 = dma.done %s1426, 128
        $region96: #{transformer_decoder_pallas.7} parent=91 // pred_fallthru
          _
      $region92: #{transformer_decoder_pallas.7} parent=5 // pred_fallthru
        _
    $region6: #{transformer_decoder_pallas.7} parent=1 // loop_footer
      %s31 = sadd.s32 1, %s27
    $region7: #{transformer_decoder_pallas.7} parent=1 // loop_footer_branch
      %26 = sbr.rel target = $region3
    $region8: #{transformer_decoder_pallas.7} parent=1 // loop_exit
      _
    %1431 = vsyncpa [#allocation4], 1
    %s1432 = scalar_lea.sflag [#allocation4], 1
    %1433 = vsyncpa %s1432, 1
    %1434 = vsyncpa [#allocation5], 1
    %s1435 = scalar_lea.sflag [#allocation5], 1
    %1436 = vsyncpa %s1435, 1

</llo_original>
